<compile_context>
chip_gen: v5e
topology: v5e:2x2
jax: 0.10.0
libtpu: 0.0.40
codegen_flags: <defaults>
</compile_context>

<pallas_src>
import functools

import jax
import jax.numpy as jnp
from jax.experimental import pallas as pl
from jax.experimental.pallas import tpu as pltpu

LEAKY_SLOPE = 0.2
IN_EPS = 1e-5          # nn.InstanceNorm2d default eps (affine=False, biased var)
KSIZE = 4
NTAPS = KSIZE * KSIZE


# ----------------------------- static planning ----------------------------- #
def _out_hw(h_in, w_in, stride):
    hp, wp = h_in + 2, w_in + 2
    return (hp - KSIZE) // stride + 1, (wp - KSIZE) // stride + 1


def _build_plan(params, h, w, c_in):
    """Static per-layer geometry for the fused kernel."""
    plan = []
    hc, wc, cc = h, w, c_in
    for lp in params:
        co = int(lp["w"].shape[-1])
        ho, wo = _out_hw(hc, wc, lp["stride"])
        plan.append(dict(c_in=cc, c_out=co, stride=lp["stride"], mode=lp["mode"],
                         h_in=hc, w_in=wc, h_out=ho, w_out=wo,
                         hp=hc + 2, wp=wc + 2))
        hc, wc, cc = ho, wo, co
    return plan


# ----------------------------- kernel helpers ------------------------------ #
def _leaky_relu(y):
    return jnp.where(y >= 0, y, LEAKY_SLOPE * y)


def _instance_norm_lrelu(y, p_out):
    # Fused single-pass sum / sum-of-squares (biased variance, eps=1e-5).
    inv_p = 1.0 / p_out
    mean = jnp.sum(y, axis=0, keepdims=True) * inv_p
    msq = jnp.sum(y * y, axis=0, keepdims=True) * inv_p
    var = jnp.maximum(msq - mean * mean, 0.0)          # guard against cancellation
    y = (y - mean) * jax.lax.rsqrt(var + IN_EPS)
    return _leaky_relu(y)


def _store_reflect_pad(y, h, w, pad_ref):
    """Write reflect-padded y (h*w, C) into pad_ref (h+2, w+2, C): 5 slab stores."""
    y3 = y.reshape(h, w, y.shape[-1])
    pad_ref[1:h + 1, 1:w + 1, :] = y3                            # interior
    pad_ref[1:h + 1, 0:1, :] = y3[:, 1:2, :]                     # left  = col 1
    pad_ref[1:h + 1, w + 1:w + 2, :] = y3[:, w - 2:w - 1, :]     # right = col w-2
    pad_ref[0:1, :, :] = pad_ref[2:3, :, :]                      # top    = padded row 2
    pad_ref[h + 1:h + 2, :, :] = pad_ref[h - 1:h, :, :]          # bottom = padded row h-1


def _fill_im2col(pad_ref, col_ref, cfg):
    """col_ref (H_out, W_out, NTAPS*C_in); K ordering (kh, kw, c_in) matches w_flat."""
    ho, wo, s, c = cfg["h_out"], cfg["w_out"], cfg["stride"], cfg["c_in"]
    for kh in range(KSIZE):
        for kw in range(KSIZE):
            t = kh * KSIZE + kw
            if s == 1:
                tap = pad_ref[kh:kh + ho, kw:kw + wo, :]
            else:
                tap = pad_ref[pl.ds(kh, ho, stride=s), pl.ds(kw, wo, stride=s), :]
            col_ref[:, :, t * c:(t + 1) * c] = tap


# ------------------------------ fused kernel ------------------------------- #
def _discriminator_kernel(*refs, plan):
    """One batch element: all conv layers fused, activations resident in VMEM."""
    n_layers = len(plan)
    p0_ref, w0_ref, b0_ref = refs[0], refs[1], refs[2]
    layer_refs = []
    k = 3
    for _ in range(n_layers - 1):
        layer_refs.append((refs[k], refs[k + 1]))
        k += 2
    out_ref = refs[k]
    scratch = refs[k + 1:]
    pad_refs = scratch[0::2]
    col_refs = scratch[1::2]

    # ---- layer 0: initial conv (pre-extracted 3-channel patches) + LeakyReLU ----
    y = jnp.dot(p0_ref[0], w0_ref[...], preferred_element_type=jnp.float32)
    y = _leaky_relu(y + b0_ref[...])

    # ---- layers 1..n-1: reflect pad -> im2col scratch -> single wide-K matmul ----
    for l in range(1, n_layers):
        cfg, prev = plan[l], plan[l - 1]
        w_ref, b_ref = layer_refs[l - 1]
        pad_ref, col_ref = pad_refs[l - 1], col_refs[l - 1]

        _store_reflect_pad(y, prev["h_out"], prev["w_out"], pad_ref)
        _fill_im2col(pad_ref, col_ref, cfg)

        p_out = cfg["h_out"] * cfg["w_out"]
        col = col_ref[...].reshape(p_out, NTAPS * cfg["c_in"])
        y = jnp.dot(col, w_ref[...], preferred_element_type=jnp.float32) + b_ref[...]

        if cfg["mode"] == "in_lrelu":
            y = _instance_norm_lrelu(y, p_out)
        elif cfg["mode"] == "lrelu":
            y = _leaky_relu(y)
        elif cfg["mode"] == "sigmoid":
            y = jax.nn.sigmoid(y)
        else:
            raise ValueError(f"unknown mode {cfg['mode']}")

    out_ref[0] = y                                                # (P_last, C_last)


# ------------------------------- JAX glue ----------------------------------- #
def _im2col(x_nhwc, k, stride):
    """(N,H,W,C) -> (N, Ho*Wo, k*k*C); last dim ordered (kh, kw, C)."""
    n, h, w, c = x_nhwc.shape
    ho = (h - k) // stride + 1
    wo = (w - k) // stride + 1
    cols = []
    for i in range(k):
        for j in range(k):
            cols.append(
                x_nhwc[:, i:i + stride * ho:stride, j:j + stride * wo:stride, :])
    p = jnp.stack(cols, axis=3)                     # (N, Ho, Wo, k*k, C)
    return p.reshape(n, ho * wo, k * k * c)


def discriminator_forward_pallas(x_nchw, params):
    x = jnp.transpose(x_nchw, (0, 2, 3, 1)).astype(jnp.float32)        # NCHW->NHWC
    n, h, w, c_in = x.shape
    plan = _build_plan(params, h, w, c_in)

    # Layer 0: reflect pad + im2col in plain JAX (tiny: only 3 input channels).
    xp = jnp.pad(x, ((0, 0), (1, 1), (1, 1), (0, 0)), mode="reflect")
    patches0 = _im2col(xp, KSIZE, plan[0]["stride"])                   # (N, P0, K0)
    p0, k0 = patches0.shape[1], patches0.shape[2]
    c0 = plan[0]["c_out"]

    inputs = [patches0,
              params[0]["w"].reshape(k0, c0).astype(jnp.float32),
              params[0]["b"].reshape(1, c0).astype(jnp.float32)]
    in_specs = [
        pl.BlockSpec((1, p0, k0), lambda i: (i, 0, 0)),
        pl.BlockSpec((k0, c0), lambda i: (0, 0)),
        pl.BlockSpec((1, c0), lambda i: (0, 0)),
    ]

    scratch_shapes = []
    for l in range(1, len(plan)):
        cfg = plan[l]
        ci, co = cfg["c_in"], cfg["c_out"]
        # Weight flattened to (16*C_in, C_out) at trace time; ordering (kh, kw, ci).
        wt = params[l]["w"].reshape(NTAPS * ci, co).astype(jnp.float32)
        bt = params[l]["b"].reshape(1, co).astype(jnp.float32)
        inputs += [wt, bt]
        in_specs += [
            pl.BlockSpec((NTAPS * ci, co), lambda i: (0, 0)),
            pl.BlockSpec((1, co), lambda i: (0, 0)),
        ]
        scratch_shapes += [
            pltpu.VMEM((cfg["hp"], cfg["wp"], ci), jnp.float32),                 # padded act
            pltpu.VMEM((cfg["h_out"], cfg["w_out"], NTAPS * ci), jnp.float32),   # im2col (lane-dense)
        ]

    last = plan[-1]
    p_last, c_last = last["h_out"] * last["w_out"], last["c_out"]

    out = pl.pallas_call(
        functools.partial(_discriminator_kernel, plan=tuple(plan)),
        out_shape=jax.ShapeDtypeStruct((n, p_last, c_last), jnp.float32),
        grid=(n,),
        in_specs=in_specs,
        out_specs=pl.BlockSpec((1, p_last, c_last), lambda i: (i, 0, 0)),
        scratch_shapes=scratch_shapes,
        compiler_params=pltpu.CompilerParams(
            dimension_semantics=("parallel",),
            vmem_limit_bytes=32 << 20,     # fits v7x's 64 MiB/TC with headroom
        ),
    )(*inputs)

    out = out.reshape(n, last["h_out"], last["w_out"], c_last)
    return jnp.transpose(out, (0, 3, 1, 2))                            # NHWC->NCHW


# ------------------------- pure-JAX reference path -------------------------- #
def _conv_layer_ref(x_nhwc, w, b, *, stride, mode):
    xp = jnp.pad(x_nhwc, ((0, 0), (1, 1), (1, 1), (0, 0)), mode="reflect")
    patches = _im2col(xp, KSIZE, stride)
    n, p, kdim = patches.shape
    cout = w.shape[-1]
    ho, wo = _out_hw(x_nhwc.shape[1], x_nhwc.shape[2], stride)
    y = jnp.einsum("npk,kc->npc", patches, w.reshape(kdim, cout)) + b.reshape(1, 1, cout)
    if mode == "in_lrelu":
        mean = jnp.mean(y, axis=1, keepdims=True)
        var = jnp.mean((y - mean) ** 2, axis=1, keepdims=True)
        y = (y - mean) * jax.lax.rsqrt(var + IN_EPS)
        y = jnp.where(y >= 0, y, LEAKY_SLOPE * y)
    elif mode == "lrelu":
        y = jnp.where(y >= 0, y, LEAKY_SLOPE * y)
    else:
        y = jax.nn.sigmoid(y)
    return y.reshape(n, ho, wo, cout)


def discriminator_forward_ref(x_nchw, params):
    x = jnp.transpose(x_nchw, (0, 2, 3, 1))
    for lp in params:
        x = _conv_layer_ref(x, lp["w"], lp["b"], stride=lp["stride"], mode=lp["mode"])
    return jnp.transpose(x, (0, 3, 1, 2))


# --------------------------- parameter setup -------------------------------- #
def init_params(key, in_channels=3, features=(16, 32, 64, 128)):
    """Deterministic synthetic weights, layer layout mirrors Discriminator.__init__."""
    specs = [(in_channels, features[0], 2, "lrelu")]                   # self.initial
    cin = features[0]
    for f in features[1:]:
        stride = 1 if f == features[-1] else 2                         # ConvBlock
        specs.append((cin, f, stride, "in_lrelu"))
        cin = f
    specs.append((cin, 1, 1, "sigmoid"))                               # final conv + Sigmoid

    params = []
    for (ci, co, stride, mode) in specs:
        key, kw, kb = jax.random.split(key, 3)
        fan_in = ci * KSIZE * KSIZE
        w = jax.random.normal(kw, (KSIZE, KSIZE, ci, co), jnp.float32) / jnp.sqrt(fan_in)
        b = 0.01 * jax.random.normal(kb, (co,), jnp.float32)
        params.append(dict(w=w, b=b, stride=stride, mode=mode))
    return params


# --------------------------------- main ------------------------------------ #
if __name__ == "__main__":
    key = jax.random.PRNGKey(0)
    kx, kp = jax.random.split(key)

    batch, in_channels, spatial = 2, 3, 32
    features = (16, 32, 64, 128)        # small features; same layer structure

    x = jax.random.normal(kx, (batch, in_channels, spatial, spatial), jnp.float32)
    params = init_params(kp, in_channels, features)

    fwd = jax.jit(functools.partial(discriminator_forward_pallas, params=params))
    out = jax.block_until_ready(fwd(x))

    # PatchGAN output: 32 -> 16 -> 8 -> 4 -> 3 -> 2 spatial, 1 channel.
    assert out.shape == (batch, 1, 2, 2), out.shape

    ref = jax.block_until_ready(discriminator_forward_ref(x, params))
    if not jnp.allclose(out, ref, atol=1e-4, rtol=1e-4):
        err = float(jnp.max(jnp.abs(out - ref)))
        raise AssertionError(f"Pallas output mismatch vs. reference (max abs err {err})")

    print("KERNEL_OK")
</pallas_src>

<mosaic_0001>
module attributes {stable_mosaic.version = 11 : i64} {
  func.func @_discriminator_kernel(%arg0: i32, %arg1: memref<1x256x48xf32, #tpu.memory_space<vmem>>, %arg2: memref<48x16xf32, #tpu.memory_space<vmem>>, %arg3: memref<1x16xf32, #tpu.memory_space<vmem>>, %arg4: memref<256x32xf32, #tpu.memory_space<vmem>>, %arg5: memref<1x32xf32, #tpu.memory_space<vmem>>, %arg6: memref<512x64xf32, #tpu.memory_space<vmem>>, %arg7: memref<1x64xf32, #tpu.memory_space<vmem>>, %arg8: memref<1024x128xf32, #tpu.memory_space<vmem>>, %arg9: memref<1x128xf32, #tpu.memory_space<vmem>>, %arg10: memref<2048x1xf32, #tpu.memory_space<vmem>>, %arg11: memref<1x1xf32, #tpu.memory_space<vmem>>, %arg12: memref<1x4x1xf32, #tpu.memory_space<vmem>>, %arg13: memref<18x18x16xf32, #tpu.memory_space<vmem>>, %arg14: memref<8x8x256xf32, #tpu.memory_space<vmem>>, %arg15: memref<10x10x32xf32, #tpu.memory_space<vmem>>, %arg16: memref<4x4x512xf32, #tpu.memory_space<vmem>>, %arg17: memref<6x6x64xf32, #tpu.memory_space<vmem>>, %arg18: memref<3x3x1024xf32, #tpu.memory_space<vmem>>, %arg19: memref<5x5x128xf32, #tpu.memory_space<vmem>>, %arg20: memref<2x2x2048xf32, #tpu.memory_space<vmem>>) attributes {dimension_semantics = [#tpu.dimension_semantics<parallel>], iteration_bounds = array<i64: 2>, scalar_prefetch = 0 : i64, scratch_operands = 8 : i64, tpu.core_type = #tpu.core_type<tc>, window_params = [{transform_indices = @transform_0, window_bounds = array<i64: 1, 256, 48>}, {pipeline_mode = #tpu.pipeline_mode<synchronous>, transform_indices = @transform_1, window_bounds = array<i64: 48, 16>}, {pipeline_mode = #tpu.pipeline_mode<synchronous>, transform_indices = @transform_2, window_bounds = array<i64: 1, 16>}, {pipeline_mode = #tpu.pipeline_mode<synchronous>, transform_indices = @transform_3, window_bounds = array<i64: 256, 32>}, {pipeline_mode = #tpu.pipeline_mode<synchronous>, transform_indices = @transform_4, window_bounds = array<i64: 1, 32>}, {pipeline_mode = #tpu.pipeline_mode<synchronous>, transform_indices = @transform_5, window_bounds = array<i64: 512, 64>}, {pipeline_mode = #tpu.pipeline_mode<synchronous>, transform_indices = @transform_6, window_bounds = array<i64: 1, 64>}, {pipeline_mode = #tpu.pipeline_mode<synchronous>, transform_indices = @transform_7, window_bounds = array<i64: 1024, 128>}, {pipeline_mode = #tpu.pipeline_mode<synchronous>, transform_indices = @transform_8, window_bounds = array<i64: 1, 128>}, {pipeline_mode = #tpu.pipeline_mode<synchronous>, transform_indices = @transform_9, window_bounds = array<i64: 2048, 1>}, {pipeline_mode = #tpu.pipeline_mode<synchronous>, transform_indices = @transform_10, window_bounds = array<i64: 1, 1>}, {transform_indices = @transform_11, window_bounds = array<i64: 1, 4, 1>}]} {
    %c0 = arith.constant 0 : index
    %c0_0 = arith.constant 0 : index
    %c0_1 = arith.constant 0 : index
    %0 = vector.load %arg1[%c0, %c0_0, %c0_1] : memref<1x256x48xf32, #tpu.memory_space<vmem>>, vector<1x256x48xf32>
    %1 = vector.shape_cast %0 : vector<1x256x48xf32> to vector<256x48xf32>
    %c0_2 = arith.constant 0 : index
    %c0_3 = arith.constant 0 : index
    %2 = vector.load %arg2[%c0_2, %c0_3] : memref<48x16xf32, #tpu.memory_space<vmem>>, vector<48x16xf32>
    %cst = arith.constant dense<0.000000e+00> : vector<256x16xf32>
    %3 = tpu.matmul %1, %2, %cst {dimension_numbers = #tpu.dot_dimension_numbers<[1], [0], [0], [1], [0, 0, 1, 1], [], []>} : vector<256x48xf32>, vector<48x16xf32>, vector<256x16xf32> -> vector<256x16xf32>
    %c0_4 = arith.constant 0 : index
    %c0_5 = arith.constant 0 : index
    %4 = vector.load %arg3[%c0_4, %c0_5] : memref<1x16xf32, #tpu.memory_space<vmem>>, vector<1x16xf32>
    %5 = vector.broadcast %4 : vector<1x16xf32> to vector<256x16xf32>
    %6 = arith.addf %3, %5 : vector<256x16xf32>
    %cst_6 = arith.constant 0.000000e+00 : f32
    %7 = vector.broadcast %cst_6 : f32 to vector<256x16xf32>
    %8 = arith.cmpf oge, %6, %7 : vector<256x16xf32>
    %cst_7 = arith.constant 2.000000e-01 : f32
    %9 = vector.broadcast %cst_7 : f32 to vector<256x16xf32>
    %10 = arith.mulf %9, %6 : vector<256x16xf32>
    %11 = arith.select %8, %6, %10 : vector<256x16xi1>, vector<256x16xf32>
    %12 = vector.shape_cast %11 : vector<256x16xf32> to vector<16x16x16xf32>
    %c1 = arith.constant 1 : index
    %c1_8 = arith.constant 1 : index
    %c0_9 = arith.constant 0 : index
    %13 = vector.load %arg13[%c1, %c1_8, %c0_9] : memref<18x18x16xf32, #tpu.memory_space<vmem>>, vector<16x16x16xf32>
    tpu.vector_store %arg13[%c1, %c1_8, %c0_9], %12 {strides = array<i32>} : memref<18x18x16xf32, #tpu.memory_space<vmem>>, vector<16x16x16xf32>,
    %14 = vector.extract_strided_slice %12 {offsets = [0, 1, 0], sizes = [16, 1, 16], strides = [1, 1, 1]} : vector<16x16x16xf32> to vector<16x1x16xf32>
    %c1_10 = arith.constant 1 : index
    %c0_11 = arith.constant 0 : index
    %c0_12 = arith.constant 0 : index
    %15 = vector.load %arg13[%c1_10, %c0_11, %c0_12] : memref<18x18x16xf32, #tpu.memory_space<vmem>>, vector<16x1x16xf32>
    tpu.vector_store %arg13[%c1_10, %c0_11, %c0_12], %14 {strides = array<i32>} : memref<18x18x16xf32, #tpu.memory_space<vmem>>, vector<16x1x16xf32>,
    %16 = vector.extract_strided_slice %12 {offsets = [0, 14, 0], sizes = [16, 1, 16], strides = [1, 1, 1]} : vector<16x16x16xf32> to vector<16x1x16xf32>
    %c1_13 = arith.constant 1 : index
    %c17 = arith.constant 17 : index
    %c0_14 = arith.constant 0 : index
    %17 = vector.load %arg13[%c1_13, %c17, %c0_14] : memref<18x18x16xf32, #tpu.memory_space<vmem>>, vector<16x1x16xf32>
    tpu.vector_store %arg13[%c1_13, %c17, %c0_14], %16 {strides = array<i32>} : memref<18x18x16xf32, #tpu.memory_space<vmem>>, vector<16x1x16xf32>,
    %c2 = arith.constant 2 : index
    %c0_15 = arith.constant 0 : index
    %c0_16 = arith.constant 0 : index
    %18 = vector.load %arg13[%c2, %c0_15, %c0_16] : memref<18x18x16xf32, #tpu.memory_space<vmem>>, vector<1x18x16xf32>
    %c0_17 = arith.constant 0 : index
    %c0_18 = arith.constant 0 : index
    %c0_19 = arith.constant 0 : index
    %19 = vector.load %arg13[%c0_17, %c0_18, %c0_19] : memref<18x18x16xf32, #tpu.memory_space<vmem>>, vector<1x18x16xf32>
    tpu.vector_store %arg13[%c0_17, %c0_18, %c0_19], %18 {strides = array<i32>} : memref<18x18x16xf32, #tpu.memory_space<vmem>>, vector<1x18x16xf32>,
    %c15 = arith.constant 15 : index
    %c0_20 = arith.constant 0 : index
    %c0_21 = arith.constant 0 : index
    %20 = vector.load %arg13[%c15, %c0_20, %c0_21] : memref<18x18x16xf32, #tpu.memory_space<vmem>>, vector<1x18x16xf32>
    %c17_22 = arith.constant 17 : index
    %c0_23 = arith.constant 0 : index
    %c0_24 = arith.constant 0 : index
    %21 = vector.load %arg13[%c17_22, %c0_23, %c0_24] : memref<18x18x16xf32, #tpu.memory_space<vmem>>, vector<1x18x16xf32>
    tpu.vector_store %arg13[%c17_22, %c0_23, %c0_24], %20 {strides = array<i32>} : memref<18x18x16xf32, #tpu.memory_space<vmem>>, vector<1x18x16xf32>,
    %c0_25 = arith.constant 0 : index
    %c0_26 = arith.constant 0 : index
    %c0_27 = arith.constant 0 : index
    %22 = tpu.strided_load %arg13[%c0_25, %c0_26, %c0_27] {strides = array<i32: 2, 2, 1>} : memref<18x18x16xf32, #tpu.memory_space<vmem>>, vector<8x8x16xf32>
    %c0_28 = arith.constant 0 : index
    %c0_29 = arith.constant 0 : index
    %c0_30 = arith.constant 0 : index
    %23 = vector.load %arg14[%c0_28, %c0_29, %c0_30] : memref<8x8x256xf32, #tpu.memory_space<vmem>>, vector<8x8x16xf32>
    tpu.vector_store %arg14[%c0_28, %c0_29, %c0_30], %22 {strides = array<i32>} : memref<8x8x256xf32, #tpu.memory_space<vmem>>, vector<8x8x16xf32>,
    %c0_31 = arith.constant 0 : index
    %c1_32 = arith.constant 1 : index
    %c0_33 = arith.constant 0 : index
    %24 = tpu.strided_load %arg13[%c0_31, %c1_32, %c0_33] {strides = array<i32: 2, 2, 1>} : memref<18x18x16xf32, #tpu.memory_space<vmem>>, vector<8x8x16xf32>
    %c0_34 = arith.constant 0 : index
    %c0_35 = arith.constant 0 : index
    %c16 = arith.constant 16 : index
    %25 = vector.load %arg14[%c0_34, %c0_35, %c16] : memref<8x8x256xf32, #tpu.memory_space<vmem>>, vector<8x8x16xf32>
    tpu.vector_store %arg14[%c0_34, %c0_35, %c16], %24 {strides = array<i32>} : memref<8x8x256xf32, #tpu.memory_space<vmem>>, vector<8x8x16xf32>,
    %c0_36 = arith.constant 0 : index
    %c2_37 = arith.constant 2 : index
    %c0_38 = arith.constant 0 : index
    %26 = tpu.strided_load %arg13[%c0_36, %c2_37, %c0_38] {strides = array<i32: 2, 2, 1>} : memref<18x18x16xf32, #tpu.memory_space<vmem>>, vector<8x8x16xf32>
    %c0_39 = arith.constant 0 : index
    %c0_40 = arith.constant 0 : index
    %c32 = arith.constant 32 : index
    %27 = vector.load %arg14[%c0_39, %c0_40, %c32] : memref<8x8x256xf32, #tpu.memory_space<vmem>>, vector<8x8x16xf32>
    tpu.vector_store %arg14[%c0_39, %c0_40, %c32], %26 {strides = array<i32>} : memref<8x8x256xf32, #tpu.memory_space<vmem>>, vector<8x8x16xf32>,
    %c0_41 = arith.constant 0 : index
    %c3 = arith.constant 3 : index
    %c0_42 = arith.constant 0 : index
    %28 = tpu.strided_load %arg13[%c0_41, %c3, %c0_42] {strides = array<i32: 2, 2, 1>} : memref<18x18x16xf32, #tpu.memory_space<vmem>>, vector<8x8x16xf32>
    %c0_43 = arith.constant 0 : index
    %c0_44 = arith.constant 0 : index
    %c48 = arith.constant 48 : index
    %29 = vector.load %arg14[%c0_43, %c0_44, %c48] : memref<8x8x256xf32, #tpu.memory_space<vmem>>, vector<8x8x16xf32>
    tpu.vector_store %arg14[%c0_43, %c0_44, %c48], %28 {strides = array<i32>} : memref<8x8x256xf32, #tpu.memory_space<vmem>>, vector<8x8x16xf32>,
    %c1_45 = arith.constant 1 : index
    %c0_46 = arith.constant 0 : index
    %c0_47 = arith.constant 0 : index
    %30 = tpu.strided_load %arg13[%c1_45, %c0_46, %c0_47] {strides = array<i32: 2, 2, 1>} : memref<18x18x16xf32, #tpu.memory_space<vmem>>, vector<8x8x16xf32>
    %c0_48 = arith.constant 0 : index
    %c0_49 = arith.constant 0 : index
    %c64 = arith.constant 64 : index
    %31 = vector.load %arg14[%c0_48, %c0_49, %c64] : memref<8x8x256xf32, #tpu.memory_space<vmem>>, vector<8x8x16xf32>
    tpu.vector_store %arg14[%c0_48, %c0_49, %c64], %30 {strides = array<i32>} : memref<8x8x256xf32, #tpu.memory_space<vmem>>, vector<8x8x16xf32>,
    %c1_50 = arith.constant 1 : index
    %c1_51 = arith.constant 1 : index
    %c0_52 = arith.constant 0 : index
    %32 = tpu.strided_load %arg13[%c1_50, %c1_51, %c0_52] {strides = array<i32: 2, 2, 1>} : memref<18x18x16xf32, #tpu.memory_space<vmem>>, vector<8x8x16xf32>
    %c0_53 = arith.constant 0 : index
    %c0_54 = arith.constant 0 : index
    %c80 = arith.constant 80 : index
    %33 = vector.load %arg14[%c0_53, %c0_54, %c80] : memref<8x8x256xf32, #tpu.memory_space<vmem>>, vector<8x8x16xf32>
    tpu.vector_store %arg14[%c0_53, %c0_54, %c80], %32 {strides = array<i32>} : memref<8x8x256xf32, #tpu.memory_space<vmem>>, vector<8x8x16xf32>,
    %c1_55 = arith.constant 1 : index
    %c2_56 = arith.constant 2 : index
    %c0_57 = arith.constant 0 : index
    %34 = tpu.strided_load %arg13[%c1_55, %c2_56, %c0_57] {strides = array<i32: 2, 2, 1>} : memref<18x18x16xf32, #tpu.memory_space<vmem>>, vector<8x8x16xf32>
    %c0_58 = arith.constant 0 : index
    %c0_59 = arith.constant 0 : index
    %c96 = arith.constant 96 : index
    %35 = vector.load %arg14[%c0_58, %c0_59, %c96] : memref<8x8x256xf32, #tpu.memory_space<vmem>>, vector<8x8x16xf32>
    tpu.vector_store %arg14[%c0_58, %c0_59, %c96], %34 {strides = array<i32>} : memref<8x8x256xf32, #tpu.memory_space<vmem>>, vector<8x8x16xf32>,
    %c1_60 = arith.constant 1 : index
    %c3_61 = arith.constant 3 : index
    %c0_62 = arith.constant 0 : index
    %36 = tpu.strided_load %arg13[%c1_60, %c3_61, %c0_62] {strides = array<i32: 2, 2, 1>} : memref<18x18x16xf32, #tpu.memory_space<vmem>>, vector<8x8x16xf32>
    %c0_63 = arith.constant 0 : index
    %c0_64 = arith.constant 0 : index
    %c112 = arith.constant 112 : index
    %37 = vector.load %arg14[%c0_63, %c0_64, %c112] : memref<8x8x256xf32, #tpu.memory_space<vmem>>, vector<8x8x16xf32>
    tpu.vector_store %arg14[%c0_63, %c0_64, %c112], %36 {strides = array<i32>} : memref<8x8x256xf32, #tpu.memory_space<vmem>>, vector<8x8x16xf32>,
    %c2_65 = arith.constant 2 : index
    %c0_66 = arith.constant 0 : index
    %c0_67 = arith.constant 0 : index
    %38 = tpu.strided_load %arg13[%c2_65, %c0_66, %c0_67] {strides = array<i32: 2, 2, 1>} : memref<18x18x16xf32, #tpu.memory_space<vmem>>, vector<8x8x16xf32>
    %c0_68 = arith.constant 0 : index
    %c0_69 = arith.constant 0 : index
    %c128 = arith.constant 128 : index
    %39 = vector.load %arg14[%c0_68, %c0_69, %c128] : memref<8x8x256xf32, #tpu.memory_space<vmem>>, vector<8x8x16xf32>
    tpu.vector_store %arg14[%c0_68, %c0_69, %c128], %38 {strides = array<i32>} : memref<8x8x256xf32, #tpu.memory_space<vmem>>, vector<8x8x16xf32>,
    %c2_70 = arith.constant 2 : index
    %c1_71 = arith.constant 1 : index
    %c0_72 = arith.constant 0 : index
    %40 = tpu.strided_load %arg13[%c2_70, %c1_71, %c0_72] {strides = array<i32: 2, 2, 1>} : memref<18x18x16xf32, #tpu.memory_space<vmem>>, vector<8x8x16xf32>
    %c0_73 = arith.constant 0 : index
    %c0_74 = arith.constant 0 : index
    %c144 = arith.constant 144 : index
    %41 = vector.load %arg14[%c0_73, %c0_74, %c144] : memref<8x8x256xf32, #tpu.memory_space<vmem>>, vector<8x8x16xf32>
    tpu.vector_store %arg14[%c0_73, %c0_74, %c144], %40 {strides = array<i32>} : memref<8x8x256xf32, #tpu.memory_space<vmem>>, vector<8x8x16xf32>,
    %c2_75 = arith.constant 2 : index
    %c2_76 = arith.constant 2 : index
    %c0_77 = arith.constant 0 : index
    %42 = tpu.strided_load %arg13[%c2_75, %c2_76, %c0_77] {strides = array<i32: 2, 2, 1>} : memref<18x18x16xf32, #tpu.memory_space<vmem>>, vector<8x8x16xf32>
    %c0_78 = arith.constant 0 : index
    %c0_79 = arith.constant 0 : index
    %c160 = arith.constant 160 : index
    %43 = vector.load %arg14[%c0_78, %c0_79, %c160] : memref<8x8x256xf32, #tpu.memory_space<vmem>>, vector<8x8x16xf32>
    tpu.vector_store %arg14[%c0_78, %c0_79, %c160], %42 {strides = array<i32>} : memref<8x8x256xf32, #tpu.memory_space<vmem>>, vector<8x8x16xf32>,
    %c2_80 = arith.constant 2 : index
    %c3_81 = arith.constant 3 : index
    %c0_82 = arith.constant 0 : index
    %44 = tpu.strided_load %arg13[%c2_80, %c3_81, %c0_82] {strides = array<i32: 2, 2, 1>} : memref<18x18x16xf32, #tpu.memory_space<vmem>>, vector<8x8x16xf32>
    %c0_83 = arith.constant 0 : index
    %c0_84 = arith.constant 0 : index
    %c176 = arith.constant 176 : index
    %45 = vector.load %arg14[%c0_83, %c0_84, %c176] : memref<8x8x256xf32, #tpu.memory_space<vmem>>, vector<8x8x16xf32>
    tpu.vector_store %arg14[%c0_83, %c0_84, %c176], %44 {strides = array<i32>} : memref<8x8x256xf32, #tpu.memory_space<vmem>>, vector<8x8x16xf32>,
    %c3_85 = arith.constant 3 : index
    %c0_86 = arith.constant 0 : index
    %c0_87 = arith.constant 0 : index
    %46 = tpu.strided_load %arg13[%c3_85, %c0_86, %c0_87] {strides = array<i32: 2, 2, 1>} : memref<18x18x16xf32, #tpu.memory_space<vmem>>, vector<8x8x16xf32>
    %c0_88 = arith.constant 0 : index
    %c0_89 = arith.constant 0 : index
    %c192 = arith.constant 192 : index
    %47 = vector.load %arg14[%c0_88, %c0_89, %c192] : memref<8x8x256xf32, #tpu.memory_space<vmem>>, vector<8x8x16xf32>
    tpu.vector_store %arg14[%c0_88, %c0_89, %c192], %46 {strides = array<i32>} : memref<8x8x256xf32, #tpu.memory_space<vmem>>, vector<8x8x16xf32>,
    %c3_90 = arith.constant 3 : index
    %c1_91 = arith.constant 1 : index
    %c0_92 = arith.constant 0 : index
    %48 = tpu.strided_load %arg13[%c3_90, %c1_91, %c0_92] {strides = array<i32: 2, 2, 1>} : memref<18x18x16xf32, #tpu.memory_space<vmem>>, vector<8x8x16xf32>
    %c0_93 = arith.constant 0 : index
    %c0_94 = arith.constant 0 : index
    %c208 = arith.constant 208 : index
    %49 = vector.load %arg14[%c0_93, %c0_94, %c208] : memref<8x8x256xf32, #tpu.memory_space<vmem>>, vector<8x8x16xf32>
    tpu.vector_store %arg14[%c0_93, %c0_94, %c208], %48 {strides = array<i32>} : memref<8x8x256xf32, #tpu.memory_space<vmem>>, vector<8x8x16xf32>,
    %c3_95 = arith.constant 3 : index
    %c2_96 = arith.constant 2 : index
    %c0_97 = arith.constant 0 : index
    %50 = tpu.strided_load %arg13[%c3_95, %c2_96, %c0_97] {strides = array<i32: 2, 2, 1>} : memref<18x18x16xf32, #tpu.memory_space<vmem>>, vector<8x8x16xf32>
    %c0_98 = arith.constant 0 : index
    %c0_99 = arith.constant 0 : index
    %c224 = arith.constant 224 : index
    %51 = vector.load %arg14[%c0_98, %c0_99, %c224] : memref<8x8x256xf32, #tpu.memory_space<vmem>>, vector<8x8x16xf32>
    tpu.vector_store %arg14[%c0_98, %c0_99, %c224], %50 {strides = array<i32>} : memref<8x8x256xf32, #tpu.memory_space<vmem>>, vector<8x8x16xf32>,
    %c3_100 = arith.constant 3 : index
    %c3_101 = arith.constant 3 : index
    %c0_102 = arith.constant 0 : index
    %52 = tpu.strided_load %arg13[%c3_100, %c3_101, %c0_102] {strides = array<i32: 2, 2, 1>} : memref<18x18x16xf32, #tpu.memory_space<vmem>>, vector<8x8x16xf32>
    %c0_103 = arith.constant 0 : index
    %c0_104 = arith.constant 0 : index
    %c240 = arith.constant 240 : index
    %53 = vector.load %arg14[%c0_103, %c0_104, %c240] : memref<8x8x256xf32, #tpu.memory_space<vmem>>, vector<8x8x16xf32>
    tpu.vector_store %arg14[%c0_103, %c0_104, %c240], %52 {strides = array<i32>} : memref<8x8x256xf32, #tpu.memory_space<vmem>>, vector<8x8x16xf32>,
    %c0_105 = arith.constant 0 : index
    %c0_106 = arith.constant 0 : index
    %c0_107 = arith.constant 0 : index
    %54 = vector.load %arg14[%c0_105, %c0_106, %c0_107] : memref<8x8x256xf32, #tpu.memory_space<vmem>>, vector<8x8x256xf32>
    %55 = vector.shape_cast %54 : vector<8x8x256xf32> to vector<64x256xf32>
    %c0_108 = arith.constant 0 : index
    %c0_109 = arith.constant 0 : index
    %56 = vector.load %arg4[%c0_108, %c0_109] : memref<256x32xf32, #tpu.memory_space<vmem>>, vector<256x32xf32>
    %cst_110 = arith.constant dense<0.000000e+00> : vector<64x32xf32>
    %57 = tpu.matmul %55, %56, %cst_110 {dimension_numbers = #tpu.dot_dimension_numbers<[1], [0], [0], [1], [0, 0, 1, 1], [], []>} : vector<64x256xf32>, vector<256x32xf32>, vector<64x32xf32> -> vector<64x32xf32>
    %c0_111 = arith.constant 0 : index
    %c0_112 = arith.constant 0 : index
    %58 = vector.load %arg5[%c0_111, %c0_112] : memref<1x32xf32, #tpu.memory_space<vmem>>, vector<1x32xf32>
    %59 = vector.broadcast %58 : vector<1x32xf32> to vector<64x32xf32>
    %60 = arith.addf %57, %59 : vector<64x32xf32>
    %cst_113 = arith.constant dense<0.000000e+00> : vector<32xf32>
    %61 = vector.multi_reduction <add>, %60, %cst_113 [0] : vector<64x32xf32> to vector<32xf32>
    %62 = vector.shape_cast %61 : vector<32xf32> to vector<1x32xf32>
    %cst_114 = arith.constant 1.562500e-02 : f32
    %63 = vector.broadcast %cst_114 : f32 to vector<1x32xf32>
    %64 = arith.mulf %62, %63 : vector<1x32xf32>
    %65 = arith.mulf %60, %60 : vector<64x32xf32>
    %cst_115 = arith.constant dense<0.000000e+00> : vector<32xf32>
    %66 = vector.multi_reduction <add>, %65, %cst_115 [0] : vector<64x32xf32> to vector<32xf32>
    %67 = vector.shape_cast %66 : vector<32xf32> to vector<1x32xf32>
    %cst_116 = arith.constant 1.562500e-02 : f32
    %68 = vector.broadcast %cst_116 : f32 to vector<1x32xf32>
    %69 = arith.mulf %67, %68 : vector<1x32xf32>
    %70 = arith.mulf %64, %64 : vector<1x32xf32>
    %71 = arith.subf %69, %70 : vector<1x32xf32>
    %cst_117 = arith.constant 0.000000e+00 : f32
    %72 = vector.broadcast %cst_117 : f32 to vector<1x32xf32>
    %73 = arith.maximumf %71, %72 : vector<1x32xf32>
    %74 = vector.broadcast %64 : vector<1x32xf32> to vector<64x32xf32>
    %75 = arith.subf %60, %74 : vector<64x32xf32>
    %cst_118 = arith.constant 9.99999974E-6 : f32
    %76 = vector.broadcast %cst_118 : f32 to vector<1x32xf32>
    %77 = arith.addf %73, %76 : vector<1x32xf32>
    %78 = math.rsqrt %77 : vector<1x32xf32>
    %79 = vector.broadcast %78 : vector<1x32xf32> to vector<64x32xf32>
    %80 = arith.mulf %75, %79 : vector<64x32xf32>
    %cst_119 = arith.constant 0.000000e+00 : f32
    %81 = vector.broadcast %cst_119 : f32 to vector<64x32xf32>
    %82 = arith.cmpf oge, %80, %81 : vector<64x32xf32>
    %cst_120 = arith.constant 2.000000e-01 : f32
    %83 = vector.broadcast %cst_120 : f32 to vector<64x32xf32>
    %84 = arith.mulf %83, %80 : vector<64x32xf32>
    %85 = arith.select %82, %80, %84 : vector<64x32xi1>, vector<64x32xf32>
    %86 = vector.shape_cast %85 : vector<64x32xf32> to vector<8x8x32xf32>
    %c1_121 = arith.constant 1 : index
    %c1_122 = arith.constant 1 : index
    %c0_123 = arith.constant 0 : index
    %87 = vector.load %arg15[%c1_121, %c1_122, %c0_123] : memref<10x10x32xf32, #tpu.memory_space<vmem>>, vector<8x8x32xf32>
    tpu.vector_store %arg15[%c1_121, %c1_122, %c0_123], %86 {strides = array<i32>} : memref<10x10x32xf32, #tpu.memory_space<vmem>>, vector<8x8x32xf32>,
    %88 = vector.extract_strided_slice %86 {offsets = [0, 1, 0], sizes = [8, 1, 32], strides = [1, 1, 1]} : vector<8x8x32xf32> to vector<8x1x32xf32>
    %c1_124 = arith.constant 1 : index
    %c0_125 = arith.constant 0 : index
    %c0_126 = arith.constant 0 : index
    %89 = vector.load %arg15[%c1_124, %c0_125, %c0_126] : memref<10x10x32xf32, #tpu.memory_space<vmem>>, vector<8x1x32xf32>
    tpu.vector_store %arg15[%c1_124, %c0_125, %c0_126], %88 {strides = array<i32>} : memref<10x10x32xf32, #tpu.memory_space<vmem>>, vector<8x1x32xf32>,
    %90 = vector.extract_strided_slice %86 {offsets = [0, 6, 0], sizes = [8, 1, 32], strides = [1, 1, 1]} : vector<8x8x32xf32> to vector<8x1x32xf32>
    %c1_127 = arith.constant 1 : index
    %c9 = arith.constant 9 : index
    %c0_128 = arith.constant 0 : index
    %91 = vector.load %arg15[%c1_127, %c9, %c0_128] : memref<10x10x32xf32, #tpu.memory_space<vmem>>, vector<8x1x32xf32>
    tpu.vector_store %arg15[%c1_127, %c9, %c0_128], %90 {strides = array<i32>} : memref<10x10x32xf32, #tpu.memory_space<vmem>>, vector<8x1x32xf32>,
    %c2_129 = arith.constant 2 : index
    %c0_130 = arith.constant 0 : index
    %c0_131 = arith.constant 0 : index
    %92 = vector.load %arg15[%c2_129, %c0_130, %c0_131] : memref<10x10x32xf32, #tpu.memory_space<vmem>>, vector<1x10x32xf32>
    %c0_132 = arith.constant 0 : index
    %c0_133 = arith.constant 0 : index
    %c0_134 = arith.constant 0 : index
    %93 = vector.load %arg15[%c0_132, %c0_133, %c0_134] : memref<10x10x32xf32, #tpu.memory_space<vmem>>, vector<1x10x32xf32>
    tpu.vector_store %arg15[%c0_132, %c0_133, %c0_134], %92 {strides = array<i32>} : memref<10x10x32xf32, #tpu.memory_space<vmem>>, vector<1x10x32xf32>,
    %c7 = arith.constant 7 : index
    %c0_135 = arith.constant 0 : index
    %c0_136 = arith.constant 0 : index
    %94 = vector.load %arg15[%c7, %c0_135, %c0_136] : memref<10x10x32xf32, #tpu.memory_space<vmem>>, vector<1x10x32xf32>
    %c9_137 = arith.constant 9 : index
    %c0_138 = arith.constant 0 : index
    %c0_139 = arith.constant 0 : index
    %95 = vector.load %arg15[%c9_137, %c0_138, %c0_139] : memref<10x10x32xf32, #tpu.memory_space<vmem>>, vector<1x10x32xf32>
    tpu.vector_store %arg15[%c9_137, %c0_138, %c0_139], %94 {strides = array<i32>} : memref<10x10x32xf32, #tpu.memory_space<vmem>>, vector<1x10x32xf32>,
    %c0_140 = arith.constant 0 : index
    %c0_141 = arith.constant 0 : index
    %c0_142 = arith.constant 0 : index
    %96 = tpu.strided_load %arg15[%c0_140, %c0_141, %c0_142] {strides = array<i32: 2, 2, 1>} : memref<10x10x32xf32, #tpu.memory_space<vmem>>, vector<4x4x32xf32>
    %c0_143 = arith.constant 0 : index
    %c0_144 = arith.constant 0 : index
    %c0_145 = arith.constant 0 : index
    %97 = vector.load %arg16[%c0_143, %c0_144, %c0_145] : memref<4x4x512xf32, #tpu.memory_space<vmem>>, vector<4x4x32xf32>
    tpu.vector_store %arg16[%c0_143, %c0_144, %c0_145], %96 {strides = array<i32>} : memref<4x4x512xf32, #tpu.memory_space<vmem>>, vector<4x4x32xf32>,
    %c0_146 = arith.constant 0 : index
    %c1_147 = arith.constant 1 : index
    %c0_148 = arith.constant 0 : index
    %98 = tpu.strided_load %arg15[%c0_146, %c1_147, %c0_148] {strides = array<i32: 2, 2, 1>} : memref<10x10x32xf32, #tpu.memory_space<vmem>>, vector<4x4x32xf32>
    %c0_149 = arith.constant 0 : index
    %c0_150 = arith.constant 0 : index
    %c32_151 = arith.constant 32 : index
    %99 = vector.load %arg16[%c0_149, %c0_150, %c32_151] : memref<4x4x512xf32, #tpu.memory_space<vmem>>, vector<4x4x32xf32>
    tpu.vector_store %arg16[%c0_149, %c0_150, %c32_151], %98 {strides = array<i32>} : memref<4x4x512xf32, #tpu.memory_space<vmem>>, vector<4x4x32xf32>,
    %c0_152 = arith.constant 0 : index
    %c2_153 = arith.constant 2 : index
    %c0_154 = arith.constant 0 : index
    %100 = tpu.strided_load %arg15[%c0_152, %c2_153, %c0_154] {strides = array<i32: 2, 2, 1>} : memref<10x10x32xf32, #tpu.memory_space<vmem>>, vector<4x4x32xf32>
    %c0_155 = arith.constant 0 : index
    %c0_156 = arith.constant 0 : index
    %c64_157 = arith.constant 64 : index
    %101 = vector.load %arg16[%c0_155, %c0_156, %c64_157] : memref<4x4x512xf32, #tpu.memory_space<vmem>>, vector<4x4x32xf32>
    tpu.vector_store %arg16[%c0_155, %c0_156, %c64_157], %100 {strides = array<i32>} : memref<4x4x512xf32, #tpu.memory_space<vmem>>, vector<4x4x32xf32>,
    %c0_158 = arith.constant 0 : index
    %c3_159 = arith.constant 3 : index
    %c0_160 = arith.constant 0 : index
    %102 = tpu.strided_load %arg15[%c0_158, %c3_159, %c0_160] {strides = array<i32: 2, 2, 1>} : memref<10x10x32xf32, #tpu.memory_space<vmem>>, vector<4x4x32xf32>
    %c0_161 = arith.constant 0 : index
    %c0_162 = arith.constant 0 : index
    %c96_163 = arith.constant 96 : index
    %103 = vector.load %arg16[%c0_161, %c0_162, %c96_163] : memref<4x4x512xf32, #tpu.memory_space<vmem>>, vector<4x4x32xf32>
    tpu.vector_store %arg16[%c0_161, %c0_162, %c96_163], %102 {strides = array<i32>} : memref<4x4x512xf32, #tpu.memory_space<vmem>>, vector<4x4x32xf32>,
    %c1_164 = arith.constant 1 : index
    %c0_165 = arith.constant 0 : index
    %c0_166 = arith.constant 0 : index
    %104 = tpu.strided_load %arg15[%c1_164, %c0_165, %c0_166] {strides = array<i32: 2, 2, 1>} : memref<10x10x32xf32, #tpu.memory_space<vmem>>, vector<4x4x32xf32>
    %c0_167 = arith.constant 0 : index
    %c0_168 = arith.constant 0 : index
    %c128_169 = arith.constant 128 : index
    %105 = vector.load %arg16[%c0_167, %c0_168, %c128_169] : memref<4x4x512xf32, #tpu.memory_space<vmem>>, vector<4x4x32xf32>
    tpu.vector_store %arg16[%c0_167, %c0_168, %c128_169], %104 {strides = array<i32>} : memref<4x4x512xf32, #tpu.memory_space<vmem>>, vector<4x4x32xf32>,
    %c1_170 = arith.constant 1 : index
    %c1_171 = arith.constant 1 : index
    %c0_172 = arith.constant 0 : index
    %106 = tpu.strided_load %arg15[%c1_170, %c1_171, %c0_172] {strides = array<i32: 2, 2, 1>} : memref<10x10x32xf32, #tpu.memory_space<vmem>>, vector<4x4x32xf32>
    %c0_173 = arith.constant 0 : index
    %c0_174 = arith.constant 0 : index
    %c160_175 = arith.constant 160 : index
    %107 = vector.load %arg16[%c0_173, %c0_174, %c160_175] : memref<4x4x512xf32, #tpu.memory_space<vmem>>, vector<4x4x32xf32>
    tpu.vector_store %arg16[%c0_173, %c0_174, %c160_175], %106 {strides = array<i32>} : memref<4x4x512xf32, #tpu.memory_space<vmem>>, vector<4x4x32xf32>,
    %c1_176 = arith.constant 1 : index
    %c2_177 = arith.constant 2 : index
    %c0_178 = arith.constant 0 : index
    %108 = tpu.strided_load %arg15[%c1_176, %c2_177, %c0_178] {strides = array<i32: 2, 2, 1>} : memref<10x10x32xf32, #tpu.memory_space<vmem>>, vector<4x4x32xf32>
    %c0_179 = arith.constant 0 : index
    %c0_180 = arith.constant 0 : index
    %c192_181 = arith.constant 192 : index
    %109 = vector.load %arg16[%c0_179, %c0_180, %c192_181] : memref<4x4x512xf32, #tpu.memory_space<vmem>>, vector<4x4x32xf32>
    tpu.vector_store %arg16[%c0_179, %c0_180, %c192_181], %108 {strides = array<i32>} : memref<4x4x512xf32, #tpu.memory_space<vmem>>, vector<4x4x32xf32>,
    %c1_182 = arith.constant 1 : index
    %c3_183 = arith.constant 3 : index
    %c0_184 = arith.constant 0 : index
    %110 = tpu.strided_load %arg15[%c1_182, %c3_183, %c0_184] {strides = array<i32: 2, 2, 1>} : memref<10x10x32xf32, #tpu.memory_space<vmem>>, vector<4x4x32xf32>
    %c0_185 = arith.constant 0 : index
    %c0_186 = arith.constant 0 : index
    %c224_187 = arith.constant 224 : index
    %111 = vector.load %arg16[%c0_185, %c0_186, %c224_187] : memref<4x4x512xf32, #tpu.memory_space<vmem>>, vector<4x4x32xf32>
    tpu.vector_store %arg16[%c0_185, %c0_186, %c224_187], %110 {strides = array<i32>} : memref<4x4x512xf32, #tpu.memory_space<vmem>>, vector<4x4x32xf32>,
    %c2_188 = arith.constant 2 : index
    %c0_189 = arith.constant 0 : index
    %c0_190 = arith.constant 0 : index
    %112 = tpu.strided_load %arg15[%c2_188, %c0_189, %c0_190] {strides = array<i32: 2, 2, 1>} : memref<10x10x32xf32, #tpu.memory_space<vmem>>, vector<4x4x32xf32>
    %c0_191 = arith.constant 0 : index
    %c0_192 = arith.constant 0 : index
    %c256 = arith.constant 256 : index
    %113 = vector.load %arg16[%c0_191, %c0_192, %c256] : memref<4x4x512xf32, #tpu.memory_space<vmem>>, vector<4x4x32xf32>
    tpu.vector_store %arg16[%c0_191, %c0_192, %c256], %112 {strides = array<i32>} : memref<4x4x512xf32, #tpu.memory_space<vmem>>, vector<4x4x32xf32>,
    %c2_193 = arith.constant 2 : index
    %c1_194 = arith.constant 1 : index
    %c0_195 = arith.constant 0 : index
    %114 = tpu.strided_load %arg15[%c2_193, %c1_194, %c0_195] {strides = array<i32: 2, 2, 1>} : memref<10x10x32xf32, #tpu.memory_space<vmem>>, vector<4x4x32xf32>
    %c0_196 = arith.constant 0 : index
    %c0_197 = arith.constant 0 : index
    %c288 = arith.constant 288 : index
    %115 = vector.load %arg16[%c0_196, %c0_197, %c288] : memref<4x4x512xf32, #tpu.memory_space<vmem>>, vector<4x4x32xf32>
    tpu.vector_store %arg16[%c0_196, %c0_197, %c288], %114 {strides = array<i32>} : memref<4x4x512xf32, #tpu.memory_space<vmem>>, vector<4x4x32xf32>,
    %c2_198 = arith.constant 2 : index
    %c2_199 = arith.constant 2 : index
    %c0_200 = arith.constant 0 : index
    %116 = tpu.strided_load %arg15[%c2_198, %c2_199, %c0_200] {strides = array<i32: 2, 2, 1>} : memref<10x10x32xf32, #tpu.memory_space<vmem>>, vector<4x4x32xf32>
    %c0_201 = arith.constant 0 : index
    %c0_202 = arith.constant 0 : index
    %c320 = arith.constant 320 : index
    %117 = vector.load %arg16[%c0_201, %c0_202, %c320] : memref<4x4x512xf32, #tpu.memory_space<vmem>>, vector<4x4x32xf32>
    tpu.vector_store %arg16[%c0_201, %c0_202, %c320], %116 {strides = array<i32>} : memref<4x4x512xf32, #tpu.memory_space<vmem>>, vector<4x4x32xf32>,
    %c2_203 = arith.constant 2 : index
    %c3_204 = arith.constant 3 : index
    %c0_205 = arith.constant 0 : index
    %118 = tpu.strided_load %arg15[%c2_203, %c3_204, %c0_205] {strides = array<i32: 2, 2, 1>} : memref<10x10x32xf32, #tpu.memory_space<vmem>>, vector<4x4x32xf32>
    %c0_206 = arith.constant 0 : index
    %c0_207 = arith.constant 0 : index
    %c352 = arith.constant 352 : index
    %119 = vector.load %arg16[%c0_206, %c0_207, %c352] : memref<4x4x512xf32, #tpu.memory_space<vmem>>, vector<4x4x32xf32>
    tpu.vector_store %arg16[%c0_206, %c0_207, %c352], %118 {strides = array<i32>} : memref<4x4x512xf32, #tpu.memory_space<vmem>>, vector<4x4x32xf32>,
    %c3_208 = arith.constant 3 : index
    %c0_209 = arith.constant 0 : index
    %c0_210 = arith.constant 0 : index
    %120 = tpu.strided_load %arg15[%c3_208, %c0_209, %c0_210] {strides = array<i32: 2, 2, 1>} : memref<10x10x32xf32, #tpu.memory_space<vmem>>, vector<4x4x32xf32>
    %c0_211 = arith.constant 0 : index
    %c0_212 = arith.constant 0 : index
    %c384 = arith.constant 384 : index
    %121 = vector.load %arg16[%c0_211, %c0_212, %c384] : memref<4x4x512xf32, #tpu.memory_space<vmem>>, vector<4x4x32xf32>
    tpu.vector_store %arg16[%c0_211, %c0_212, %c384], %120 {strides = array<i32>} : memref<4x4x512xf32, #tpu.memory_space<vmem>>, vector<4x4x32xf32>,
    %c3_213 = arith.constant 3 : index
    %c1_214 = arith.constant 1 : index
    %c0_215 = arith.constant 0 : index
    %122 = tpu.strided_load %arg15[%c3_213, %c1_214, %c0_215] {strides = array<i32: 2, 2, 1>} : memref<10x10x32xf32, #tpu.memory_space<vmem>>, vector<4x4x32xf32>
    %c0_216 = arith.constant 0 : index
    %c0_217 = arith.constant 0 : index
    %c416 = arith.constant 416 : index
    %123 = vector.load %arg16[%c0_216, %c0_217, %c416] : memref<4x4x512xf32, #tpu.memory_space<vmem>>, vector<4x4x32xf32>
    tpu.vector_store %arg16[%c0_216, %c0_217, %c416], %122 {strides = array<i32>} : memref<4x4x512xf32, #tpu.memory_space<vmem>>, vector<4x4x32xf32>,
    %c3_218 = arith.constant 3 : index
    %c2_219 = arith.constant 2 : index
    %c0_220 = arith.constant 0 : index
    %124 = tpu.strided_load %arg15[%c3_218, %c2_219, %c0_220] {strides = array<i32: 2, 2, 1>} : memref<10x10x32xf32, #tpu.memory_space<vmem>>, vector<4x4x32xf32>
    %c0_221 = arith.constant 0 : index
    %c0_222 = arith.constant 0 : index
    %c448 = arith.constant 448 : index
    %125 = vector.load %arg16[%c0_221, %c0_222, %c448] : memref<4x4x512xf32, #tpu.memory_space<vmem>>, vector<4x4x32xf32>
    tpu.vector_store %arg16[%c0_221, %c0_222, %c448], %124 {strides = array<i32>} : memref<4x4x512xf32, #tpu.memory_space<vmem>>, vector<4x4x32xf32>,
    %c3_223 = arith.constant 3 : index
    %c3_224 = arith.constant 3 : index
    %c0_225 = arith.constant 0 : index
    %126 = tpu.strided_load %arg15[%c3_223, %c3_224, %c0_225] {strides = array<i32: 2, 2, 1>} : memref<10x10x32xf32, #tpu.memory_space<vmem>>, vector<4x4x32xf32>
    %c0_226 = arith.constant 0 : index
    %c0_227 = arith.constant 0 : index
    %c480 = arith.constant 480 : index
    %127 = vector.load %arg16[%c0_226, %c0_227, %c480] : memref<4x4x512xf32, #tpu.memory_space<vmem>>, vector<4x4x32xf32>
    tpu.vector_store %arg16[%c0_226, %c0_227, %c480], %126 {strides = array<i32>} : memref<4x4x512xf32, #tpu.memory_space<vmem>>, vector<4x4x32xf32>,
    %c0_228 = arith.constant 0 : index
    %c0_229 = arith.constant 0 : index
    %c0_230 = arith.constant 0 : index
    %128 = vector.load %arg16[%c0_228, %c0_229, %c0_230] : memref<4x4x512xf32, #tpu.memory_space<vmem>>, vector<4x4x512xf32>
    %129 = vector.shape_cast %128 : vector<4x4x512xf32> to vector<16x512xf32>
    %c0_231 = arith.constant 0 : index
    %c0_232 = arith.constant 0 : index
    %130 = vector.load %arg6[%c0_231, %c0_232] : memref<512x64xf32, #tpu.memory_space<vmem>>, vector<512x64xf32>
    %cst_233 = arith.constant dense<0.000000e+00> : vector<16x64xf32>
    %131 = tpu.matmul %129, %130, %cst_233 {dimension_numbers = #tpu.dot_dimension_numbers<[1], [0], [0], [1], [0, 0, 1, 1], [], []>} : vector<16x512xf32>, vector<512x64xf32>, vector<16x64xf32> -> vector<16x64xf32>
    %c0_234 = arith.constant 0 : index
    %c0_235 = arith.constant 0 : index
    %132 = vector.load %arg7[%c0_234, %c0_235] : memref<1x64xf32, #tpu.memory_space<vmem>>, vector<1x64xf32>
    %133 = vector.broadcast %132 : vector<1x64xf32> to vector<16x64xf32>
    %134 = arith.addf %131, %133 : vector<16x64xf32>
    %cst_236 = arith.constant dense<0.000000e+00> : vector<64xf32>
    %135 = vector.multi_reduction <add>, %134, %cst_236 [0] : vector<16x64xf32> to vector<64xf32>
    %136 = vector.shape_cast %135 : vector<64xf32> to vector<1x64xf32>
    %cst_237 = arith.constant 6.250000e-02 : f32
    %137 = vector.broadcast %cst_237 : f32 to vector<1x64xf32>
    %138 = arith.mulf %136, %137 : vector<1x64xf32>
    %139 = arith.mulf %134, %134 : vector<16x64xf32>
    %cst_238 = arith.constant dense<0.000000e+00> : vector<64xf32>
    %140 = vector.multi_reduction <add>, %139, %cst_238 [0] : vector<16x64xf32> to vector<64xf32>
    %141 = vector.shape_cast %140 : vector<64xf32> to vector<1x64xf32>
    %cst_239 = arith.constant 6.250000e-02 : f32
    %142 = vector.broadcast %cst_239 : f32 to vector<1x64xf32>
    %143 = arith.mulf %141, %142 : vector<1x64xf32>
    %144 = arith.mulf %138, %138 : vector<1x64xf32>
    %145 = arith.subf %143, %144 : vector<1x64xf32>
    %cst_240 = arith.constant 0.000000e+00 : f32
    %146 = vector.broadcast %cst_240 : f32 to vector<1x64xf32>
    %147 = arith.maximumf %145, %146 : vector<1x64xf32>
    %148 = vector.broadcast %138 : vector<1x64xf32> to vector<16x64xf32>
    %149 = arith.subf %134, %148 : vector<16x64xf32>
    %cst_241 = arith.constant 9.99999974E-6 : f32
    %150 = vector.broadcast %cst_241 : f32 to vector<1x64xf32>
    %151 = arith.addf %147, %150 : vector<1x64xf32>
    %152 = math.rsqrt %151 : vector<1x64xf32>
    %153 = vector.broadcast %152 : vector<1x64xf32> to vector<16x64xf32>
    %154 = arith.mulf %149, %153 : vector<16x64xf32>
    %cst_242 = arith.constant 0.000000e+00 : f32
    %155 = vector.broadcast %cst_242 : f32 to vector<16x64xf32>
    %156 = arith.cmpf oge, %154, %155 : vector<16x64xf32>
    %cst_243 = arith.constant 2.000000e-01 : f32
    %157 = vector.broadcast %cst_243 : f32 to vector<16x64xf32>
    %158 = arith.mulf %157, %154 : vector<16x64xf32>
    %159 = arith.select %156, %154, %158 : vector<16x64xi1>, vector<16x64xf32>
    %160 = vector.shape_cast %159 : vector<16x64xf32> to vector<4x4x64xf32>
    %c1_244 = arith.constant 1 : index
    %c1_245 = arith.constant 1 : index
    %c0_246 = arith.constant 0 : index
    %161 = vector.load %arg17[%c1_244, %c1_245, %c0_246] : memref<6x6x64xf32, #tpu.memory_space<vmem>>, vector<4x4x64xf32>
    tpu.vector_store %arg17[%c1_244, %c1_245, %c0_246], %160 {strides = array<i32>} : memref<6x6x64xf32, #tpu.memory_space<vmem>>, vector<4x4x64xf32>,
    %162 = vector.extract_strided_slice %160 {offsets = [0, 1, 0], sizes = [4, 1, 64], strides = [1, 1, 1]} : vector<4x4x64xf32> to vector<4x1x64xf32>
    %c1_247 = arith.constant 1 : index
    %c0_248 = arith.constant 0 : index
    %c0_249 = arith.constant 0 : index
    %163 = vector.load %arg17[%c1_247, %c0_248, %c0_249] : memref<6x6x64xf32, #tpu.memory_space<vmem>>, vector<4x1x64xf32>
    tpu.vector_store %arg17[%c1_247, %c0_248, %c0_249], %162 {strides = array<i32>} : memref<6x6x64xf32, #tpu.memory_space<vmem>>, vector<4x1x64xf32>,
    %164 = vector.extract_strided_slice %160 {offsets = [0, 2, 0], sizes = [4, 1, 64], strides = [1, 1, 1]} : vector<4x4x64xf32> to vector<4x1x64xf32>
    %c1_250 = arith.constant 1 : index
    %c5 = arith.constant 5 : index
    %c0_251 = arith.constant 0 : index
    %165 = vector.load %arg17[%c1_250, %c5, %c0_251] : memref<6x6x64xf32, #tpu.memory_space<vmem>>, vector<4x1x64xf32>
    tpu.vector_store %arg17[%c1_250, %c5, %c0_251], %164 {strides = array<i32>} : memref<6x6x64xf32, #tpu.memory_space<vmem>>, vector<4x1x64xf32>,
    %c2_252 = arith.constant 2 : index
    %c0_253 = arith.constant 0 : index
    %c0_254 = arith.constant 0 : index
    %166 = vector.load %arg17[%c2_252, %c0_253, %c0_254] : memref<6x6x64xf32, #tpu.memory_space<vmem>>, vector<1x6x64xf32>
    %c0_255 = arith.constant 0 : index
    %c0_256 = arith.constant 0 : index
    %c0_257 = arith.constant 0 : index
    %167 = vector.load %arg17[%c0_255, %c0_256, %c0_257] : memref<6x6x64xf32, #tpu.memory_space<vmem>>, vector<1x6x64xf32>
    tpu.vector_store %arg17[%c0_255, %c0_256, %c0_257], %166 {strides = array<i32>} : memref<6x6x64xf32, #tpu.memory_space<vmem>>, vector<1x6x64xf32>,
    %c3_258 = arith.constant 3 : index
    %c0_259 = arith.constant 0 : index
    %c0_260 = arith.constant 0 : index
    %168 = vector.load %arg17[%c3_258, %c0_259, %c0_260] : memref<6x6x64xf32, #tpu.memory_space<vmem>>, vector<1x6x64xf32>
    %c5_261 = arith.constant 5 : index
    %c0_262 = arith.constant 0 : index
    %c0_263 = arith.constant 0 : index
    %169 = vector.load %arg17[%c5_261, %c0_262, %c0_263] : memref<6x6x64xf32, #tpu.memory_space<vmem>>, vector<1x6x64xf32>
    tpu.vector_store %arg17[%c5_261, %c0_262, %c0_263], %168 {strides = array<i32>} : memref<6x6x64xf32, #tpu.memory_space<vmem>>, vector<1x6x64xf32>,
    %c0_264 = arith.constant 0 : index
    %c0_265 = arith.constant 0 : index
    %c0_266 = arith.constant 0 : index
    %170 = vector.load %arg17[%c0_264, %c0_265, %c0_266] : memref<6x6x64xf32, #tpu.memory_space<vmem>>, vector<3x3x64xf32>
    %c0_267 = arith.constant 0 : index
    %c0_268 = arith.constant 0 : index
    %c0_269 = arith.constant 0 : index
    %171 = vector.load %arg18[%c0_267, %c0_268, %c0_269] : memref<3x3x1024xf32, #tpu.memory_space<vmem>>, vector<3x3x64xf32>
    tpu.vector_store %arg18[%c0_267, %c0_268, %c0_269], %170 {strides = array<i32>} : memref<3x3x1024xf32, #tpu.memory_space<vmem>>, vector<3x3x64xf32>,
    %c0_270 = arith.constant 0 : index
    %c1_271 = arith.constant 1 : index
    %c0_272 = arith.constant 0 : index
    %172 = vector.load %arg17[%c0_270, %c1_271, %c0_272] : memref<6x6x64xf32, #tpu.memory_space<vmem>>, vector<3x3x64xf32>
    %c0_273 = arith.constant 0 : index
    %c0_274 = arith.constant 0 : index
    %c64_275 = arith.constant 64 : index
    %173 = vector.load %arg18[%c0_273, %c0_274, %c64_275] : memref<3x3x1024xf32, #tpu.memory_space<vmem>>, vector<3x3x64xf32>
    tpu.vector_store %arg18[%c0_273, %c0_274, %c64_275], %172 {strides = array<i32>} : memref<3x3x1024xf32, #tpu.memory_space<vmem>>, vector<3x3x64xf32>,
    %c0_276 = arith.constant 0 : index
    %c2_277 = arith.constant 2 : index
    %c0_278 = arith.constant 0 : index
    %174 = vector.load %arg17[%c0_276, %c2_277, %c0_278] : memref<6x6x64xf32, #tpu.memory_space<vmem>>, vector<3x3x64xf32>
    %c0_279 = arith.constant 0 : index
    %c0_280 = arith.constant 0 : index
    %c128_281 = arith.constant 128 : index
    %175 = vector.load %arg18[%c0_279, %c0_280, %c128_281] : memref<3x3x1024xf32, #tpu.memory_space<vmem>>, vector<3x3x64xf32>
    tpu.vector_store %arg18[%c0_279, %c0_280, %c128_281], %174 {strides = array<i32>} : memref<3x3x1024xf32, #tpu.memory_space<vmem>>, vector<3x3x64xf32>,
    %c0_282 = arith.constant 0 : index
    %c3_283 = arith.constant 3 : index
    %c0_284 = arith.constant 0 : index
    %176 = vector.load %arg17[%c0_282, %c3_283, %c0_284] : memref<6x6x64xf32, #tpu.memory_space<vmem>>, vector<3x3x64xf32>
    %c0_285 = arith.constant 0 : index
    %c0_286 = arith.constant 0 : index
    %c192_287 = arith.constant 192 : index
    %177 = vector.load %arg18[%c0_285, %c0_286, %c192_287] : memref<3x3x1024xf32, #tpu.memory_space<vmem>>, vector<3x3x64xf32>
    tpu.vector_store %arg18[%c0_285, %c0_286, %c192_287], %176 {strides = array<i32>} : memref<3x3x1024xf32, #tpu.memory_space<vmem>>, vector<3x3x64xf32>,
    %c1_288 = arith.constant 1 : index
    %c0_289 = arith.constant 0 : index
    %c0_290 = arith.constant 0 : index
    %178 = vector.load %arg17[%c1_288, %c0_289, %c0_290] : memref<6x6x64xf32, #tpu.memory_space<vmem>>, vector<3x3x64xf32>
    %c0_291 = arith.constant 0 : index
    %c0_292 = arith.constant 0 : index
    %c256_293 = arith.constant 256 : index
    %179 = vector.load %arg18[%c0_291, %c0_292, %c256_293] : memref<3x3x1024xf32, #tpu.memory_space<vmem>>, vector<3x3x64xf32>
    tpu.vector_store %arg18[%c0_291, %c0_292, %c256_293], %178 {strides = array<i32>} : memref<3x3x1024xf32, #tpu.memory_space<vmem>>, vector<3x3x64xf32>,
    %c1_294 = arith.constant 1 : index
    %c1_295 = arith.constant 1 : index
    %c0_296 = arith.constant 0 : index
    %180 = vector.load %arg17[%c1_294, %c1_295, %c0_296] : memref<6x6x64xf32, #tpu.memory_space<vmem>>, vector<3x3x64xf32>
    %c0_297 = arith.constant 0 : index
    %c0_298 = arith.constant 0 : index
    %c320_299 = arith.constant 320 : index
    %181 = vector.load %arg18[%c0_297, %c0_298, %c320_299] : memref<3x3x1024xf32, #tpu.memory_space<vmem>>, vector<3x3x64xf32>
    tpu.vector_store %arg18[%c0_297, %c0_298, %c320_299], %180 {strides = array<i32>} : memref<3x3x1024xf32, #tpu.memory_space<vmem>>, vector<3x3x64xf32>,
    %c1_300 = arith.constant 1 : index
    %c2_301 = arith.constant 2 : index
    %c0_302 = arith.constant 0 : index
    %182 = vector.load %arg17[%c1_300, %c2_301, %c0_302] : memref<6x6x64xf32, #tpu.memory_space<vmem>>, vector<3x3x64xf32>
    %c0_303 = arith.constant 0 : index
    %c0_304 = arith.constant 0 : index
    %c384_305 = arith.constant 384 : index
    %183 = vector.load %arg18[%c0_303, %c0_304, %c384_305] : memref<3x3x1024xf32, #tpu.memory_space<vmem>>, vector<3x3x64xf32>
    tpu.vector_store %arg18[%c0_303, %c0_304, %c384_305], %182 {strides = array<i32>} : memref<3x3x1024xf32, #tpu.memory_space<vmem>>, vector<3x3x64xf32>,
    %c1_306 = arith.constant 1 : index
    %c3_307 = arith.constant 3 : index
    %c0_308 = arith.constant 0 : index
    %184 = vector.load %arg17[%c1_306, %c3_307, %c0_308] : memref<6x6x64xf32, #tpu.memory_space<vmem>>, vector<3x3x64xf32>
    %c0_309 = arith.constant 0 : index
    %c0_310 = arith.constant 0 : index
    %c448_311 = arith.constant 448 : index
    %185 = vector.load %arg18[%c0_309, %c0_310, %c448_311] : memref<3x3x1024xf32, #tpu.memory_space<vmem>>, vector<3x3x64xf32>
    tpu.vector_store %arg18[%c0_309, %c0_310, %c448_311], %184 {strides = array<i32>} : memref<3x3x1024xf32, #tpu.memory_space<vmem>>, vector<3x3x64xf32>,
    %c2_312 = arith.constant 2 : index
    %c0_313 = arith.constant 0 : index
    %c0_314 = arith.constant 0 : index
    %186 = vector.load %arg17[%c2_312, %c0_313, %c0_314] : memref<6x6x64xf32, #tpu.memory_space<vmem>>, vector<3x3x64xf32>
    %c0_315 = arith.constant 0 : index
    %c0_316 = arith.constant 0 : index
    %c512 = arith.constant 512 : index
    %187 = vector.load %arg18[%c0_315, %c0_316, %c512] : memref<3x3x1024xf32, #tpu.memory_space<vmem>>, vector<3x3x64xf32>
    tpu.vector_store %arg18[%c0_315, %c0_316, %c512], %186 {strides = array<i32>} : memref<3x3x1024xf32, #tpu.memory_space<vmem>>, vector<3x3x64xf32>,
    %c2_317 = arith.constant 2 : index
    %c1_318 = arith.constant 1 : index
    %c0_319 = arith.constant 0 : index
    %188 = vector.load %arg17[%c2_317, %c1_318, %c0_319] : memref<6x6x64xf32, #tpu.memory_space<vmem>>, vector<3x3x64xf32>
    %c0_320 = arith.constant 0 : index
    %c0_321 = arith.constant 0 : index
    %c576 = arith.constant 576 : index
    %189 = vector.load %arg18[%c0_320, %c0_321, %c576] : memref<3x3x1024xf32, #tpu.memory_space<vmem>>, vector<3x3x64xf32>
    tpu.vector_store %arg18[%c0_320, %c0_321, %c576], %188 {strides = array<i32>} : memref<3x3x1024xf32, #tpu.memory_space<vmem>>, vector<3x3x64xf32>,
    %c2_322 = arith.constant 2 : index
    %c2_323 = arith.constant 2 : index
    %c0_324 = arith.constant 0 : index
    %190 = vector.load %arg17[%c2_322, %c2_323, %c0_324] : memref<6x6x64xf32, #tpu.memory_space<vmem>>, vector<3x3x64xf32>
    %c0_325 = arith.constant 0 : index
    %c0_326 = arith.constant 0 : index
    %c640 = arith.constant 640 : index
    %191 = vector.load %arg18[%c0_325, %c0_326, %c640] : memref<3x3x1024xf32, #tpu.memory_space<vmem>>, vector<3x3x64xf32>
    tpu.vector_store %arg18[%c0_325, %c0_326, %c640], %190 {strides = array<i32>} : memref<3x3x1024xf32, #tpu.memory_space<vmem>>, vector<3x3x64xf32>,
    %c2_327 = arith.constant 2 : index
    %c3_328 = arith.constant 3 : index
    %c0_329 = arith.constant 0 : index
    %192 = vector.load %arg17[%c2_327, %c3_328, %c0_329] : memref<6x6x64xf32, #tpu.memory_space<vmem>>, vector<3x3x64xf32>
    %c0_330 = arith.constant 0 : index
    %c0_331 = arith.constant 0 : index
    %c704 = arith.constant 704 : index
    %193 = vector.load %arg18[%c0_330, %c0_331, %c704] : memref<3x3x1024xf32, #tpu.memory_space<vmem>>, vector<3x3x64xf32>
    tpu.vector_store %arg18[%c0_330, %c0_331, %c704], %192 {strides = array<i32>} : memref<3x3x1024xf32, #tpu.memory_space<vmem>>, vector<3x3x64xf32>,
    %c3_332 = arith.constant 3 : index
    %c0_333 = arith.constant 0 : index
    %c0_334 = arith.constant 0 : index
    %194 = vector.load %arg17[%c3_332, %c0_333, %c0_334] : memref<6x6x64xf32, #tpu.memory_space<vmem>>, vector<3x3x64xf32>
    %c0_335 = arith.constant 0 : index
    %c0_336 = arith.constant 0 : index
    %c768 = arith.constant 768 : index
    %195 = vector.load %arg18[%c0_335, %c0_336, %c768] : memref<3x3x1024xf32, #tpu.memory_space<vmem>>, vector<3x3x64xf32>
    tpu.vector_store %arg18[%c0_335, %c0_336, %c768], %194 {strides = array<i32>} : memref<3x3x1024xf32, #tpu.memory_space<vmem>>, vector<3x3x64xf32>,
    %c3_337 = arith.constant 3 : index
    %c1_338 = arith.constant 1 : index
    %c0_339 = arith.constant 0 : index
    %196 = vector.load %arg17[%c3_337, %c1_338, %c0_339] : memref<6x6x64xf32, #tpu.memory_space<vmem>>, vector<3x3x64xf32>
    %c0_340 = arith.constant 0 : index
    %c0_341 = arith.constant 0 : index
    %c832 = arith.constant 832 : index
    %197 = vector.load %arg18[%c0_340, %c0_341, %c832] : memref<3x3x1024xf32, #tpu.memory_space<vmem>>, vector<3x3x64xf32>
    tpu.vector_store %arg18[%c0_340, %c0_341, %c832], %196 {strides = array<i32>} : memref<3x3x1024xf32, #tpu.memory_space<vmem>>, vector<3x3x64xf32>,
    %c3_342 = arith.constant 3 : index
    %c2_343 = arith.constant 2 : index
    %c0_344 = arith.constant 0 : index
    %198 = vector.load %arg17[%c3_342, %c2_343, %c0_344] : memref<6x6x64xf32, #tpu.memory_space<vmem>>, vector<3x3x64xf32>
    %c0_345 = arith.constant 0 : index
    %c0_346 = arith.constant 0 : index
    %c896 = arith.constant 896 : index
    %199 = vector.load %arg18[%c0_345, %c0_346, %c896] : memref<3x3x1024xf32, #tpu.memory_space<vmem>>, vector<3x3x64xf32>
    tpu.vector_store %arg18[%c0_345, %c0_346, %c896], %198 {strides = array<i32>} : memref<3x3x1024xf32, #tpu.memory_space<vmem>>, vector<3x3x64xf32>,
    %c3_347 = arith.constant 3 : index
    %c3_348 = arith.constant 3 : index
    %c0_349 = arith.constant 0 : index
    %200 = vector.load %arg17[%c3_347, %c3_348, %c0_349] : memref<6x6x64xf32, #tpu.memory_space<vmem>>, vector<3x3x64xf32>
    %c0_350 = arith.constant 0 : index
    %c0_351 = arith.constant 0 : index
    %c960 = arith.constant 960 : index
    %201 = vector.load %arg18[%c0_350, %c0_351, %c960] : memref<3x3x1024xf32, #tpu.memory_space<vmem>>, vector<3x3x64xf32>
    tpu.vector_store %arg18[%c0_350, %c0_351, %c960], %200 {strides = array<i32>} : memref<3x3x1024xf32, #tpu.memory_space<vmem>>, vector<3x3x64xf32>,
    %c0_352 = arith.constant 0 : index
    %c0_353 = arith.constant 0 : index
    %c0_354 = arith.constant 0 : index
    %202 = vector.load %arg18[%c0_352, %c0_353, %c0_354] : memref<3x3x1024xf32, #tpu.memory_space<vmem>>, vector<3x3x1024xf32>
    %203 = vector.shape_cast %202 : vector<3x3x1024xf32> to vector<9x1024xf32>
    %c0_355 = arith.constant 0 : index
    %c0_356 = arith.constant 0 : index
    %204 = vector.load %arg8[%c0_355, %c0_356] : memref<1024x128xf32, #tpu.memory_space<vmem>>, vector<1024x128xf32>
    %cst_357 = arith.constant dense<0.000000e+00> : vector<9x128xf32>
    %205 = tpu.matmul %203, %204, %cst_357 {dimension_numbers = #tpu.dot_dimension_numbers<[1], [0], [0], [1], [0, 0, 1, 1], [], []>} : vector<9x1024xf32>, vector<1024x128xf32>, vector<9x128xf32> -> vector<9x128xf32>
    %c0_358 = arith.constant 0 : index
    %c0_359 = arith.constant 0 : index
    %206 = vector.load %arg9[%c0_358, %c0_359] : memref<1x128xf32, #tpu.memory_space<vmem>>, vector<1x128xf32>
    %207 = vector.broadcast %206 : vector<1x128xf32> to vector<9x128xf32>
    %208 = arith.addf %205, %207 : vector<9x128xf32>
    %cst_360 = arith.constant dense<0.000000e+00> : vector<128xf32>
    %209 = vector.multi_reduction <add>, %208, %cst_360 [0] : vector<9x128xf32> to vector<128xf32>
    %210 = vector.shape_cast %209 : vector<128xf32> to vector<1x128xf32>
    %cst_361 = arith.constant 0.111111112 : f32
    %211 = vector.broadcast %cst_361 : f32 to vector<1x128xf32>
    %212 = arith.mulf %210, %211 : vector<1x128xf32>
    %213 = arith.mulf %208, %208 : vector<9x128xf32>
    %cst_362 = arith.constant dense<0.000000e+00> : vector<128xf32>
    %214 = vector.multi_reduction <add>, %213, %cst_362 [0] : vector<9x128xf32> to vector<128xf32>
    %215 = vector.shape_cast %214 : vector<128xf32> to vector<1x128xf32>
    %cst_363 = arith.constant 0.111111112 : f32
    %216 = vector.broadcast %cst_363 : f32 to vector<1x128xf32>
    %217 = arith.mulf %215, %216 : vector<1x128xf32>
    %218 = arith.mulf %212, %212 : vector<1x128xf32>
    %219 = arith.subf %217, %218 : vector<1x128xf32>
    %cst_364 = arith.constant 0.000000e+00 : f32
    %220 = vector.broadcast %cst_364 : f32 to vector<1x128xf32>
    %221 = arith.maximumf %219, %220 : vector<1x128xf32>
    %222 = vector.broadcast %212 : vector<1x128xf32> to vector<9x128xf32>
    %223 = arith.subf %208, %222 : vector<9x128xf32>
    %cst_365 = arith.constant 9.99999974E-6 : f32
    %224 = vector.broadcast %cst_365 : f32 to vector<1x128xf32>
    %225 = arith.addf %221, %224 : vector<1x128xf32>
    %226 = math.rsqrt %225 : vector<1x128xf32>
    %227 = vector.broadcast %226 : vector<1x128xf32> to vector<9x128xf32>
    %228 = arith.mulf %223, %227 : vector<9x128xf32>
    %cst_366 = arith.constant 0.000000e+00 : f32
    %229 = vector.broadcast %cst_366 : f32 to vector<9x128xf32>
    %230 = arith.cmpf oge, %228, %229 : vector<9x128xf32>
    %cst_367 = arith.constant 2.000000e-01 : f32
    %231 = vector.broadcast %cst_367 : f32 to vector<9x128xf32>
    %232 = arith.mulf %231, %228 : vector<9x128xf32>
    %233 = arith.select %230, %228, %232 : vector<9x128xi1>, vector<9x128xf32>
    %234 = vector.shape_cast %233 : vector<9x128xf32> to vector<3x3x128xf32>
    %c1_368 = arith.constant 1 : index
    %c1_369 = arith.constant 1 : index
    %c0_370 = arith.constant 0 : index
    %235 = vector.load %arg19[%c1_368, %c1_369, %c0_370] : memref<5x5x128xf32, #tpu.memory_space<vmem>>, vector<3x3x128xf32>
    tpu.vector_store %arg19[%c1_368, %c1_369, %c0_370], %234 {strides = array<i32>} : memref<5x5x128xf32, #tpu.memory_space<vmem>>, vector<3x3x128xf32>,
    %236 = vector.extract_strided_slice %234 {offsets = [0, 1, 0], sizes = [3, 1, 128], strides = [1, 1, 1]} : vector<3x3x128xf32> to vector<3x1x128xf32>
    %c1_371 = arith.constant 1 : index
    %c0_372 = arith.constant 0 : index
    %c0_373 = arith.constant 0 : index
    %237 = vector.load %arg19[%c1_371, %c0_372, %c0_373] : memref<5x5x128xf32, #tpu.memory_space<vmem>>, vector<3x1x128xf32>
    tpu.vector_store %arg19[%c1_371, %c0_372, %c0_373], %236 {strides = array<i32>} : memref<5x5x128xf32, #tpu.memory_space<vmem>>, vector<3x1x128xf32>,
    %238 = vector.extract_strided_slice %234 {offsets = [0, 1, 0], sizes = [3, 1, 128], strides = [1, 1, 1]} : vector<3x3x128xf32> to vector<3x1x128xf32>
    %c1_374 = arith.constant 1 : index
    %c4 = arith.constant 4 : index
    %c0_375 = arith.constant 0 : index
    %239 = vector.load %arg19[%c1_374, %c4, %c0_375] : memref<5x5x128xf32, #tpu.memory_space<vmem>>, vector<3x1x128xf32>
    tpu.vector_store %arg19[%c1_374, %c4, %c0_375], %238 {strides = array<i32>} : memref<5x5x128xf32, #tpu.memory_space<vmem>>, vector<3x1x128xf32>,
    %c2_376 = arith.constant 2 : index
    %c0_377 = arith.constant 0 : index
    %c0_378 = arith.constant 0 : index
    %240 = vector.load %arg19[%c2_376, %c0_377, %c0_378] : memref<5x5x128xf32, #tpu.memory_space<vmem>>, vector<1x5x128xf32>
    %c0_379 = arith.constant 0 : index
    %c0_380 = arith.constant 0 : index
    %c0_381 = arith.constant 0 : index
    %241 = vector.load %arg19[%c0_379, %c0_380, %c0_381] : memref<5x5x128xf32, #tpu.memory_space<vmem>>, vector<1x5x128xf32>
    tpu.vector_store %arg19[%c0_379, %c0_380, %c0_381], %240 {strides = array<i32>} : memref<5x5x128xf32, #tpu.memory_space<vmem>>, vector<1x5x128xf32>,
    %c2_382 = arith.constant 2 : index
    %c0_383 = arith.constant 0 : index
    %c0_384 = arith.constant 0 : index
    %242 = vector.load %arg19[%c2_382, %c0_383, %c0_384] : memref<5x5x128xf32, #tpu.memory_space<vmem>>, vector<1x5x128xf32>
    %c4_385 = arith.constant 4 : index
    %c0_386 = arith.constant 0 : index
    %c0_387 = arith.constant 0 : index
    %243 = vector.load %arg19[%c4_385, %c0_386, %c0_387] : memref<5x5x128xf32, #tpu.memory_space<vmem>>, vector<1x5x128xf32>
    tpu.vector_store %arg19[%c4_385, %c0_386, %c0_387], %242 {strides = array<i32>} : memref<5x5x128xf32, #tpu.memory_space<vmem>>, vector<1x5x128xf32>,
    %c0_388 = arith.constant 0 : index
    %c0_389 = arith.constant 0 : index
    %c0_390 = arith.constant 0 : index
    %244 = vector.load %arg19[%c0_388, %c0_389, %c0_390] : memref<5x5x128xf32, #tpu.memory_space<vmem>>, vector<2x2x128xf32>
    %c0_391 = arith.constant 0 : index
    %c0_392 = arith.constant 0 : index
    %c0_393 = arith.constant 0 : index
    %245 = vector.load %arg20[%c0_391, %c0_392, %c0_393] : memref<2x2x2048xf32, #tpu.memory_space<vmem>>, vector<2x2x128xf32>
    tpu.vector_store %arg20[%c0_391, %c0_392, %c0_393], %244 {strides = array<i32>} : memref<2x2x2048xf32, #tpu.memory_space<vmem>>, vector<2x2x128xf32>,
    %c0_394 = arith.constant 0 : index
    %c1_395 = arith.constant 1 : index
    %c0_396 = arith.constant 0 : index
    %246 = vector.load %arg19[%c0_394, %c1_395, %c0_396] : memref<5x5x128xf32, #tpu.memory_space<vmem>>, vector<2x2x128xf32>
    %c0_397 = arith.constant 0 : index
    %c0_398 = arith.constant 0 : index
    %c128_399 = arith.constant 128 : index
    %247 = vector.load %arg20[%c0_397, %c0_398, %c128_399] : memref<2x2x2048xf32, #tpu.memory_space<vmem>>, vector<2x2x128xf32>
    tpu.vector_store %arg20[%c0_397, %c0_398, %c128_399], %246 {strides = array<i32>} : memref<2x2x2048xf32, #tpu.memory_space<vmem>>, vector<2x2x128xf32>,
    %c0_400 = arith.constant 0 : index
    %c2_401 = arith.constant 2 : index
    %c0_402 = arith.constant 0 : index
    %248 = vector.load %arg19[%c0_400, %c2_401, %c0_402] : memref<5x5x128xf32, #tpu.memory_space<vmem>>, vector<2x2x128xf32>
    %c0_403 = arith.constant 0 : index
    %c0_404 = arith.constant 0 : index
    %c256_405 = arith.constant 256 : index
    %249 = vector.load %arg20[%c0_403, %c0_404, %c256_405] : memref<2x2x2048xf32, #tpu.memory_space<vmem>>, vector<2x2x128xf32>
    tpu.vector_store %arg20[%c0_403, %c0_404, %c256_405], %248 {strides = array<i32>} : memref<2x2x2048xf32, #tpu.memory_space<vmem>>, vector<2x2x128xf32>,
    %c0_406 = arith.constant 0 : index
    %c3_407 = arith.constant 3 : index
    %c0_408 = arith.constant 0 : index
    %250 = vector.load %arg19[%c0_406, %c3_407, %c0_408] : memref<5x5x128xf32, #tpu.memory_space<vmem>>, vector<2x2x128xf32>
    %c0_409 = arith.constant 0 : index
    %c0_410 = arith.constant 0 : index
    %c384_411 = arith.constant 384 : index
    %251 = vector.load %arg20[%c0_409, %c0_410, %c384_411] : memref<2x2x2048xf32, #tpu.memory_space<vmem>>, vector<2x2x128xf32>
    tpu.vector_store %arg20[%c0_409, %c0_410, %c384_411], %250 {strides = array<i32>} : memref<2x2x2048xf32, #tpu.memory_space<vmem>>, vector<2x2x128xf32>,
    %c1_412 = arith.constant 1 : index
    %c0_413 = arith.constant 0 : index
    %c0_414 = arith.constant 0 : index
    %252 = vector.load %arg19[%c1_412, %c0_413, %c0_414] : memref<5x5x128xf32, #tpu.memory_space<vmem>>, vector<2x2x128xf32>
    %c0_415 = arith.constant 0 : index
    %c0_416 = arith.constant 0 : index
    %c512_417 = arith.constant 512 : index
    %253 = vector.load %arg20[%c0_415, %c0_416, %c512_417] : memref<2x2x2048xf32, #tpu.memory_space<vmem>>, vector<2x2x128xf32>
    tpu.vector_store %arg20[%c0_415, %c0_416, %c512_417], %252 {strides = array<i32>} : memref<2x2x2048xf32, #tpu.memory_space<vmem>>, vector<2x2x128xf32>,
    %c1_418 = arith.constant 1 : index
    %c1_419 = arith.constant 1 : index
    %c0_420 = arith.constant 0 : index
    %254 = vector.load %arg19[%c1_418, %c1_419, %c0_420] : memref<5x5x128xf32, #tpu.memory_space<vmem>>, vector<2x2x128xf32>
    %c0_421 = arith.constant 0 : index
    %c0_422 = arith.constant 0 : index
    %c640_423 = arith.constant 640 : index
    %255 = vector.load %arg20[%c0_421, %c0_422, %c640_423] : memref<2x2x2048xf32, #tpu.memory_space<vmem>>, vector<2x2x128xf32>
    tpu.vector_store %arg20[%c0_421, %c0_422, %c640_423], %254 {strides = array<i32>} : memref<2x2x2048xf32, #tpu.memory_space<vmem>>, vector<2x2x128xf32>,
    %c1_424 = arith.constant 1 : index
    %c2_425 = arith.constant 2 : index
    %c0_426 = arith.constant 0 : index
    %256 = vector.load %arg19[%c1_424, %c2_425, %c0_426] : memref<5x5x128xf32, #tpu.memory_space<vmem>>, vector<2x2x128xf32>
    %c0_427 = arith.constant 0 : index
    %c0_428 = arith.constant 0 : index
    %c768_429 = arith.constant 768 : index
    %257 = vector.load %arg20[%c0_427, %c0_428, %c768_429] : memref<2x2x2048xf32, #tpu.memory_space<vmem>>, vector<2x2x128xf32>
    tpu.vector_store %arg20[%c0_427, %c0_428, %c768_429], %256 {strides = array<i32>} : memref<2x2x2048xf32, #tpu.memory_space<vmem>>, vector<2x2x128xf32>,
    %c1_430 = arith.constant 1 : index
    %c3_431 = arith.constant 3 : index
    %c0_432 = arith.constant 0 : index
    %258 = vector.load %arg19[%c1_430, %c3_431, %c0_432] : memref<5x5x128xf32, #tpu.memory_space<vmem>>, vector<2x2x128xf32>
    %c0_433 = arith.constant 0 : index
    %c0_434 = arith.constant 0 : index
    %c896_435 = arith.constant 896 : index
    %259 = vector.load %arg20[%c0_433, %c0_434, %c896_435] : memref<2x2x2048xf32, #tpu.memory_space<vmem>>, vector<2x2x128xf32>
    tpu.vector_store %arg20[%c0_433, %c0_434, %c896_435], %258 {strides = array<i32>} : memref<2x2x2048xf32, #tpu.memory_space<vmem>>, vector<2x2x128xf32>,
    %c2_436 = arith.constant 2 : index
    %c0_437 = arith.constant 0 : index
    %c0_438 = arith.constant 0 : index
    %260 = vector.load %arg19[%c2_436, %c0_437, %c0_438] : memref<5x5x128xf32, #tpu.memory_space<vmem>>, vector<2x2x128xf32>
    %c0_439 = arith.constant 0 : index
    %c0_440 = arith.constant 0 : index
    %c1024 = arith.constant 1024 : index
    %261 = vector.load %arg20[%c0_439, %c0_440, %c1024] : memref<2x2x2048xf32, #tpu.memory_space<vmem>>, vector<2x2x128xf32>
    tpu.vector_store %arg20[%c0_439, %c0_440, %c1024], %260 {strides = array<i32>} : memref<2x2x2048xf32, #tpu.memory_space<vmem>>, vector<2x2x128xf32>,
    %c2_441 = arith.constant 2 : index
    %c1_442 = arith.constant 1 : index
    %c0_443 = arith.constant 0 : index
    %262 = vector.load %arg19[%c2_441, %c1_442, %c0_443] : memref<5x5x128xf32, #tpu.memory_space<vmem>>, vector<2x2x128xf32>
    %c0_444 = arith.constant 0 : index
    %c0_445 = arith.constant 0 : index
    %c1152 = arith.constant 1152 : index
    %263 = vector.load %arg20[%c0_444, %c0_445, %c1152] : memref<2x2x2048xf32, #tpu.memory_space<vmem>>, vector<2x2x128xf32>
    tpu.vector_store %arg20[%c0_444, %c0_445, %c1152], %262 {strides = array<i32>} : memref<2x2x2048xf32, #tpu.memory_space<vmem>>, vector<2x2x128xf32>,
    %c2_446 = arith.constant 2 : index
    %c2_447 = arith.constant 2 : index
    %c0_448 = arith.constant 0 : index
    %264 = vector.load %arg19[%c2_446, %c2_447, %c0_448] : memref<5x5x128xf32, #tpu.memory_space<vmem>>, vector<2x2x128xf32>
    %c0_449 = arith.constant 0 : index
    %c0_450 = arith.constant 0 : index
    %c1280 = arith.constant 1280 : index
    %265 = vector.load %arg20[%c0_449, %c0_450, %c1280] : memref<2x2x2048xf32, #tpu.memory_space<vmem>>, vector<2x2x128xf32>
    tpu.vector_store %arg20[%c0_449, %c0_450, %c1280], %264 {strides = array<i32>} : memref<2x2x2048xf32, #tpu.memory_space<vmem>>, vector<2x2x128xf32>,
    %c2_451 = arith.constant 2 : index
    %c3_452 = arith.constant 3 : index
    %c0_453 = arith.constant 0 : index
    %266 = vector.load %arg19[%c2_451, %c3_452, %c0_453] : memref<5x5x128xf32, #tpu.memory_space<vmem>>, vector<2x2x128xf32>
    %c0_454 = arith.constant 0 : index
    %c0_455 = arith.constant 0 : index
    %c1408 = arith.constant 1408 : index
    %267 = vector.load %arg20[%c0_454, %c0_455, %c1408] : memref<2x2x2048xf32, #tpu.memory_space<vmem>>, vector<2x2x128xf32>
    tpu.vector_store %arg20[%c0_454, %c0_455, %c1408], %266 {strides = array<i32>} : memref<2x2x2048xf32, #tpu.memory_space<vmem>>, vector<2x2x128xf32>,
    %c3_456 = arith.constant 3 : index
    %c0_457 = arith.constant 0 : index
    %c0_458 = arith.constant 0 : index
    %268 = vector.load %arg19[%c3_456, %c0_457, %c0_458] : memref<5x5x128xf32, #tpu.memory_space<vmem>>, vector<2x2x128xf32>
    %c0_459 = arith.constant 0 : index
    %c0_460 = arith.constant 0 : index
    %c1536 = arith.constant 1536 : index
    %269 = vector.load %arg20[%c0_459, %c0_460, %c1536] : memref<2x2x2048xf32, #tpu.memory_space<vmem>>, vector<2x2x128xf32>
    tpu.vector_store %arg20[%c0_459, %c0_460, %c1536], %268 {strides = array<i32>} : memref<2x2x2048xf32, #tpu.memory_space<vmem>>, vector<2x2x128xf32>,
    %c3_461 = arith.constant 3 : index
    %c1_462 = arith.constant 1 : index
    %c0_463 = arith.constant 0 : index
    %270 = vector.load %arg19[%c3_461, %c1_462, %c0_463] : memref<5x5x128xf32, #tpu.memory_space<vmem>>, vector<2x2x128xf32>
    %c0_464 = arith.constant 0 : index
    %c0_465 = arith.constant 0 : index
    %c1664 = arith.constant 1664 : index
    %271 = vector.load %arg20[%c0_464, %c0_465, %c1664] : memref<2x2x2048xf32, #tpu.memory_space<vmem>>, vector<2x2x128xf32>
    tpu.vector_store %arg20[%c0_464, %c0_465, %c1664], %270 {strides = array<i32>} : memref<2x2x2048xf32, #tpu.memory_space<vmem>>, vector<2x2x128xf32>,
    %c3_466 = arith.constant 3 : index
    %c2_467 = arith.constant 2 : index
    %c0_468 = arith.constant 0 : index
    %272 = vector.load %arg19[%c3_466, %c2_467, %c0_468] : memref<5x5x128xf32, #tpu.memory_space<vmem>>, vector<2x2x128xf32>
    %c0_469 = arith.constant 0 : index
    %c0_470 = arith.constant 0 : index
    %c1792 = arith.constant 1792 : index
    %273 = vector.load %arg20[%c0_469, %c0_470, %c1792] : memref<2x2x2048xf32, #tpu.memory_space<vmem>>, vector<2x2x128xf32>
    tpu.vector_store %arg20[%c0_469, %c0_470, %c1792], %272 {strides = array<i32>} : memref<2x2x2048xf32, #tpu.memory_space<vmem>>, vector<2x2x128xf32>,
    %c3_471 = arith.constant 3 : index
    %c3_472 = arith.constant 3 : index
    %c0_473 = arith.constant 0 : index
    %274 = vector.load %arg19[%c3_471, %c3_472, %c0_473] : memref<5x5x128xf32, #tpu.memory_space<vmem>>, vector<2x2x128xf32>
    %c0_474 = arith.constant 0 : index
    %c0_475 = arith.constant 0 : index
    %c1920 = arith.constant 1920 : index
    %275 = vector.load %arg20[%c0_474, %c0_475, %c1920] : memref<2x2x2048xf32, #tpu.memory_space<vmem>>, vector<2x2x128xf32>
    tpu.vector_store %arg20[%c0_474, %c0_475, %c1920], %274 {strides = array<i32>} : memref<2x2x2048xf32, #tpu.memory_space<vmem>>, vector<2x2x128xf32>,
    %c0_476 = arith.constant 0 : index
    %c0_477 = arith.constant 0 : index
    %c0_478 = arith.constant 0 : index
    %276 = vector.load %arg20[%c0_476, %c0_477, %c0_478] : memref<2x2x2048xf32, #tpu.memory_space<vmem>>, vector<2x2x2048xf32>
    %277 = vector.shape_cast %276 : vector<2x2x2048xf32> to vector<4x2048xf32>
    %c0_479 = arith.constant 0 : index
    %c0_480 = arith.constant 0 : index
    %278 = vector.load %arg10[%c0_479, %c0_480] : memref<2048x1xf32, #tpu.memory_space<vmem>>, vector<2048x1xf32>
    %cst_481 = arith.constant dense<0.000000e+00> : vector<4x1xf32>
    %279 = tpu.matmul %277, %278, %cst_481 {dimension_numbers = #tpu.dot_dimension_numbers<[1], [0], [0], [1], [0, 0, 1, 1], [], []>} : vector<4x2048xf32>, vector<2048x1xf32>, vector<4x1xf32> -> vector<4x1xf32>
    %c0_482 = arith.constant 0 : index
    %c0_483 = arith.constant 0 : index
    %280 = vector.load %arg11[%c0_482, %c0_483] : memref<1x1xf32, #tpu.memory_space<vmem>>, vector<1x1xf32>
    %281 = vector.broadcast %280 : vector<1x1xf32> to vector<4x1xf32>
    %282 = arith.addf %279, %281 : vector<4x1xf32>
    %283 = arith.negf %282 : vector<4x1xf32>
    %284 = math.exp %283 : vector<4x1xf32>
    %cst_484 = arith.constant 1.000000e+00 : f32
    %285 = vector.broadcast %cst_484 : f32 to vector<4x1xf32>
    %286 = arith.addf %285, %284 : vector<4x1xf32>
    %287 = arith.divf %285, %286 : vector<4x1xf32>
    %c0_485 = arith.constant 0 : index
    %c0_486 = arith.constant 0 : index
    %c0_487 = arith.constant 0 : index
    %288 = vector.load %arg12[%c0_485, %c0_486, %c0_487] : memref<1x4x1xf32, #tpu.memory_space<vmem>>, vector<1x4x1xf32>
    %289 = vector.shape_cast %288 : vector<1x4x1xf32> to vector<4x1xf32>
    %290 = vector.shape_cast %287 : vector<4x1xf32> to vector<1x4x1xf32>
    tpu.vector_store %arg12[%c0_485, %c0_486, %c0_487], %290 {strides = array<i32>} : memref<1x4x1xf32, #tpu.memory_space<vmem>>, vector<1x4x1xf32>,
    return
  }
  func.func @transform_0(%arg0: i32) -> (i32, i32, i32) {
    %c0_i32 = arith.constant 0 : i32
    %c0_i32_0 = arith.constant 0 : i32
    %c0_i32_1 = arith.constant 0 : i32
    return %arg0, %c0_i32, %c0_i32_0 : i32, i32, i32
  }
  func.func @transform_1(%arg0: i32) -> (i32, i32) {
    %c0_i32 = arith.constant 0 : i32
    %c0_i32_0 = arith.constant 0 : i32
    %c0_i32_1 = arith.constant 0 : i32
    return %c0_i32, %c0_i32_0 : i32, i32
  }
  func.func @transform_2(%arg0: i32) -> (i32, i32) {
    %c0_i32 = arith.constant 0 : i32
    %c0_i32_0 = arith.constant 0 : i32
    %c0_i32_1 = arith.constant 0 : i32
    return %c0_i32, %c0_i32_0 : i32, i32
  }
  func.func @transform_3(%arg0: i32) -> (i32, i32) {
    %c0_i32 = arith.constant 0 : i32
    %c0_i32_0 = arith.constant 0 : i32
    %c0_i32_1 = arith.constant 0 : i32
    return %c0_i32, %c0_i32_0 : i32, i32
  }
  func.func @transform_4(%arg0: i32) -> (i32, i32) {
    %c0_i32 = arith.constant 0 : i32
    %c0_i32_0 = arith.constant 0 : i32
    %c0_i32_1 = arith.constant 0 : i32
    return %c0_i32, %c0_i32_0 : i32, i32
  }
  func.func @transform_5(%arg0: i32) -> (i32, i32) {
    %c0_i32 = arith.constant 0 : i32
    %c0_i32_0 = arith.constant 0 : i32
    %c0_i32_1 = arith.constant 0 : i32
    return %c0_i32, %c0_i32_0 : i32, i32
  }
  func.func @transform_6(%arg0: i32) -> (i32, i32) {
    %c0_i32 = arith.constant 0 : i32
    %c0_i32_0 = arith.constant 0 : i32
    %c0_i32_1 = arith.constant 0 : i32
    return %c0_i32, %c0_i32_0 : i32, i32
  }
  func.func @transform_7(%arg0: i32) -> (i32, i32) {
    %c0_i32 = arith.constant 0 : i32
    %c0_i32_0 = arith.constant 0 : i32
    %c0_i32_1 = arith.constant 0 : i32
    return %c0_i32, %c0_i32_0 : i32, i32
  }
  func.func @transform_8(%arg0: i32) -> (i32, i32) {
    %c0_i32 = arith.constant 0 : i32
    %c0_i32_0 = arith.constant 0 : i32
    %c0_i32_1 = arith.constant 0 : i32
    return %c0_i32, %c0_i32_0 : i32, i32
  }
  func.func @transform_9(%arg0: i32) -> (i32, i32) {
    %c0_i32 = arith.constant 0 : i32
    %c0_i32_0 = arith.constant 0 : i32
    %c0_i32_1 = arith.constant 0 : i32
    return %c0_i32, %c0_i32_0 : i32, i32
  }
  func.func @transform_10(%arg0: i32) -> (i32, i32) {
    %c0_i32 = arith.constant 0 : i32
    %c0_i32_0 = arith.constant 0 : i32
    %c0_i32_1 = arith.constant 0 : i32
    return %c0_i32, %c0_i32_0 : i32, i32
  }
  func.func @transform_11(%arg0: i32) -> (i32, i32, i32) {
    %c0_i32 = arith.constant 0 : i32
    %c0_i32_0 = arith.constant 0 : i32
    %c0_i32_1 = arith.constant 0 : i32
    return %arg0, %c0_i32, %c0_i32_0 : i32, i32, i32
  }
}

</mosaic_0001>

<llo_original>
// kernel: discriminator_forward_pallas.1
$region0: #{discriminator_forward_pallas.1}
  #allocation0 [shape = 'u32[]', space=smem, size = 0x4, offset = 0x4, fixed_abs, tag = 'smem constant byte address 0x4 - core index']
  #allocation1 [shape = 'u32[72,128]{1,0:T(1,128)}', space=vmem, size = 0x9000, scoped, tag = 'internal scratch']
  #allocation2 [shape = 'f32[18,18,16]{2,1,0:T(8,128)}', space=vmem, size = 0x36000, scoped, tag = 'scratch operand']
  #allocation3 [shape = 'f32[8,8,256]{2,1,0:T(8,128)}', space=vmem, size = 0x10000, scoped, tag = 'scratch operand']
  #allocation4 [shape = 'f32[10,10,32]{2,1,0:T(8,128)}', space=vmem, size = 0x14000, scoped, tag = 'scratch operand']
  #allocation5 [shape = 'f32[4,4,512]{2,1,0:T(4,128)}', space=vmem, size = 0x8000, scoped, tag = 'scratch operand']
  #allocation6 [shape = 'f32[6,6,64]{2,1,0:T(8,128)}', space=vmem, size = 0x6000, scoped, tag = 'scratch operand']
  #allocation7 [shape = 'f32[3,3,1024]{2,1,0:T(4,128)}', space=vmem, size = 0xc000, scoped, tag = 'scratch operand']
  #allocation8 [shape = 'f32[5,5,128]{2,1,0:T(8,128)}', space=vmem, size = 0x5000, scoped, tag = 'scratch operand']
  #allocation9 [shape = 'f32[2,2,2048]{2,1,0:T(2,128)}', space=vmem, size = 0x8000, scoped, tag = 'scratch operand']
  #allocation10 [shape = 'f32[1,1]{1,0:T(1,128)S(1)}', space=vmem, size = 0x200, scoped, tag = 'scoped memory for discriminator_forward_pallas.1']
  %s0 = inlined_call_operand.vmem [shape: f32[2,256,48], index: 0, kind: input, shape index: {}]
  %s1 = inlined_call_operand.vmem [shape: f32[48,16], index: 1, kind: input, shape index: {}]
  %s2 = inlined_call_operand.vmem [shape: f32[1,16], index: 2, kind: input, shape index: {}]
  %s3 = inlined_call_operand.vmem [shape: f32[256,32], index: 3, kind: input, shape index: {}]
  %s4 = inlined_call_operand.vmem [shape: f32[1,32], index: 4, kind: input, shape index: {}]
  %s5 = inlined_call_operand.vmem [shape: f32[512,64], index: 5, kind: input, shape index: {}]
  %s6 = inlined_call_operand.vmem [shape: f32[1,64], index: 6, kind: input, shape index: {}]
  %s7 = inlined_call_operand.vmem [shape: f32[1024,128], index: 7, kind: input, shape index: {}]
  %s8 = inlined_call_operand.vmem [shape: f32[1,128], index: 8, kind: input, shape index: {}]
  %s9 = inlined_call_operand.vmem [shape: f32[2048,1], index: 9, kind: input, shape index: {}]
  %s10 = inlined_call_operand.<no memory space> [shape: f32[1,1], index: 10, kind: input, shape index: {}]
  %s11 = inlined_call_operand.vmem [shape: f32[2,4,1], index: 11, kind: output, shape index: {}]
  %s12 = sld [smem:[#allocation0]]
  $region77: #{discriminator_forward_pallas.1} parent=0
    _
  %s14 = ssub.s32 1, %s12
  %s15 = scalar_select 0, %s14, %s12
  %v16 = vstv %s10
  %17 = vst [vmem:[#allocation10] sm:$0x1] %v16
  loop: start=0, step=1, limit=4
  $region2: #{discriminator_forward_pallas.1} parent=0 // loop_pre_header
    _
  $region3: #{discriminator_forward_pallas.1} parent=0 // loop_header
    %s19 = sphi 0, %s23
    %p20 = scmp.ge.s32.totalorder %s19, 4
    %s29 = sphi 0, %s31
    %s32 = sphi 0, %s29
    %s33 = sphi 0, %s32
    %s49 = sphi 0, %s33
    %s53 = sphi 0, %s53
    %s55 = sphi 0, %s53
    %s56 = sphi 0, %s55
    %s70 = sphi 0, %s56
    %s74 = sphi 0, %s74
    %s76 = sphi 0, %s74
    %s77 = sphi 0, %s76
    %s91 = sphi 0, %s77
    %s95 = sphi 0, %s95
    %s97 = sphi 0, %s95
    %s98 = sphi 0, %s97
    %s112 = sphi 0, %s98
    %s116 = sphi 0, %s116
    %s118 = sphi 0, %s116
    %s119 = sphi 0, %s118
    %s133 = sphi 0, %s119
    %s137 = sphi 0, %s137
    %s139 = sphi 0, %s137
    %s140 = sphi 0, %s139
    %s154 = sphi 0, %s140
    %s158 = sphi 0, %s158
    %s160 = sphi 0, %s158
    %s161 = sphi 0, %s160
    %s175 = sphi 0, %s161
    %s179 = sphi 0, %s179
    %s181 = sphi 0, %s179
    %s182 = sphi 0, %s181
    %s196 = sphi 0, %s182
    %s200 = sphi 0, %s200
    %s202 = sphi 0, %s200
    %s203 = sphi 0, %s202
    %s217 = sphi 0, %s203
    %s221 = sphi 0, %s221
    %s223 = sphi 0, %s221
    %s224 = sphi 0, %s223
    %s238 = sphi 0, %s224
    %s242 = sphi 0, %s242
    %s244 = sphi 0, %s242
    %s245 = sphi 0, %s244
    %s259 = sphi 0, %s245
    %s265 = sphi 0, %s267
    %s268 = sphi 0, %s265
    %s269 = sphi 0, %s268
    %s285 = sphi 0, %s269
  $region4: #{discriminator_forward_pallas.1} parent=0 // loop_header_branch
    %22 = sbr.rel (%p20) target = $region8
  $region5: #{discriminator_forward_pallas.1} parent=0 // loop_body
    %s24 = ssub.s32 %s19, 1
    %s25 = ssub.s32 %s19, 2
    %s26 = sadd.s32 %s19, 1
    %s27 = ssub.s32 %s19, %s26
    %p28 = scmp.eq.s32.totalorder %s27, 0
    %s30 = sadd.s32 %s29, 1
    %s31 = scalar_select %p28, %s29, %s30
    %p34 = pneg %p28
    %p35 = scmp.eq.s32.totalorder %s19, 1
    %p36 = por %p34, %p35
    %p37 = scmp.ne.s32.totalorder %s29, %s32
    %p38 = scmp.eq.s32.totalorder %s19, 0
    %p39 = por %p37, %p38
    %p40 = scmp.ne.s32.totalorder %s29, %s32
    %p41 = scmp.eq.s32.totalorder %s24, 1
    %p42 = por %p40, %p41
    %p43 = scmp.ne.s32.totalorder %s32, %s33
    %p44 = scmp.eq.s32.totalorder %s24, 0
    %p45 = por %p43, %p44
    %p46 = scmp.ne.s32.totalorder %s32, %s33
    %p47 = scmp.eq.s32.totalorder %s25, 1
    %p48 = por %p46, %p47
    %p50 = scmp.ne.s32.totalorder %s33, %s49
    %p51 = scmp.eq.s32.totalorder %s25, 0
    %p52 = por %p50, %p51
    %s54 = sadd.s32 %s53, 1
    %p57 = scmp.eq.s32.totalorder %s19, 1
    %p58 = scmp.ne.s32.totalorder %s53, %s55
    %p59 = scmp.eq.s32.totalorder %s19, 0
    %p60 = por %p58, %p59
    %p61 = scmp.ne.s32.totalorder %s53, %s55
    %p62 = scmp.eq.s32.totalorder %s24, 1
    %p63 = por %p61, %p62
    %p64 = scmp.ne.s32.totalorder %s55, %s56
    %p65 = scmp.eq.s32.totalorder %s24, 0
    %p66 = por %p64, %p65
    %p67 = scmp.ne.s32.totalorder %s55, %s56
    %p68 = scmp.eq.s32.totalorder %s25, 1
    %p69 = por %p67, %p68
    %p71 = scmp.ne.s32.totalorder %s56, %s70
    %p72 = scmp.eq.s32.totalorder %s25, 0
    %p73 = por %p71, %p72
    %s75 = sadd.s32 %s74, 1
    %p78 = scmp.eq.s32.totalorder %s19, 1
    %p79 = scmp.ne.s32.totalorder %s74, %s76
    %p80 = scmp.eq.s32.totalorder %s19, 0
    %p81 = por %p79, %p80
    %p82 = scmp.ne.s32.totalorder %s74, %s76
    %p83 = scmp.eq.s32.totalorder %s24, 1
    %p84 = por %p82, %p83
    %p85 = scmp.ne.s32.totalorder %s76, %s77
    %p86 = scmp.eq.s32.totalorder %s24, 0
    %p87 = por %p85, %p86
    %p88 = scmp.ne.s32.totalorder %s76, %s77
    %p89 = scmp.eq.s32.totalorder %s25, 1
    %p90 = por %p88, %p89
    %p92 = scmp.ne.s32.totalorder %s77, %s91
    %p93 = scmp.eq.s32.totalorder %s25, 0
    %p94 = por %p92, %p93
    %s96 = sadd.s32 %s95, 1
    %p99 = scmp.eq.s32.totalorder %s19, 1
    %p100 = scmp.ne.s32.totalorder %s95, %s97
    %p101 = scmp.eq.s32.totalorder %s19, 0
    %p102 = por %p100, %p101
    %p103 = scmp.ne.s32.totalorder %s95, %s97
    %p104 = scmp.eq.s32.totalorder %s24, 1
    %p105 = por %p103, %p104
    %p106 = scmp.ne.s32.totalorder %s97, %s98
    %p107 = scmp.eq.s32.totalorder %s24, 0
    %p108 = por %p106, %p107
    %p109 = scmp.ne.s32.totalorder %s97, %s98
    %p110 = scmp.eq.s32.totalorder %s25, 1
    %p111 = por %p109, %p110
    %p113 = scmp.ne.s32.totalorder %s98, %s112
    %p114 = scmp.eq.s32.totalorder %s25, 0
    %p115 = por %p113, %p114
    %s117 = sadd.s32 %s116, 1
    %p120 = scmp.eq.s32.totalorder %s19, 1
    %p121 = scmp.ne.s32.totalorder %s116, %s118
    %p122 = scmp.eq.s32.totalorder %s19, 0
    %p123 = por %p121, %p122
    %p124 = scmp.ne.s32.totalorder %s116, %s118
    %p125 = scmp.eq.s32.totalorder %s24, 1
    %p126 = por %p124, %p125
    %p127 = scmp.ne.s32.totalorder %s118, %s119
    %p128 = scmp.eq.s32.totalorder %s24, 0
    %p129 = por %p127, %p128
    %p130 = scmp.ne.s32.totalorder %s118, %s119
    %p131 = scmp.eq.s32.totalorder %s25, 1
    %p132 = por %p130, %p131
    %p134 = scmp.ne.s32.totalorder %s119, %s133
    %p135 = scmp.eq.s32.totalorder %s25, 0
    %p136 = por %p134, %p135
    %s138 = sadd.s32 %s137, 1
    %p141 = scmp.eq.s32.totalorder %s19, 1
    %p142 = scmp.ne.s32.totalorder %s137, %s139
    %p143 = scmp.eq.s32.totalorder %s19, 0
    %p144 = por %p142, %p143
    %p145 = scmp.ne.s32.totalorder %s137, %s139
    %p146 = scmp.eq.s32.totalorder %s24, 1
    %p147 = por %p145, %p146
    %p148 = scmp.ne.s32.totalorder %s139, %s140
    %p149 = scmp.eq.s32.totalorder %s24, 0
    %p150 = por %p148, %p149
    %p151 = scmp.ne.s32.totalorder %s139, %s140
    %p152 = scmp.eq.s32.totalorder %s25, 1
    %p153 = por %p151, %p152
    %p155 = scmp.ne.s32.totalorder %s140, %s154
    %p156 = scmp.eq.s32.totalorder %s25, 0
    %p157 = por %p155, %p156
    %s159 = sadd.s32 %s158, 1
    %p162 = scmp.eq.s32.totalorder %s19, 1
    %p163 = scmp.ne.s32.totalorder %s158, %s160
    %p164 = scmp.eq.s32.totalorder %s19, 0
    %p165 = por %p163, %p164
    %p166 = scmp.ne.s32.totalorder %s158, %s160
    %p167 = scmp.eq.s32.totalorder %s24, 1
    %p168 = por %p166, %p167
    %p169 = scmp.ne.s32.totalorder %s160, %s161
    %p170 = scmp.eq.s32.totalorder %s24, 0
    %p171 = por %p169, %p170
    %p172 = scmp.ne.s32.totalorder %s160, %s161
    %p173 = scmp.eq.s32.totalorder %s25, 1
    %p174 = por %p172, %p173
    %p176 = scmp.ne.s32.totalorder %s161, %s175
    %p177 = scmp.eq.s32.totalorder %s25, 0
    %p178 = por %p176, %p177
    %s180 = sadd.s32 %s179, 1
    %p183 = scmp.eq.s32.totalorder %s19, 1
    %p184 = scmp.ne.s32.totalorder %s179, %s181
    %p185 = scmp.eq.s32.totalorder %s19, 0
    %p186 = por %p184, %p185
    %p187 = scmp.ne.s32.totalorder %s179, %s181
    %p188 = scmp.eq.s32.totalorder %s24, 1
    %p189 = por %p187, %p188
    %p190 = scmp.ne.s32.totalorder %s181, %s182
    %p191 = scmp.eq.s32.totalorder %s24, 0
    %p192 = por %p190, %p191
    %p193 = scmp.ne.s32.totalorder %s181, %s182
    %p194 = scmp.eq.s32.totalorder %s25, 1
    %p195 = por %p193, %p194
    %p197 = scmp.ne.s32.totalorder %s182, %s196
    %p198 = scmp.eq.s32.totalorder %s25, 0
    %p199 = por %p197, %p198
    %s201 = sadd.s32 %s200, 1
    %p204 = scmp.eq.s32.totalorder %s19, 1
    %p205 = scmp.ne.s32.totalorder %s200, %s202
    %p206 = scmp.eq.s32.totalorder %s19, 0
    %p207 = por %p205, %p206
    %p208 = scmp.ne.s32.totalorder %s200, %s202
    %p209 = scmp.eq.s32.totalorder %s24, 1
    %p210 = por %p208, %p209
    %p211 = scmp.ne.s32.totalorder %s202, %s203
    %p212 = scmp.eq.s32.totalorder %s24, 0
    %p213 = por %p211, %p212
    %p214 = scmp.ne.s32.totalorder %s202, %s203
    %p215 = scmp.eq.s32.totalorder %s25, 1
    %p216 = por %p214, %p215
    %p218 = scmp.ne.s32.totalorder %s203, %s217
    %p219 = scmp.eq.s32.totalorder %s25, 0
    %p220 = por %p218, %p219
    %s222 = sadd.s32 %s221, 1
    %p225 = scmp.eq.s32.totalorder %s19, 1
    %p226 = scmp.ne.s32.totalorder %s221, %s223
    %p227 = scmp.eq.s32.totalorder %s19, 0
    %p228 = por %p226, %p227
    %p229 = scmp.ne.s32.totalorder %s221, %s223
    %p230 = scmp.eq.s32.totalorder %s24, 1
    %p231 = por %p229, %p230
    %p232 = scmp.ne.s32.totalorder %s223, %s224
    %p233 = scmp.eq.s32.totalorder %s24, 0
    %p234 = por %p232, %p233
    %p235 = scmp.ne.s32.totalorder %s223, %s224
    %p236 = scmp.eq.s32.totalorder %s25, 1
    %p237 = por %p235, %p236
    %p239 = scmp.ne.s32.totalorder %s224, %s238
    %p240 = scmp.eq.s32.totalorder %s25, 0
    %p241 = por %p239, %p240
    %s243 = sadd.s32 %s242, 1
    %p246 = scmp.eq.s32.totalorder %s19, 1
    %p247 = scmp.ne.s32.totalorder %s242, %s244
    %p248 = scmp.eq.s32.totalorder %s19, 0
    %p249 = por %p247, %p248
    %p250 = scmp.ne.s32.totalorder %s242, %s244
    %p251 = scmp.eq.s32.totalorder %s24, 1
    %p252 = por %p250, %p251
    %p253 = scmp.ne.s32.totalorder %s244, %s245
    %p254 = scmp.eq.s32.totalorder %s24, 0
    %p255 = por %p253, %p254
    %p256 = scmp.ne.s32.totalorder %s244, %s245
    %p257 = scmp.eq.s32.totalorder %s25, 1
    %p258 = por %p256, %p257
    %p260 = scmp.ne.s32.totalorder %s245, %s259
    %p261 = scmp.eq.s32.totalorder %s25, 0
    %p262 = por %p260, %p261
    %s263 = ssub.s32 %s19, %s26
    %p264 = scmp.eq.s32.totalorder %s263, 0
    %s266 = sadd.s32 %s265, 1
    %s267 = scalar_select %p264, %s265, %s266
    %p270 = pneg %p264
    %p271 = scmp.eq.s32.totalorder %s19, 1
    %p272 = por %p270, %p271
    %p273 = scmp.ne.s32.totalorder %s265, %s268
    %p274 = scmp.eq.s32.totalorder %s19, 0
    %p275 = por %p273, %p274
    %p276 = scmp.ne.s32.totalorder %s265, %s268
    %p277 = scmp.eq.s32.totalorder %s24, 1
    %p278 = por %p276, %p277
    %p279 = scmp.ne.s32.totalorder %s268, %s269
    %p280 = scmp.eq.s32.totalorder %s24, 0
    %p281 = por %p279, %p280
    %p282 = scmp.ne.s32.totalorder %s268, %s269
    %p283 = scmp.eq.s32.totalorder %s25, 1
    %p284 = por %p282, %p283
    %p286 = scmp.ne.s32.totalorder %s269, %s285
    %p287 = scmp.eq.s32.totalorder %s25, 0
    %p288 = por %p286, %p287
    %p289 = scmp.le.s32.totalorder 1, %s19
    %p290 = scmp.lt.s32.totalorder %s19, 3
    %p291 = pnand %p289, %p290
    %p292 = pneg %p291
    // Predicated region
    $region9: #{discriminator_forward_pallas.1} parent=5 // pred_check
      _
    $region10: #{discriminator_forward_pallas.1} parent=5 // pred_check_branch
      %294 = sbr.rel (%p291) target = $region12
    $region11: #{discriminator_forward_pallas.1} parent=5 // pred_region
      %s295 = ssub.s32 %s19, 1
      // Predicated region
      $region13: #{discriminator_forward_pallas.1} parent=11 // pred_check
        %p296 = pneg %p66
      $region14: #{discriminator_forward_pallas.1} parent=11 // pred_check_branch
        %298 = sbr.rel (%p296) target = $region16
      $region15: #{discriminator_forward_pallas.1} parent=11 // pred_region
        _
      $region16: #{discriminator_forward_pallas.1} parent=11 // pred_fallthru
        _
      // Predicated region
      $region17: #{discriminator_forward_pallas.1} parent=11 // pred_check
        %p299 = pneg %p87
      $region18: #{discriminator_forward_pallas.1} parent=11 // pred_check_branch
        %301 = sbr.rel (%p299) target = $region20
      $region19: #{discriminator_forward_pallas.1} parent=11 // pred_region
        _
      $region20: #{discriminator_forward_pallas.1} parent=11 // pred_fallthru
        _
      // Predicated region
      $region21: #{discriminator_forward_pallas.1} parent=11 // pred_check
        %p302 = pneg %p108
      $region22: #{discriminator_forward_pallas.1} parent=11 // pred_check_branch
        %304 = sbr.rel (%p302) target = $region24
      $region23: #{discriminator_forward_pallas.1} parent=11 // pred_region
        _
      $region24: #{discriminator_forward_pallas.1} parent=11 // pred_fallthru
        _
      // Predicated region
      $region25: #{discriminator_forward_pallas.1} parent=11 // pred_check
        %p305 = pneg %p129
      $region26: #{discriminator_forward_pallas.1} parent=11 // pred_check_branch
        %307 = sbr.rel (%p305) target = $region28
      $region27: #{discriminator_forward_pallas.1} parent=11 // pred_region
        _
      $region28: #{discriminator_forward_pallas.1} parent=11 // pred_fallthru
        _
      // Predicated region
      $region29: #{discriminator_forward_pallas.1} parent=11 // pred_check
        %p308 = pneg %p150
      $region30: #{discriminator_forward_pallas.1} parent=11 // pred_check_branch
        %310 = sbr.rel (%p308) target = $region32
      $region31: #{discriminator_forward_pallas.1} parent=11 // pred_region
        _
      $region32: #{discriminator_forward_pallas.1} parent=11 // pred_fallthru
        _
      // Predicated region
      $region33: #{discriminator_forward_pallas.1} parent=11 // pred_check
        %p311 = pneg %p171
      $region34: #{discriminator_forward_pallas.1} parent=11 // pred_check_branch
        %313 = sbr.rel (%p311) target = $region36
      $region35: #{discriminator_forward_pallas.1} parent=11 // pred_region
        _
      $region36: #{discriminator_forward_pallas.1} parent=11 // pred_fallthru
        _
      // Predicated region
      $region37: #{discriminator_forward_pallas.1} parent=11 // pred_check
        %p314 = pneg %p192
      $region38: #{discriminator_forward_pallas.1} parent=11 // pred_check_branch
        %316 = sbr.rel (%p314) target = $region40
      $region39: #{discriminator_forward_pallas.1} parent=11 // pred_region
        _
      $region40: #{discriminator_forward_pallas.1} parent=11 // pred_fallthru
        _
      // Predicated region
      $region41: #{discriminator_forward_pallas.1} parent=11 // pred_check
        %p317 = pneg %p213
      $region42: #{discriminator_forward_pallas.1} parent=11 // pred_check_branch
        %319 = sbr.rel (%p317) target = $region44
      $region43: #{discriminator_forward_pallas.1} parent=11 // pred_region
        _
      $region44: #{discriminator_forward_pallas.1} parent=11 // pred_fallthru
        _
      // Predicated region
      $region45: #{discriminator_forward_pallas.1} parent=11 // pred_check
        %p320 = pneg %p234
      $region46: #{discriminator_forward_pallas.1} parent=11 // pred_check_branch
        %322 = sbr.rel (%p320) target = $region48
      $region47: #{discriminator_forward_pallas.1} parent=11 // pred_region
        _
      $region48: #{discriminator_forward_pallas.1} parent=11 // pred_fallthru
        _
      // Predicated region
      $region49: #{discriminator_forward_pallas.1} parent=11 // pred_check
        %p323 = pneg %p255
      $region50: #{discriminator_forward_pallas.1} parent=11 // pred_check_branch
        %325 = sbr.rel (%p323) target = $region52
      $region51: #{discriminator_forward_pallas.1} parent=11 // pred_region
        _
      $region52: #{discriminator_forward_pallas.1} parent=11 // pred_fallthru
        _
    $region12: #{discriminator_forward_pallas.1} parent=5 // pred_fallthru
      _
    %p326 = scmp.lt.s32.totalorder %s19, 2
    // Predicated region
    $region53: #{discriminator_forward_pallas.1} parent=5 // pred_check
      %p327 = pneg %p326
    $region54: #{discriminator_forward_pallas.1} parent=5 // pred_check_branch
      %329 = sbr.rel (%p327) target = $region56
    $region55: #{discriminator_forward_pallas.1} parent=5 // pred_region
      // Predicated region
      $region57: #{discriminator_forward_pallas.1} parent=55 // pred_check
        %p330 = pneg %p39
      $region58: #{discriminator_forward_pallas.1} parent=55 // pred_check_branch
        %332 = sbr.rel (%p330) target = $region60
      $region59: #{discriminator_forward_pallas.1} parent=55 // pred_region
        %p333 = scmp.lt.s32.totalorder %s19, 1
        %s334 = scalar_select %p333, %s19, 1
        %s335 = smul.addr %s334, 32
        %s336 = smul.addr %s335, 8
        %s337 = scalar_lea.vmem %s0, %s336
      $region60: #{discriminator_forward_pallas.1} parent=55 // pred_fallthru
        _
    $region56: #{discriminator_forward_pallas.1} parent=5 // pred_fallthru
      _
    %p338 = scmp.le.s32.totalorder 1, %s19
    %p339 = scmp.lt.s32.totalorder %s19, 3
    %p340 = pnand %p338, %p339
    %p341 = pneg %p340
    // Predicated region
    $region61: #{discriminator_forward_pallas.1} parent=5 // pred_check
      _
    $region62: #{discriminator_forward_pallas.1} parent=5 // pred_check_branch
      %343 = sbr.rel (%p340) target = $region64
    $region63: #{discriminator_forward_pallas.1} parent=5 // pred_region
      %s344 = ssub.s32 %s19, 1
      %p345 = scmp.lt.s32.totalorder %s24, 1
      %s346 = scalar_select %p345, %s24, 1
      %s347 = smul.addr %s346, 32
      %s348 = smul.addr %s347, 8
      %s349 = scalar_lea.vmem %s0, %s348
      %p350 = pneg %p45
      %p351 = pneg %p42
      %p352 = pneg %p66
      %p353 = pneg %p63
      %p354 = pneg %p87
      %p355 = pneg %p84
      %p356 = pneg %p108
      %p357 = pneg %p105
      %p358 = pneg %p129
      %p359 = pneg %p126
      %p360 = pneg %p150
      %p361 = pneg %p147
      %p362 = pneg %p171
      %p363 = pneg %p168
      %p364 = pneg %p192
      %p365 = pneg %p189
      %p366 = pneg %p213
      %p367 = pneg %p210
      %p368 = pneg %p234
      %p369 = pneg %p231
      %p370 = pneg %p255
      %p371 = pneg %p252
      %p372 = pneg %p281
      %p373 = pneg %p278
      %p374 = scmp.lt.s32.totalorder %s24, 1
      %s375 = scalar_select %p374, %s24, 1
      %s376 = smul.addr %s375, 4
      %s377 = scalar_lea.vmem %s11, %s376
      %p378 = scmp.lt.s32.totalorder %s24, 1
      %s379 = scalar_select %p378, %s24, 1
      %s380 = smul.addr %s379, 32
      %s381 = smul.addr %s380, 8
      %s382 = scalar_lea.vmem %s0, %s381
      %p383 = scmp.lt.s32.totalorder %s24, 1
      %s384 = scalar_select %p383, %s24, 1
      %s385 = smul.addr %s384, 4
      %s386 = scalar_lea.vmem %s11, %s385
      %v387 = vld [vmem:[%s382] sm:$0xff]
      %v388 = vld [vmem:[%s382 + $0x8] sm:$0xff]
      %v389 = vld [vmem:[%s382 + $0x10] sm:$0xff]
      %v390 = vld [vmem:[%s382 + $0x18] sm:$0xff]
      %v391 = vld [vmem:[%s382 + $0x20] sm:$0xff]
      %v392 = vld [vmem:[%s382 + $0x28] sm:$0xff]
      %v393 = vld [vmem:[%s382 + $0x30] sm:$0xff]
      %v394 = vld [vmem:[%s382 + $0x38] sm:$0xff]
      %v395 = vld [vmem:[%s382 + $0x40] sm:$0xff]
      %v396 = vld [vmem:[%s382 + $0x48] sm:$0xff]
      %v397 = vld [vmem:[%s382 + $0x50] sm:$0xff]
      %v398 = vld [vmem:[%s382 + $0x58] sm:$0xff]
      %v399 = vld [vmem:[%s382 + $0x60] sm:$0xff]
      %v400 = vld [vmem:[%s382 + $0x68] sm:$0xff]
      %v401 = vld [vmem:[%s382 + $0x70] sm:$0xff]
      %v402 = vld [vmem:[%s382 + $0x78] sm:$0xff]
      %v403 = vld [vmem:[%s382 + $0x80] sm:$0xff]
      %v404 = vld [vmem:[%s382 + $0x88] sm:$0xff]
      %v405 = vld [vmem:[%s382 + $0x90] sm:$0xff]
      %v406 = vld [vmem:[%s382 + $0x98] sm:$0xff]
      %v407 = vld [vmem:[%s382 + $0xa0] sm:$0xff]
      %v408 = vld [vmem:[%s382 + $0xa8] sm:$0xff]
      %v409 = vld [vmem:[%s382 + $0xb0] sm:$0xff]
      %v410 = vld [vmem:[%s382 + $0xb8] sm:$0xff]
      %v411 = vld [vmem:[%s382 + $0xc0] sm:$0xff]
      %v412 = vld [vmem:[%s382 + $0xc8] sm:$0xff]
      %v413 = vld [vmem:[%s382 + $0xd0] sm:$0xff]
      %v414 = vld [vmem:[%s382 + $0xd8] sm:$0xff]
      %v415 = vld [vmem:[%s382 + $0xe0] sm:$0xff]
      %v416 = vld [vmem:[%s382 + $0xe8] sm:$0xff]
      %v417 = vld [vmem:[%s382 + $0xf0] sm:$0xff]
      %v418 = vld [vmem:[%s382 + $0xf8] sm:$0xff]
      %v419 = vld [vmem:[%s1] sm:$0xff]
      %v420 = vld [vmem:[%s1 + $0x8] sm:$0xff]
      %v421 = vld [vmem:[%s1 + $0x10] sm:$0xff]
      %v422 = vld [vmem:[%s1 + $0x18] sm:$0xff]
      %v423 = vld [vmem:[%s1 + $0x20] sm:$0xff]
      %v424 = vld [vmem:[%s1 + $0x28] sm:$0xff]
      %v425 = vld [vmem:[%s2] sm:$0x1]
      %v427 = vperm.slane %v425, 0
      %vm429 = vcmask 392192
      %v431 = vsel %vm429, %v387, 0
      %v434 = vsel %vm429, %v388, 0
      %v437 = vsel %vm429, %v389, 0
      %v440 = vsel %vm429, %v390, 0
      %v443 = vsel %vm429, %v391, 0
      %v446 = vsel %vm429, %v392, 0
      %v449 = vsel %vm429, %v393, 0
      %v452 = vsel %vm429, %v394, 0
      %v455 = vsel %vm429, %v395, 0
      %v458 = vsel %vm429, %v396, 0
      %v461 = vsel %vm429, %v397, 0
      %v464 = vsel %vm429, %v398, 0
      %v467 = vsel %vm429, %v399, 0
      %v470 = vsel %vm429, %v400, 0
      %v473 = vsel %vm429, %v401, 0
      %v476 = vsel %vm429, %v402, 0
      %v479 = vsel %vm429, %v403, 0
      %v482 = vsel %vm429, %v404, 0
      %v485 = vsel %vm429, %v405, 0
      %v488 = vsel %vm429, %v406, 0
      %v491 = vsel %vm429, %v407, 0
      %v494 = vsel %vm429, %v408, 0
      %v497 = vsel %vm429, %v409, 0
      %v500 = vsel %vm429, %v410, 0
      %v503 = vsel %vm429, %v411, 0
      %v506 = vsel %vm429, %v412, 0
      %v509 = vsel %vm429, %v413, 0
      %v512 = vsel %vm429, %v414, 0
      %v515 = vsel %vm429, %v415, 0
      %v518 = vsel %vm429, %v416, 0
      %v521 = vsel %vm429, %v417, 0
      %v524 = vsel %vm429, %v418, 0
      %526 = vmatpush.msra.mxu0 0.0
      %527 = vmatpush.msra.mxu0 0.0
      %528 = vmatpush.msra.mxu0 0.0
      %529 = vmatpush.msra.mxu0 0.0
      %530 = vmatpush.msra.mxu0 0.0
      %531 = vmatpush.msra.mxu0 0.0
      %532 = vmatpush.msra.mxu0 0.0
      %533 = vmatpush.msra.mxu0 0.0
      %534 = vmatpush.msra.mxu0 0.0
      %535 = vmatpush.msra.mxu0 0.0
      %536 = vmatpush.msra.mxu0 %v424
      %537 = vmatpush.msra.mxu0 %v423
      %538 = vmatpush.msra.mxu0 %v422
      %539 = vmatpush.msra.mxu0 %v421
      %540 = vmatpush.msra.mxu0 %v420
      %541 = vmatpush.msra.mxu0 %v419
      %542 = vmatmul.f32.gmra.mxu0 %v431
      %v543 = vpop.f32.mrf.mxu0
      %v544 = vadd.f32 %v427, %v543
      %545 = vmatmul.f32.gmra.mxu0 %v434
      %v546 = vpop.f32.mrf.mxu0
      %v547 = vadd.f32 %v427, %v546
      %548 = vmatmul.f32.gmra.mxu0 %v437
      %v549 = vpop.f32.mrf.mxu0
      %v550 = vadd.f32 %v427, %v549
      %551 = vmatmul.f32.gmra.mxu0 %v440
      %v552 = vpop.f32.mrf.mxu0
      %v553 = vadd.f32 %v427, %v552
      %554 = vmatmul.f32.gmra.mxu0 %v443
      %v555 = vpop.f32.mrf.mxu0
      %v556 = vadd.f32 %v427, %v555
      %557 = vmatmul.f32.gmra.mxu0 %v446
      %v558 = vpop.f32.mrf.mxu0
      %v559 = vadd.f32 %v427, %v558
      %560 = vmatmul.f32.gmra.mxu0 %v449
      %v561 = vpop.f32.mrf.mxu0
      %v562 = vadd.f32 %v427, %v561
      %563 = vmatmul.f32.gmra.mxu0 %v452
      %v564 = vpop.f32.mrf.mxu0
      %v565 = vadd.f32 %v427, %v564
      %566 = vmatmul.f32.gmra.mxu0 %v455
      %v567 = vpop.f32.mrf.mxu0
      %v568 = vadd.f32 %v427, %v567
      %569 = vmatmul.f32.gmra.mxu0 %v458
      %v570 = vpop.f32.mrf.mxu0
      %v571 = vadd.f32 %v427, %v570
      %572 = vmatmul.f32.gmra.mxu0 %v461
      %v573 = vpop.f32.mrf.mxu0
      %v574 = vadd.f32 %v427, %v573
      %575 = vmatmul.f32.gmra.mxu0 %v464
      %v576 = vpop.f32.mrf.mxu0
      %v577 = vadd.f32 %v427, %v576
      %578 = vmatmul.f32.gmra.mxu0 %v467
      %v579 = vpop.f32.mrf.mxu0
      %v580 = vadd.f32 %v427, %v579
      %581 = vmatmul.f32.gmra.mxu0 %v470
      %v582 = vpop.f32.mrf.mxu0
      %v583 = vadd.f32 %v427, %v582
      %584 = vmatmul.f32.gmra.mxu0 %v473
      %v585 = vpop.f32.mrf.mxu0
      %v586 = vadd.f32 %v427, %v585
      %587 = vmatmul.f32.gmra.mxu0 %v476
      %v588 = vpop.f32.mrf.mxu0
      %v589 = vadd.f32 %v427, %v588
      %590 = vmatmul.f32.gmra.mxu0 %v479
      %v591 = vpop.f32.mrf.mxu0
      %v592 = vadd.f32 %v427, %v591
      %593 = vmatmul.f32.gmra.mxu0 %v482
      %v594 = vpop.f32.mrf.mxu0
      %v595 = vadd.f32 %v427, %v594
      %596 = vmatmul.f32.gmra.mxu0 %v485
      %v597 = vpop.f32.mrf.mxu0
      %v598 = vadd.f32 %v427, %v597
      %599 = vmatmul.f32.gmra.mxu0 %v488
      %v600 = vpop.f32.mrf.mxu0
      %v601 = vadd.f32 %v427, %v600
      %602 = vmatmul.f32.gmra.mxu0 %v491
      %v603 = vpop.f32.mrf.mxu0
      %v604 = vadd.f32 %v427, %v603
      %605 = vmatmul.f32.gmra.mxu0 %v494
      %v606 = vpop.f32.mrf.mxu0
      %v607 = vadd.f32 %v427, %v606
      %608 = vmatmul.f32.gmra.mxu0 %v497
      %v609 = vpop.f32.mrf.mxu0
      %v610 = vadd.f32 %v427, %v609
      %611 = vmatmul.f32.gmra.mxu0 %v500
      %v612 = vpop.f32.mrf.mxu0
      %v613 = vadd.f32 %v427, %v612
      %614 = vmatmul.f32.gmra.mxu0 %v503
      %v615 = vpop.f32.mrf.mxu0
      %v616 = vadd.f32 %v427, %v615
      %617 = vmatmul.f32.gmra.mxu0 %v506
      %v618 = vpop.f32.mrf.mxu0
      %v619 = vadd.f32 %v427, %v618
      %620 = vmatmul.f32.gmra.mxu0 %v509
      %v621 = vpop.f32.mrf.mxu0
      %v622 = vadd.f32 %v427, %v621
      %623 = vmatmul.f32.gmra.mxu0 %v512
      %v624 = vpop.f32.mrf.mxu0
      %v625 = vadd.f32 %v427, %v624
      %626 = vmatmul.f32.gmra.mxu0 %v515
      %v627 = vpop.f32.mrf.mxu0
      %v628 = vadd.f32 %v427, %v627
      %629 = vmatmul.f32.gmra.mxu0 %v518
      %v630 = vpop.f32.mrf.mxu0
      %v631 = vadd.f32 %v427, %v630
      %632 = vmatmul.f32.gmra.mxu0 %v521
      %v633 = vpop.f32.mrf.mxu0
      %v634 = vadd.f32 %v427, %v633
      %635 = vmatmul.f32.gmra.mxu0 %v524
      %v636 = vpop.f32.mrf.mxu0
      %v637 = vadd.f32 %v427, %v636
      %638 = vdwg.mxu0
      %vm639 = vcmp.ge.f32.partialorder %v544, 0.0
      %vm640 = vcmp.ge.f32.partialorder %v547, 0.0
      %vm641 = vcmp.ge.f32.partialorder %v550, 0.0
      %vm642 = vcmp.ge.f32.partialorder %v553, 0.0
      %vm643 = vcmp.ge.f32.partialorder %v556, 0.0
      %vm644 = vcmp.ge.f32.partialorder %v559, 0.0
      %vm645 = vcmp.ge.f32.partialorder %v562, 0.0
      %vm646 = vcmp.ge.f32.partialorder %v565, 0.0
      %vm647 = vcmp.ge.f32.partialorder %v568, 0.0
      %vm648 = vcmp.ge.f32.partialorder %v571, 0.0
      %vm649 = vcmp.ge.f32.partialorder %v574, 0.0
      %vm650 = vcmp.ge.f32.partialorder %v577, 0.0
      %vm651 = vcmp.ge.f32.partialorder %v580, 0.0
      %vm652 = vcmp.ge.f32.partialorder %v583, 0.0
      %vm653 = vcmp.ge.f32.partialorder %v586, 0.0
      %vm654 = vcmp.ge.f32.partialorder %v589, 0.0
      %vm655 = vcmp.ge.f32.partialorder %v592, 0.0
      %vm656 = vcmp.ge.f32.partialorder %v595, 0.0
      %vm657 = vcmp.ge.f32.partialorder %v598, 0.0
      %vm658 = vcmp.ge.f32.partialorder %v601, 0.0
      %vm659 = vcmp.ge.f32.partialorder %v604, 0.0
      %vm660 = vcmp.ge.f32.partialorder %v607, 0.0
      %vm661 = vcmp.ge.f32.partialorder %v610, 0.0
      %vm662 = vcmp.ge.f32.partialorder %v613, 0.0
      %vm663 = vcmp.ge.f32.partialorder %v616, 0.0
      %vm664 = vcmp.ge.f32.partialorder %v619, 0.0
      %vm665 = vcmp.ge.f32.partialorder %v622, 0.0
      %vm666 = vcmp.ge.f32.partialorder %v625, 0.0
      %vm667 = vcmp.ge.f32.partialorder %v628, 0.0
      %vm668 = vcmp.ge.f32.partialorder %v631, 0.0
      %vm669 = vcmp.ge.f32.partialorder %v634, 0.0
      %vm670 = vcmp.ge.f32.partialorder %v637, 0.0
      %v671 = vmul.f32 %v544, 0.2
      %v672 = vmul.f32 %v547, 0.2
      %v673 = vmul.f32 %v550, 0.2
      %v674 = vmul.f32 %v553, 0.2
      %v675 = vmul.f32 %v556, 0.2
      %v676 = vmul.f32 %v559, 0.2
      %v677 = vmul.f32 %v562, 0.2
      %v678 = vmul.f32 %v565, 0.2
      %v679 = vmul.f32 %v568, 0.2
      %v680 = vmul.f32 %v571, 0.2
      %v681 = vmul.f32 %v574, 0.2
      %v682 = vmul.f32 %v577, 0.2
      %v683 = vmul.f32 %v580, 0.2
      %v684 = vmul.f32 %v583, 0.2
      %v685 = vmul.f32 %v586, 0.2
      %v686 = vmul.f32 %v589, 0.2
      %v687 = vmul.f32 %v592, 0.2
      %v688 = vmul.f32 %v595, 0.2
      %v689 = vmul.f32 %v598, 0.2
      %v690 = vmul.f32 %v601, 0.2
      %v691 = vmul.f32 %v604, 0.2
      %v692 = vmul.f32 %v607, 0.2
      %v693 = vmul.f32 %v610, 0.2
      %v694 = vmul.f32 %v613, 0.2
      %v695 = vmul.f32 %v616, 0.2
      %v696 = vmul.f32 %v619, 0.2
      %v697 = vmul.f32 %v622, 0.2
      %v698 = vmul.f32 %v625, 0.2
      %v699 = vmul.f32 %v628, 0.2
      %v700 = vmul.f32 %v631, 0.2
      %v701 = vmul.f32 %v634, 0.2
      %v702 = vmul.f32 %v637, 0.2
      %v703 = vsel %vm639, %v544, %v671
      %v704 = vsel %vm640, %v547, %v672
      %v705 = vsel %vm641, %v550, %v673
      %v706 = vsel %vm642, %v553, %v674
      %v707 = vsel %vm643, %v556, %v675
      %v708 = vsel %vm644, %v559, %v676
      %v709 = vsel %vm645, %v562, %v677
      %v710 = vsel %vm646, %v565, %v678
      %v711 = vsel %vm647, %v568, %v679
      %v712 = vsel %vm648, %v571, %v680
      %v713 = vsel %vm649, %v574, %v681
      %v714 = vsel %vm650, %v577, %v682
      %v715 = vsel %vm651, %v580, %v683
      %v716 = vsel %vm652, %v583, %v684
      %v717 = vsel %vm653, %v586, %v685
      %v718 = vsel %vm654, %v589, %v686
      %v719 = vsel %vm655, %v592, %v687
      %v720 = vsel %vm656, %v595, %v688
      %v721 = vsel %vm657, %v598, %v689
      %v722 = vsel %vm658, %v601, %v690
      %v723 = vsel %vm659, %v604, %v691
      %v724 = vsel %vm660, %v607, %v692
      %v725 = vsel %vm661, %v610, %v693
      %v726 = vsel %vm662, %v613, %v694
      %v727 = vsel %vm663, %v616, %v695
      %v728 = vsel %vm664, %v619, %v696
      %v729 = vsel %vm665, %v622, %v697
      %v730 = vsel %vm666, %v625, %v698
      %v731 = vsel %vm667, %v628, %v699
      %v732 = vsel %vm668, %v631, %v700
      %v733 = vsel %vm669, %v634, %v701
      %v734 = vsel %vm670, %v637, %v702
      %s735 = scalar_lea.vmem [#allocation2], 24
      %vm736 = vcmask 130048
      %737 = vst.msk [vmem:[%s735 + $0x1] sm:$0xff] %vm736, %v703
      %738 = vst.msk [vmem:[%s735 + $0x9] sm:$0xff] %vm736, %v704
      %739 = vst.msk [vmem:[%s735 + $0x19] sm:$0xff] %vm736, %v705
      %740 = vst.msk [vmem:[%s735 + $0x21] sm:$0xff] %vm736, %v706
      %741 = vst.msk [vmem:[%s735 + $0x31] sm:$0xff] %vm736, %v707
      %742 = vst.msk [vmem:[%s735 + $0x39] sm:$0xff] %vm736, %v708
      %743 = vst.msk [vmem:[%s735 + $0x49] sm:$0xff] %vm736, %v709
      %744 = vst.msk [vmem:[%s735 + $0x51] sm:$0xff] %vm736, %v710
      %745 = vst.msk [vmem:[%s735 + $0x61] sm:$0xff] %vm736, %v711
      %746 = vst.msk [vmem:[%s735 + $0x69] sm:$0xff] %vm736, %v712
      %747 = vst.msk [vmem:[%s735 + $0x79] sm:$0xff] %vm736, %v713
      %748 = vst.msk [vmem:[%s735 + $0x81] sm:$0xff] %vm736, %v714
      %749 = vst.msk [vmem:[%s735 + $0x91] sm:$0xff] %vm736, %v715
      %750 = vst.msk [vmem:[%s735 + $0x99] sm:$0xff] %vm736, %v716
      %751 = vst.msk [vmem:[%s735 + $0xa9] sm:$0xff] %vm736, %v717
      %752 = vst.msk [vmem:[%s735 + $0xb1] sm:$0xff] %vm736, %v718
      %753 = vst.msk [vmem:[%s735 + $0xc1] sm:$0xff] %vm736, %v719
      %754 = vst.msk [vmem:[%s735 + $0xc9] sm:$0xff] %vm736, %v720
      %755 = vst.msk [vmem:[%s735 + $0xd9] sm:$0xff] %vm736, %v721
      %756 = vst.msk [vmem:[%s735 + $0xe1] sm:$0xff] %vm736, %v722
      %757 = vst.msk [vmem:[%s735 + $0xf1] sm:$0xff] %vm736, %v723
      %758 = vst.msk [vmem:[%s735 + $0xf9] sm:$0xff] %vm736, %v724
      %759 = vst.msk [vmem:[%s735 + $0x109] sm:$0xff] %vm736, %v725
      %760 = vst.msk [vmem:[%s735 + $0x111] sm:$0xff] %vm736, %v726
      %761 = vst.msk [vmem:[%s735 + $0x121] sm:$0xff] %vm736, %v727
      %762 = vst.msk [vmem:[%s735 + $0x129] sm:$0xff] %vm736, %v728
      %763 = vst.msk [vmem:[%s735 + $0x139] sm:$0xff] %vm736, %v729
      %764 = vst.msk [vmem:[%s735 + $0x141] sm:$0xff] %vm736, %v730
      %765 = vst.msk [vmem:[%s735 + $0x151] sm:$0xff] %vm736, %v731
      %766 = vst.msk [vmem:[%s735 + $0x159] sm:$0xff] %vm736, %v732
      %767 = vst.msk [vmem:[%s735 + $0x169] sm:$0xff] %vm736, %v733
      %768 = vst.msk [vmem:[%s735 + $0x171] sm:$0xff] %vm736, %v734
      %vm769 = vcmask 123905
      %770 = vst.msk [vmem:[%s735 - $0x1] sm:$0x2] %vm769, %v703
      %771 = vst.msk [vmem:[%s735 + $0x17] sm:$0x2] %vm769, %v705
      %772 = vst.msk [vmem:[%s735 + $0x2f] sm:$0x2] %vm769, %v707
      %773 = vst.msk [vmem:[%s735 + $0x47] sm:$0x2] %vm769, %v709
      %774 = vst.msk [vmem:[%s735 + $0x5f] sm:$0x2] %vm769, %v711
      %775 = vst.msk [vmem:[%s735 + $0x77] sm:$0x2] %vm769, %v713
      %776 = vst.msk [vmem:[%s735 + $0x8f] sm:$0x2] %vm769, %v715
      %777 = vst.msk [vmem:[%s735 + $0xa7] sm:$0x2] %vm769, %v717
      %778 = vst.msk [vmem:[%s735 + $0xbf] sm:$0x2] %vm769, %v719
      %779 = vst.msk [vmem:[%s735 + $0xd7] sm:$0x2] %vm769, %v721
      %780 = vst.msk [vmem:[%s735 + $0xef] sm:$0x2] %vm769, %v723
      %781 = vst.msk [vmem:[%s735 + $0x107] sm:$0x2] %vm769, %v725
      %782 = vst.msk [vmem:[%s735 + $0x11f] sm:$0x2] %vm769, %v727
      %783 = vst.msk [vmem:[%s735 + $0x137] sm:$0x2] %vm769, %v729
      %784 = vst.msk [vmem:[%s735 + $0x14f] sm:$0x2] %vm769, %v731
      %785 = vst.msk [vmem:[%s735 + $0x167] sm:$0x2] %vm769, %v733
      %vm786 = vcmask 129030
      %787 = vst.msk [vmem:[%s735 + $0xb] sm:$0x40] %vm786, %v704
      %788 = vst.msk [vmem:[%s735 + $0x23] sm:$0x40] %vm786, %v706
      %789 = vst.msk [vmem:[%s735 + $0x3b] sm:$0x40] %vm786, %v708
      %790 = vst.msk [vmem:[%s735 + $0x53] sm:$0x40] %vm786, %v710
      %791 = vst.msk [vmem:[%s735 + $0x6b] sm:$0x40] %vm786, %v712
      %792 = vst.msk [vmem:[%s735 + $0x83] sm:$0x40] %vm786, %v714
      %793 = vst.msk [vmem:[%s735 + $0x9b] sm:$0x40] %vm786, %v716
      %794 = vst.msk [vmem:[%s735 + $0xb3] sm:$0x40] %vm786, %v718
      %795 = vst.msk [vmem:[%s735 + $0xcb] sm:$0x40] %vm786, %v720
      %796 = vst.msk [vmem:[%s735 + $0xe3] sm:$0x40] %vm786, %v722
      %797 = vst.msk [vmem:[%s735 + $0xfb] sm:$0x40] %vm786, %v724
      %798 = vst.msk [vmem:[%s735 + $0x113] sm:$0x40] %vm786, %v726
      %799 = vst.msk [vmem:[%s735 + $0x12b] sm:$0x40] %vm786, %v728
      %800 = vst.msk [vmem:[%s735 + $0x143] sm:$0x40] %vm786, %v730
      %801 = vst.msk [vmem:[%s735 + $0x15b] sm:$0x40] %vm786, %v732
      %802 = vst.msk [vmem:[%s735 + $0x173] sm:$0x40] %vm786, %v734
      %s803 = scalar_lea.vmem [#allocation2], 48
      %v804 = vld [vmem:[%s803] sm:$0xff]
      %v805 = vld [vmem:[%s803 + $0x8] sm:$0xff]
      %v806 = vld [vmem:[%s803 + $0x10] sm:$0x3]
      %807 = vst.msk [vmem:[#allocation2] sm:$0xff] %vm736, %v804
      %808 = vst.msk [vmem:[#allocation2 + $0x8] sm:$0xff] %vm736, %v805
      %vm809 = vcmask 123904
      %810 = vst.msk [vmem:[#allocation2 + $0x10] sm:$0x3] %vm809, %v806
      %s811 = scalar_lea.vmem [#allocation2], 360
      %v812 = vld [vmem:[%s811] sm:$0xff]
      %v813 = vld [vmem:[%s811 + $0x8] sm:$0xff]
      %v814 = vld [vmem:[%s811 + $0x10] sm:$0x3]
      %s815 = scalar_lea.vmem [#allocation2], 408
      %816 = vst.msk [vmem:[%s815] sm:$0xff] %vm736, %v812
      %817 = vst.msk [vmem:[%s815 + $0x8] sm:$0xff] %vm736, %v813
      %818 = vst.msk [vmem:[%s815 + $0x10] sm:$0x3] %vm809, %v814
      %v819 = vld [vmem:[#allocation2] ss:$2 sm:$0xff]
      %s820 = scalar_lea.vmem [#allocation2], 48
      %v821 = vld [vmem:[%s820] ss:$2 sm:$0xff]
      %s822 = scalar_lea.vmem [#allocation2], 96
      %v823 = vld [vmem:[%s822] ss:$2 sm:$0xff]
      %s824 = scalar_lea.vmem [#allocation2], 144
      %v825 = vld [vmem:[%s824] ss:$2 sm:$0xff]
      %s826 = scalar_lea.vmem [#allocation2], 192
      %v827 = vld [vmem:[%s826] ss:$2 sm:$0xff]
      %s828 = scalar_lea.vmem [#allocation2], 240
      %v829 = vld [vmem:[%s828] ss:$2 sm:$0xff]
      %s830 = scalar_lea.vmem [#allocation2], 288
      %v831 = vld [vmem:[%s830] ss:$2 sm:$0xff]
      %s832 = scalar_lea.vmem [#allocation2], 336
      %v833 = vld [vmem:[%s832] ss:$2 sm:$0xff]
      %834 = vst.msk [vmem:[#allocation3] sm:$0xff] %vm736, %v819
      %835 = vst.msk [vmem:[#allocation3 + $0x10] sm:$0xff] %vm736, %v821
      %836 = vst.msk [vmem:[#allocation3 + $0x20] sm:$0xff] %vm736, %v823
      %837 = vst.msk [vmem:[#allocation3 + $0x30] sm:$0xff] %vm736, %v825
      %838 = vst.msk [vmem:[#allocation3 + $0x40] sm:$0xff] %vm736, %v827
      %839 = vst.msk [vmem:[#allocation3 + $0x50] sm:$0xff] %vm736, %v829
      %840 = vst.msk [vmem:[#allocation3 + $0x60] sm:$0xff] %vm736, %v831
      %841 = vst.msk [vmem:[#allocation3 + $0x70] sm:$0xff] %vm736, %v833
      %s842 = scalar_lea.vmem [#allocation2], 1
      %v843 = vld [vmem:[%s842] ss:$2 sm:$0xff]
      %s844 = scalar_lea.vmem [#allocation2], 49
      %v845 = vld [vmem:[%s844] ss:$2 sm:$0xff]
      %s846 = scalar_lea.vmem [#allocation2], 97
      %v847 = vld [vmem:[%s846] ss:$2 sm:$0xff]
      %s848 = scalar_lea.vmem [#allocation2], 145
      %v849 = vld [vmem:[%s848] ss:$2 sm:$0xff]
      %s850 = scalar_lea.vmem [#allocation2], 193
      %v851 = vld [vmem:[%s850] ss:$2 sm:$0xff]
      %s852 = scalar_lea.vmem [#allocation2], 241
      %v853 = vld [vmem:[%s852] ss:$2 sm:$0xff]
      %s854 = scalar_lea.vmem [#allocation2], 289
      %v855 = vld [vmem:[%s854] ss:$2 sm:$0xff]
      %s856 = scalar_lea.vmem [#allocation2], 337
      %v857 = vld [vmem:[%s856] ss:$2 sm:$0xff]
      %866 = vrot.lane.b32.xlu0 %v843, 16
      %v867 = vpop.permute.xlu0 %866
      %868 = vrot.lane.b32.xlu0 %v845, 16
      %v869 = vpop.permute.xlu0 %868
      %870 = vrot.lane.b32.xlu0 %v847, 16
      %v871 = vpop.permute.xlu0 %870
      %872 = vrot.lane.b32.xlu0 %v849, 16
      %v873 = vpop.permute.xlu0 %872
      %874 = vrot.lane.b32.xlu0 %v851, 16
      %v875 = vpop.permute.xlu0 %874
      %876 = vrot.lane.b32.xlu0 %v853, 16
      %v877 = vpop.permute.xlu0 %876
      %878 = vrot.lane.b32.xlu0 %v855, 16
      %v879 = vpop.permute.xlu0 %878
      %880 = vrot.lane.b32.xlu0 %v857, 16
      %v881 = vpop.permute.xlu0 %880
      %vm890 = vcmask 261248
      %891 = vst.msk [vmem:[#allocation3] sm:$0xff] %vm890, %v867
      %892 = vst.msk [vmem:[#allocation3 + $0x10] sm:$0xff] %vm890, %v869
      %893 = vst.msk [vmem:[#allocation3 + $0x20] sm:$0xff] %vm890, %v871
      %894 = vst.msk [vmem:[#allocation3 + $0x30] sm:$0xff] %vm890, %v873
      %895 = vst.msk [vmem:[#allocation3 + $0x40] sm:$0xff] %vm890, %v875
      %896 = vst.msk [vmem:[#allocation3 + $0x50] sm:$0xff] %vm890, %v877
      %897 = vst.msk [vmem:[#allocation3 + $0x60] sm:$0xff] %vm890, %v879
      %898 = vst.msk [vmem:[#allocation3 + $0x70] sm:$0xff] %vm890, %v881
      %s899 = scalar_lea.vmem [#allocation2], 2
      %v900 = vld [vmem:[%s899] ss:$2 sm:$0xff]
      %s901 = scalar_lea.vmem [#allocation2], 50
      %v902 = vld [vmem:[%s901] ss:$2 sm:$0xff]
      %s903 = scalar_lea.vmem [#allocation2], 98
      %v904 = vld [vmem:[%s903] ss:$2 sm:$0xff]
      %s905 = scalar_lea.vmem [#allocation2], 146
      %v906 = vld [vmem:[%s905] ss:$2 sm:$0xff]
      %s907 = scalar_lea.vmem [#allocation2], 194
      %v908 = vld [vmem:[%s907] ss:$2 sm:$0xff]
      %s909 = scalar_lea.vmem [#allocation2], 242
      %v910 = vld [vmem:[%s909] ss:$2 sm:$0xff]
      %s911 = scalar_lea.vmem [#allocation2], 290
      %v912 = vld [vmem:[%s911] ss:$2 sm:$0xff]
      %s913 = scalar_lea.vmem [#allocation2], 338
      %v914 = vld [vmem:[%s913] ss:$2 sm:$0xff]
      %923 = vrot.lane.b32.xlu0 %v900, 32
      %v924 = vpop.permute.xlu0 %923
      %925 = vrot.lane.b32.xlu0 %v902, 32
      %v926 = vpop.permute.xlu0 %925
      %927 = vrot.lane.b32.xlu0 %v904, 32
      %v928 = vpop.permute.xlu0 %927
      %929 = vrot.lane.b32.xlu0 %v906, 32
      %v930 = vpop.permute.xlu0 %929
      %931 = vrot.lane.b32.xlu0 %v908, 32
      %v932 = vpop.permute.xlu0 %931
      %933 = vrot.lane.b32.xlu0 %v910, 32
      %v934 = vpop.permute.xlu0 %933
      %935 = vrot.lane.b32.xlu0 %v912, 32
      %v936 = vpop.permute.xlu0 %935
      %937 = vrot.lane.b32.xlu0 %v914, 32
      %v938 = vpop.permute.xlu0 %937
      %vm947 = vcmask 392448
      %948 = vst.msk [vmem:[#allocation3] sm:$0xff] %vm947, %v924
      %949 = vst.msk [vmem:[#allocation3 + $0x10] sm:$0xff] %vm947, %v926
      %950 = vst.msk [vmem:[#allocation3 + $0x20] sm:$0xff] %vm947, %v928
      %951 = vst.msk [vmem:[#allocation3 + $0x30] sm:$0xff] %vm947, %v930
      %952 = vst.msk [vmem:[#allocation3 + $0x40] sm:$0xff] %vm947, %v932
      %953 = vst.msk [vmem:[#allocation3 + $0x50] sm:$0xff] %vm947, %v934
      %954 = vst.msk [vmem:[#allocation3 + $0x60] sm:$0xff] %vm947, %v936
      %955 = vst.msk [vmem:[#allocation3 + $0x70] sm:$0xff] %vm947, %v938
      %s956 = scalar_lea.vmem [#allocation2], 3
      %v957 = vld [vmem:[%s956] ss:$2 sm:$0xff]
      %s958 = scalar_lea.vmem [#allocation2], 51
      %v959 = vld [vmem:[%s958] ss:$2 sm:$0xff]
      %s960 = scalar_lea.vmem [#allocation2], 99
      %v961 = vld [vmem:[%s960] ss:$2 sm:$0xff]
      %s962 = scalar_lea.vmem [#allocation2], 147
      %v963 = vld [vmem:[%s962] ss:$2 sm:$0xff]
      %s964 = scalar_lea.vmem [#allocation2], 195
      %v965 = vld [vmem:[%s964] ss:$2 sm:$0xff]
      %s966 = scalar_lea.vmem [#allocation2], 243
      %v967 = vld [vmem:[%s966] ss:$2 sm:$0xff]
      %s968 = scalar_lea.vmem [#allocation2], 291
      %v969 = vld [vmem:[%s968] ss:$2 sm:$0xff]
      %s970 = scalar_lea.vmem [#allocation2], 339
      %v971 = vld [vmem:[%s970] ss:$2 sm:$0xff]
      %980 = vrot.lane.b32.xlu0 %v957, 48
      %v981 = vpop.permute.xlu0 %980
      %982 = vrot.lane.b32.xlu0 %v959, 48
      %v983 = vpop.permute.xlu0 %982
      %984 = vrot.lane.b32.xlu0 %v961, 48
      %v985 = vpop.permute.xlu0 %984
      %986 = vrot.lane.b32.xlu0 %v963, 48
      %v987 = vpop.permute.xlu0 %986
      %988 = vrot.lane.b32.xlu0 %v965, 48
      %v989 = vpop.permute.xlu0 %988
      %990 = vrot.lane.b32.xlu0 %v967, 48
      %v991 = vpop.permute.xlu0 %990
      %992 = vrot.lane.b32.xlu0 %v969, 48
      %v993 = vpop.permute.xlu0 %992
      %994 = vrot.lane.b32.xlu0 %v971, 48
      %v995 = vpop.permute.xlu0 %994
      %vm1004 = vcmask 523648
      %1005 = vst.msk [vmem:[#allocation3] sm:$0xff] %vm1004, %v981
      %1006 = vst.msk [vmem:[#allocation3 + $0x10] sm:$0xff] %vm1004, %v983
      %1007 = vst.msk [vmem:[#allocation3 + $0x20] sm:$0xff] %vm1004, %v985
      %1008 = vst.msk [vmem:[#allocation3 + $0x30] sm:$0xff] %vm1004, %v987
      %1009 = vst.msk [vmem:[#allocation3 + $0x40] sm:$0xff] %vm1004, %v989
      %1010 = vst.msk [vmem:[#allocation3 + $0x50] sm:$0xff] %vm1004, %v991
      %1011 = vst.msk [vmem:[#allocation3 + $0x60] sm:$0xff] %vm1004, %v993
      %1012 = vst.msk [vmem:[#allocation3 + $0x70] sm:$0xff] %vm1004, %v995
      %v1013 = vld [vmem:[%s735] ss:$2 sm:$0xff]
      %s1014 = scalar_lea.vmem %s735, 48 [#allocation2]
      %v1015 = vld [vmem:[%s1014] ss:$2 sm:$0xff]
      %s1016 = scalar_lea.vmem %s735, 96 [#allocation2]
      %v1017 = vld [vmem:[%s1016] ss:$2 sm:$0xff]
      %s1018 = scalar_lea.vmem %s735, 144 [#allocation2]
      %v1019 = vld [vmem:[%s1018] ss:$2 sm:$0xff]
      %s1020 = scalar_lea.vmem %s735, 192 [#allocation2]
      %v1021 = vld [vmem:[%s1020] ss:$2 sm:$0xff]
      %s1022 = scalar_lea.vmem %s735, 240 [#allocation2]
      %v1023 = vld [vmem:[%s1022] ss:$2 sm:$0xff]
      %s1024 = scalar_lea.vmem %s735, 288 [#allocation2]
      %v1025 = vld [vmem:[%s1024] ss:$2 sm:$0xff]
      %s1026 = scalar_lea.vmem %s735, 336 [#allocation2]
      %v1027 = vld [vmem:[%s1026] ss:$2 sm:$0xff]
      %1036 = vrot.lane.b32.xlu0 %v1013, 64
      %v1037 = vpop.permute.xlu0 %1036
      %1038 = vrot.lane.b32.xlu0 %v1015, 64
      %v1039 = vpop.permute.xlu0 %1038
      %1040 = vrot.lane.b32.xlu0 %v1017, 64
      %v1041 = vpop.permute.xlu0 %1040
      %1042 = vrot.lane.b32.xlu0 %v1019, 64
      %v1043 = vpop.permute.xlu0 %1042
      %1044 = vrot.lane.b32.xlu0 %v1021, 64
      %v1045 = vpop.permute.xlu0 %1044
      %1046 = vrot.lane.b32.xlu0 %v1023, 64
      %v1047 = vpop.permute.xlu0 %1046
      %1048 = vrot.lane.b32.xlu0 %v1025, 64
      %v1049 = vpop.permute.xlu0 %1048
      %1050 = vrot.lane.b32.xlu0 %v1027, 64
      %v1051 = vpop.permute.xlu0 %1050
      %vm1060 = vcmask 654848
      %1061 = vst.msk [vmem:[#allocation3] sm:$0xff] %vm1060, %v1037
      %1062 = vst.msk [vmem:[#allocation3 + $0x10] sm:$0xff] %vm1060, %v1039
      %1063 = vst.msk [vmem:[#allocation3 + $0x20] sm:$0xff] %vm1060, %v1041
      %1064 = vst.msk [vmem:[#allocation3 + $0x30] sm:$0xff] %vm1060, %v1043
      %1065 = vst.msk [vmem:[#allocation3 + $0x40] sm:$0xff] %vm1060, %v1045
      %1066 = vst.msk [vmem:[#allocation3 + $0x50] sm:$0xff] %vm1060, %v1047
      %1067 = vst.msk [vmem:[#allocation3 + $0x60] sm:$0xff] %vm1060, %v1049
      %1068 = vst.msk [vmem:[#allocation3 + $0x70] sm:$0xff] %vm1060, %v1051
      %s1069 = scalar_lea.vmem %s735, 1 [#allocation2]
      %v1070 = vld [vmem:[%s1069] ss:$2 sm:$0xff]
      %s1071 = scalar_lea.vmem %s735, 49 [#allocation2]
      %v1072 = vld [vmem:[%s1071] ss:$2 sm:$0xff]
      %s1073 = scalar_lea.vmem %s735, 97 [#allocation2]
      %v1074 = vld [vmem:[%s1073] ss:$2 sm:$0xff]
      %s1075 = scalar_lea.vmem %s735, 145 [#allocation2]
      %v1076 = vld [vmem:[%s1075] ss:$2 sm:$0xff]
      %s1077 = scalar_lea.vmem %s735, 193 [#allocation2]
      %v1078 = vld [vmem:[%s1077] ss:$2 sm:$0xff]
      %s1079 = scalar_lea.vmem %s735, 241 [#allocation2]
      %v1080 = vld [vmem:[%s1079] ss:$2 sm:$0xff]
      %s1081 = scalar_lea.vmem %s735, 289 [#allocation2]
      %v1082 = vld [vmem:[%s1081] ss:$2 sm:$0xff]
      %s1083 = scalar_lea.vmem %s735, 337 [#allocation2]
      %v1084 = vld [vmem:[%s1083] ss:$2 sm:$0xff]
      %1093 = vrot.lane.b32.xlu0 %v1070, 80
      %v1094 = vpop.permute.xlu0 %1093
      %1095 = vrot.lane.b32.xlu0 %v1072, 80
      %v1096 = vpop.permute.xlu0 %1095
      %1097 = vrot.lane.b32.xlu0 %v1074, 80
      %v1098 = vpop.permute.xlu0 %1097
      %1099 = vrot.lane.b32.xlu0 %v1076, 80
      %v1100 = vpop.permute.xlu0 %1099
      %1101 = vrot.lane.b32.xlu0 %v1078, 80
      %v1102 = vpop.permute.xlu0 %1101
      %1103 = vrot.lane.b32.xlu0 %v1080, 80
      %v1104 = vpop.permute.xlu0 %1103
      %1105 = vrot.lane.b32.xlu0 %v1082, 80
      %v1106 = vpop.permute.xlu0 %1105
      %1107 = vrot.lane.b32.xlu0 %v1084, 80
      %v1108 = vpop.permute.xlu0 %1107
      %vm1117 = vcmask 786048
      %1118 = vst.msk [vmem:[#allocation3] sm:$0xff] %vm1117, %v1094
      %1119 = vst.msk [vmem:[#allocation3 + $0x10] sm:$0xff] %vm1117, %v1096
      %1120 = vst.msk [vmem:[#allocation3 + $0x20] sm:$0xff] %vm1117, %v1098
      %1121 = vst.msk [vmem:[#allocation3 + $0x30] sm:$0xff] %vm1117, %v1100
      %1122 = vst.msk [vmem:[#allocation3 + $0x40] sm:$0xff] %vm1117, %v1102
      %1123 = vst.msk [vmem:[#allocation3 + $0x50] sm:$0xff] %vm1117, %v1104
      %1124 = vst.msk [vmem:[#allocation3 + $0x60] sm:$0xff] %vm1117, %v1106
      %1125 = vst.msk [vmem:[#allocation3 + $0x70] sm:$0xff] %vm1117, %v1108
      %s1126 = scalar_lea.vmem %s735, 2 [#allocation2]
      %v1127 = vld [vmem:[%s1126] ss:$2 sm:$0xff]
      %s1128 = scalar_lea.vmem %s735, 50 [#allocation2]
      %v1129 = vld [vmem:[%s1128] ss:$2 sm:$0xff]
      %s1130 = scalar_lea.vmem %s735, 98 [#allocation2]
      %v1131 = vld [vmem:[%s1130] ss:$2 sm:$0xff]
      %s1132 = scalar_lea.vmem %s735, 146 [#allocation2]
      %v1133 = vld [vmem:[%s1132] ss:$2 sm:$0xff]
      %s1134 = scalar_lea.vmem %s735, 194 [#allocation2]
      %v1135 = vld [vmem:[%s1134] ss:$2 sm:$0xff]
      %s1136 = scalar_lea.vmem %s735, 242 [#allocation2]
      %v1137 = vld [vmem:[%s1136] ss:$2 sm:$0xff]
      %s1138 = scalar_lea.vmem %s735, 290 [#allocation2]
      %v1139 = vld [vmem:[%s1138] ss:$2 sm:$0xff]
      %s1140 = scalar_lea.vmem %s735, 338 [#allocation2]
      %v1141 = vld [vmem:[%s1140] ss:$2 sm:$0xff]
      %1150 = vrot.lane.b32.xlu0 %v1127, 96
      %v1151 = vpop.permute.xlu0 %1150
      %1152 = vrot.lane.b32.xlu0 %v1129, 96
      %v1153 = vpop.permute.xlu0 %1152
      %1154 = vrot.lane.b32.xlu0 %v1131, 96
      %v1155 = vpop.permute.xlu0 %1154
      %1156 = vrot.lane.b32.xlu0 %v1133, 96
      %v1157 = vpop.permute.xlu0 %1156
      %1158 = vrot.lane.b32.xlu0 %v1135, 96
      %v1159 = vpop.permute.xlu0 %1158
      %1160 = vrot.lane.b32.xlu0 %v1137, 96
      %v1161 = vpop.permute.xlu0 %1160
      %1162 = vrot.lane.b32.xlu0 %v1139, 96
      %v1163 = vpop.permute.xlu0 %1162
      %1164 = vrot.lane.b32.xlu0 %v1141, 96
      %v1165 = vpop.permute.xlu0 %1164
      %vm1174 = vcmask 917248
      %1175 = vst.msk [vmem:[#allocation3] sm:$0xff] %vm1174, %v1151
      %1176 = vst.msk [vmem:[#allocation3 + $0x10] sm:$0xff] %vm1174, %v1153
      %1177 = vst.msk [vmem:[#allocation3 + $0x20] sm:$0xff] %vm1174, %v1155
      %1178 = vst.msk [vmem:[#allocation3 + $0x30] sm:$0xff] %vm1174, %v1157
      %1179 = vst.msk [vmem:[#allocation3 + $0x40] sm:$0xff] %vm1174, %v1159
      %1180 = vst.msk [vmem:[#allocation3 + $0x50] sm:$0xff] %vm1174, %v1161
      %1181 = vst.msk [vmem:[#allocation3 + $0x60] sm:$0xff] %vm1174, %v1163
      %1182 = vst.msk [vmem:[#allocation3 + $0x70] sm:$0xff] %vm1174, %v1165
      %s1183 = scalar_lea.vmem %s735, 3 [#allocation2]
      %v1184 = vld [vmem:[%s1183] ss:$2 sm:$0xff]
      %s1185 = scalar_lea.vmem %s735, 51 [#allocation2]
      %v1186 = vld [vmem:[%s1185] ss:$2 sm:$0xff]
      %s1187 = scalar_lea.vmem %s735, 99 [#allocation2]
      %v1188 = vld [vmem:[%s1187] ss:$2 sm:$0xff]
      %s1189 = scalar_lea.vmem %s735, 147 [#allocation2]
      %v1190 = vld [vmem:[%s1189] ss:$2 sm:$0xff]
      %s1191 = scalar_lea.vmem %s735, 195 [#allocation2]
      %v1192 = vld [vmem:[%s1191] ss:$2 sm:$0xff]
      %s1193 = scalar_lea.vmem %s735, 243 [#allocation2]
      %v1194 = vld [vmem:[%s1193] ss:$2 sm:$0xff]
      %s1195 = scalar_lea.vmem %s735, 291 [#allocation2]
      %v1196 = vld [vmem:[%s1195] ss:$2 sm:$0xff]
      %s1197 = scalar_lea.vmem %s735, 339 [#allocation2]
      %v1198 = vld [vmem:[%s1197] ss:$2 sm:$0xff]
      %1207 = vrot.lane.b32.xlu0 %v1184, 112
      %v1208 = vpop.permute.xlu0 %1207
      %1209 = vrot.lane.b32.xlu0 %v1186, 112
      %v1210 = vpop.permute.xlu0 %1209
      %1211 = vrot.lane.b32.xlu0 %v1188, 112
      %v1212 = vpop.permute.xlu0 %1211
      %1213 = vrot.lane.b32.xlu0 %v1190, 112
      %v1214 = vpop.permute.xlu0 %1213
      %1215 = vrot.lane.b32.xlu0 %v1192, 112
      %v1216 = vpop.permute.xlu0 %1215
      %1217 = vrot.lane.b32.xlu0 %v1194, 112
      %v1218 = vpop.permute.xlu0 %1217
      %1219 = vrot.lane.b32.xlu0 %v1196, 112
      %v1220 = vpop.permute.xlu0 %1219
      %1221 = vrot.lane.b32.xlu0 %v1198, 112
      %v1222 = vpop.permute.xlu0 %1221
      %vm1231 = vcmask 1048448
      %1232 = vst.msk [vmem:[#allocation3] sm:$0xff] %vm1231, %v1208
      %1233 = vst.msk [vmem:[#allocation3 + $0x10] sm:$0xff] %vm1231, %v1210
      %1234 = vst.msk [vmem:[#allocation3 + $0x20] sm:$0xff] %vm1231, %v1212
      %1235 = vst.msk [vmem:[#allocation3 + $0x30] sm:$0xff] %vm1231, %v1214
      %1236 = vst.msk [vmem:[#allocation3 + $0x40] sm:$0xff] %vm1231, %v1216
      %1237 = vst.msk [vmem:[#allocation3 + $0x50] sm:$0xff] %vm1231, %v1218
      %1238 = vst.msk [vmem:[#allocation3 + $0x60] sm:$0xff] %vm1231, %v1220
      %1239 = vst.msk [vmem:[#allocation3 + $0x70] sm:$0xff] %vm1231, %v1222
      %v1240 = vld [vmem:[%s803] ss:$2 sm:$0xff]
      %s1241 = scalar_lea.vmem %s803, 48 [#allocation2]
      %v1242 = vld [vmem:[%s1241] ss:$2 sm:$0xff]
      %s1243 = scalar_lea.vmem %s803, 96 [#allocation2]
      %v1244 = vld [vmem:[%s1243] ss:$2 sm:$0xff]
      %s1245 = scalar_lea.vmem %s803, 144 [#allocation2]
      %v1246 = vld [vmem:[%s1245] ss:$2 sm:$0xff]
      %s1247 = scalar_lea.vmem %s803, 192 [#allocation2]
      %v1248 = vld [vmem:[%s1247] ss:$2 sm:$0xff]
      %s1249 = scalar_lea.vmem %s803, 240 [#allocation2]
      %v1250 = vld [vmem:[%s1249] ss:$2 sm:$0xff]
      %s1251 = scalar_lea.vmem %s803, 288 [#allocation2]
      %v1252 = vld [vmem:[%s1251] ss:$2 sm:$0xff]
      %s1253 = scalar_lea.vmem %s803, 336 [#allocation2]
      %v1254 = vld [vmem:[%s1253] ss:$2 sm:$0xff]
      %1255 = vst.msk [vmem:[#allocation3 + $0x8] sm:$0xff] %vm736, %v1240
      %1256 = vst.msk [vmem:[#allocation3 + $0x18] sm:$0xff] %vm736, %v1242
      %1257 = vst.msk [vmem:[#allocation3 + $0x28] sm:$0xff] %vm736, %v1244
      %1258 = vst.msk [vmem:[#allocation3 + $0x38] sm:$0xff] %vm736, %v1246
      %1259 = vst.msk [vmem:[#allocation3 + $0x48] sm:$0xff] %vm736, %v1248
      %1260 = vst.msk [vmem:[#allocation3 + $0x58] sm:$0xff] %vm736, %v1250
      %1261 = vst.msk [vmem:[#allocation3 + $0x68] sm:$0xff] %vm736, %v1252
      %1262 = vst.msk [vmem:[#allocation3 + $0x78] sm:$0xff] %vm736, %v1254
      %s1263 = scalar_lea.vmem %s803, 1 [#allocation2]
      %v1264 = vld [vmem:[%s1263] ss:$2 sm:$0xff]
      %s1265 = scalar_lea.vmem %s803, 49 [#allocation2]
      %v1266 = vld [vmem:[%s1265] ss:$2 sm:$0xff]
      %s1267 = scalar_lea.vmem %s803, 97 [#allocation2]
      %v1268 = vld [vmem:[%s1267] ss:$2 sm:$0xff]
      %s1269 = scalar_lea.vmem %s803, 145 [#allocation2]
      %v1270 = vld [vmem:[%s1269] ss:$2 sm:$0xff]
      %s1271 = scalar_lea.vmem %s803, 193 [#allocation2]
      %v1272 = vld [vmem:[%s1271] ss:$2 sm:$0xff]
      %s1273 = scalar_lea.vmem %s803, 241 [#allocation2]
      %v1274 = vld [vmem:[%s1273] ss:$2 sm:$0xff]
      %s1275 = scalar_lea.vmem %s803, 289 [#allocation2]
      %v1276 = vld [vmem:[%s1275] ss:$2 sm:$0xff]
      %s1277 = scalar_lea.vmem %s803, 337 [#allocation2]
      %v1278 = vld [vmem:[%s1277] ss:$2 sm:$0xff]
      %1287 = vrot.lane.b32.xlu0 %v1264, 16
      %v1288 = vpop.permute.xlu0 %1287
      %1289 = vrot.lane.b32.xlu0 %v1266, 16
      %v1290 = vpop.permute.xlu0 %1289
      %1291 = vrot.lane.b32.xlu0 %v1268, 16
      %v1292 = vpop.permute.xlu0 %1291
      %1293 = vrot.lane.b32.xlu0 %v1270, 16
      %v1294 = vpop.permute.xlu0 %1293
      %1295 = vrot.lane.b32.xlu0 %v1272, 16
      %v1296 = vpop.permute.xlu0 %1295
      %1297 = vrot.lane.b32.xlu0 %v1274, 16
      %v1298 = vpop.permute.xlu0 %1297
      %1299 = vrot.lane.b32.xlu0 %v1276, 16
      %v1300 = vpop.permute.xlu0 %1299
      %1301 = vrot.lane.b32.xlu0 %v1278, 16
      %v1302 = vpop.permute.xlu0 %1301
      %1311 = vst.msk [vmem:[#allocation3 + $0x8] sm:$0xff] %vm890, %v1288
      %1312 = vst.msk [vmem:[#allocation3 + $0x18] sm:$0xff] %vm890, %v1290
      %1313 = vst.msk [vmem:[#allocation3 + $0x28] sm:$0xff] %vm890, %v1292
      %1314 = vst.msk [vmem:[#allocation3 + $0x38] sm:$0xff] %vm890, %v1294
      %1315 = vst.msk [vmem:[#allocation3 + $0x48] sm:$0xff] %vm890, %v1296
      %1316 = vst.msk [vmem:[#allocation3 + $0x58] sm:$0xff] %vm890, %v1298
      %1317 = vst.msk [vmem:[#allocation3 + $0x68] sm:$0xff] %vm890, %v1300
      %1318 = vst.msk [vmem:[#allocation3 + $0x78] sm:$0xff] %vm890, %v1302
      %s1319 = scalar_lea.vmem %s803, 2 [#allocation2]
      %v1320 = vld [vmem:[%s1319] ss:$2 sm:$0xff]
      %s1321 = scalar_lea.vmem %s803, 50 [#allocation2]
      %v1322 = vld [vmem:[%s1321] ss:$2 sm:$0xff]
      %s1323 = scalar_lea.vmem %s803, 98 [#allocation2]
      %v1324 = vld [vmem:[%s1323] ss:$2 sm:$0xff]
      %s1325 = scalar_lea.vmem %s803, 146 [#allocation2]
      %v1326 = vld [vmem:[%s1325] ss:$2 sm:$0xff]
      %s1327 = scalar_lea.vmem %s803, 194 [#allocation2]
      %v1328 = vld [vmem:[%s1327] ss:$2 sm:$0xff]
      %s1329 = scalar_lea.vmem %s803, 242 [#allocation2]
      %v1330 = vld [vmem:[%s1329] ss:$2 sm:$0xff]
      %s1331 = scalar_lea.vmem %s803, 290 [#allocation2]
      %v1332 = vld [vmem:[%s1331] ss:$2 sm:$0xff]
      %s1333 = scalar_lea.vmem %s803, 338 [#allocation2]
      %v1334 = vld [vmem:[%s1333] ss:$2 sm:$0xff]
      %1343 = vrot.lane.b32.xlu0 %v1320, 32
      %v1344 = vpop.permute.xlu0 %1343
      %1345 = vrot.lane.b32.xlu0 %v1322, 32
      %v1346 = vpop.permute.xlu0 %1345
      %1347 = vrot.lane.b32.xlu0 %v1324, 32
      %v1348 = vpop.permute.xlu0 %1347
      %1349 = vrot.lane.b32.xlu0 %v1326, 32
      %v1350 = vpop.permute.xlu0 %1349
      %1351 = vrot.lane.b32.xlu0 %v1328, 32
      %v1352 = vpop.permute.xlu0 %1351
      %1353 = vrot.lane.b32.xlu0 %v1330, 32
      %v1354 = vpop.permute.xlu0 %1353
      %1355 = vrot.lane.b32.xlu0 %v1332, 32
      %v1356 = vpop.permute.xlu0 %1355
      %1357 = vrot.lane.b32.xlu0 %v1334, 32
      %v1358 = vpop.permute.xlu0 %1357
      %1367 = vst.msk [vmem:[#allocation3 + $0x8] sm:$0xff] %vm947, %v1344
      %1368 = vst.msk [vmem:[#allocation3 + $0x18] sm:$0xff] %vm947, %v1346
      %1369 = vst.msk [vmem:[#allocation3 + $0x28] sm:$0xff] %vm947, %v1348
      %1370 = vst.msk [vmem:[#allocation3 + $0x38] sm:$0xff] %vm947, %v1350
      %1371 = vst.msk [vmem:[#allocation3 + $0x48] sm:$0xff] %vm947, %v1352
      %1372 = vst.msk [vmem:[#allocation3 + $0x58] sm:$0xff] %vm947, %v1354
      %1373 = vst.msk [vmem:[#allocation3 + $0x68] sm:$0xff] %vm947, %v1356
      %1374 = vst.msk [vmem:[#allocation3 + $0x78] sm:$0xff] %vm947, %v1358
      %s1375 = scalar_lea.vmem %s803, 3 [#allocation2]
      %v1376 = vld [vmem:[%s1375] ss:$2 sm:$0xff]
      %s1377 = scalar_lea.vmem %s803, 51 [#allocation2]
      %v1378 = vld [vmem:[%s1377] ss:$2 sm:$0xff]
      %s1379 = scalar_lea.vmem %s803, 99 [#allocation2]
      %v1380 = vld [vmem:[%s1379] ss:$2 sm:$0xff]
      %s1381 = scalar_lea.vmem %s803, 147 [#allocation2]
      %v1382 = vld [vmem:[%s1381] ss:$2 sm:$0xff]
      %s1383 = scalar_lea.vmem %s803, 195 [#allocation2]
      %v1384 = vld [vmem:[%s1383] ss:$2 sm:$0xff]
      %s1385 = scalar_lea.vmem %s803, 243 [#allocation2]
      %v1386 = vld [vmem:[%s1385] ss:$2 sm:$0xff]
      %s1387 = scalar_lea.vmem %s803, 291 [#allocation2]
      %v1388 = vld [vmem:[%s1387] ss:$2 sm:$0xff]
      %s1389 = scalar_lea.vmem %s803, 339 [#allocation2]
      %v1390 = vld [vmem:[%s1389] ss:$2 sm:$0xff]
      %1399 = vrot.lane.b32.xlu0 %v1376, 48
      %v1400 = vpop.permute.xlu0 %1399
      %1401 = vrot.lane.b32.xlu0 %v1378, 48
      %v1402 = vpop.permute.xlu0 %1401
      %1403 = vrot.lane.b32.xlu0 %v1380, 48
      %v1404 = vpop.permute.xlu0 %1403
      %1405 = vrot.lane.b32.xlu0 %v1382, 48
      %v1406 = vpop.permute.xlu0 %1405
      %1407 = vrot.lane.b32.xlu0 %v1384, 48
      %v1408 = vpop.permute.xlu0 %1407
      %1409 = vrot.lane.b32.xlu0 %v1386, 48
      %v1410 = vpop.permute.xlu0 %1409
      %1411 = vrot.lane.b32.xlu0 %v1388, 48
      %v1412 = vpop.permute.xlu0 %1411
      %1413 = vrot.lane.b32.xlu0 %v1390, 48
      %v1414 = vpop.permute.xlu0 %1413
      %1423 = vst.msk [vmem:[#allocation3 + $0x8] sm:$0xff] %vm1004, %v1400
      %1424 = vst.msk [vmem:[#allocation3 + $0x18] sm:$0xff] %vm1004, %v1402
      %1425 = vst.msk [vmem:[#allocation3 + $0x28] sm:$0xff] %vm1004, %v1404
      %1426 = vst.msk [vmem:[#allocation3 + $0x38] sm:$0xff] %vm1004, %v1406
      %1427 = vst.msk [vmem:[#allocation3 + $0x48] sm:$0xff] %vm1004, %v1408
      %1428 = vst.msk [vmem:[#allocation3 + $0x58] sm:$0xff] %vm1004, %v1410
      %1429 = vst.msk [vmem:[#allocation3 + $0x68] sm:$0xff] %vm1004, %v1412
      %1430 = vst.msk [vmem:[#allocation3 + $0x78] sm:$0xff] %vm1004, %v1414
      %s1431 = scalar_lea.vmem [#allocation2], 72
      %v1432 = vld [vmem:[%s1431] ss:$2 sm:$0xff]
      %s1433 = scalar_lea.vmem %s1431, 48 [#allocation2]
      %v1434 = vld [vmem:[%s1433] ss:$2 sm:$0xff]
      %s1435 = scalar_lea.vmem %s1431, 96 [#allocation2]
      %v1436 = vld [vmem:[%s1435] ss:$2 sm:$0xff]
      %s1437 = scalar_lea.vmem %s1431, 144 [#allocation2]
      %v1438 = vld [vmem:[%s1437] ss:$2 sm:$0xff]
      %s1439 = scalar_lea.vmem %s1431, 192 [#allocation2]
      %v1440 = vld [vmem:[%s1439] ss:$2 sm:$0xff]
      %s1441 = scalar_lea.vmem %s1431, 240 [#allocation2]
      %v1442 = vld [vmem:[%s1441] ss:$2 sm:$0xff]
      %s1443 = scalar_lea.vmem %s1431, 288 [#allocation2]
      %v1444 = vld [vmem:[%s1443] ss:$2 sm:$0xff]
      %s1445 = scalar_lea.vmem %s1431, 336 [#allocation2]
      %v1446 = vld [vmem:[%s1445] ss:$2 sm:$0xff]
      %1455 = vrot.lane.b32.xlu0 %v1432, 64
      %v1456 = vpop.permute.xlu0 %1455
      %1457 = vrot.lane.b32.xlu0 %v1434, 64
      %v1458 = vpop.permute.xlu0 %1457
      %1459 = vrot.lane.b32.xlu0 %v1436, 64
      %v1460 = vpop.permute.xlu0 %1459
      %1461 = vrot.lane.b32.xlu0 %v1438, 64
      %v1462 = vpop.permute.xlu0 %1461
      %1463 = vrot.lane.b32.xlu0 %v1440, 64
      %v1464 = vpop.permute.xlu0 %1463
      %1465 = vrot.lane.b32.xlu0 %v1442, 64
      %v1466 = vpop.permute.xlu0 %1465
      %1467 = vrot.lane.b32.xlu0 %v1444, 64
      %v1468 = vpop.permute.xlu0 %1467
      %1469 = vrot.lane.b32.xlu0 %v1446, 64
      %v1470 = vpop.permute.xlu0 %1469
      %1479 = vst.msk [vmem:[#allocation3 + $0x8] sm:$0xff] %vm1060, %v1456
      %1480 = vst.msk [vmem:[#allocation3 + $0x18] sm:$0xff] %vm1060, %v1458
      %1481 = vst.msk [vmem:[#allocation3 + $0x28] sm:$0xff] %vm1060, %v1460
      %1482 = vst.msk [vmem:[#allocation3 + $0x38] sm:$0xff] %vm1060, %v1462
      %1483 = vst.msk [vmem:[#allocation3 + $0x48] sm:$0xff] %vm1060, %v1464
      %1484 = vst.msk [vmem:[#allocation3 + $0x58] sm:$0xff] %vm1060, %v1466
      %1485 = vst.msk [vmem:[#allocation3 + $0x68] sm:$0xff] %vm1060, %v1468
      %1486 = vst.msk [vmem:[#allocation3 + $0x78] sm:$0xff] %vm1060, %v1470
      %s1487 = scalar_lea.vmem %s1431, 1 [#allocation2]
      %v1488 = vld [vmem:[%s1487] ss:$2 sm:$0xff]
      %s1489 = scalar_lea.vmem %s1431, 49 [#allocation2]
      %v1490 = vld [vmem:[%s1489] ss:$2 sm:$0xff]
      %s1491 = scalar_lea.vmem %s1431, 97 [#allocation2]
      %v1492 = vld [vmem:[%s1491] ss:$2 sm:$0xff]
      %s1493 = scalar_lea.vmem %s1431, 145 [#allocation2]
      %v1494 = vld [vmem:[%s1493] ss:$2 sm:$0xff]
      %s1495 = scalar_lea.vmem %s1431, 193 [#allocation2]
      %v1496 = vld [vmem:[%s1495] ss:$2 sm:$0xff]
      %s1497 = scalar_lea.vmem %s1431, 241 [#allocation2]
      %v1498 = vld [vmem:[%s1497] ss:$2 sm:$0xff]
      %s1499 = scalar_lea.vmem %s1431, 289 [#allocation2]
      %v1500 = vld [vmem:[%s1499] ss:$2 sm:$0xff]
      %s1501 = scalar_lea.vmem %s1431, 337 [#allocation2]
      %v1502 = vld [vmem:[%s1501] ss:$2 sm:$0xff]
      %1511 = vrot.lane.b32.xlu0 %v1488, 80
      %v1512 = vpop.permute.xlu0 %1511
      %1513 = vrot.lane.b32.xlu0 %v1490, 80
      %v1514 = vpop.permute.xlu0 %1513
      %1515 = vrot.lane.b32.xlu0 %v1492, 80
      %v1516 = vpop.permute.xlu0 %1515
      %1517 = vrot.lane.b32.xlu0 %v1494, 80
      %v1518 = vpop.permute.xlu0 %1517
      %1519 = vrot.lane.b32.xlu0 %v1496, 80
      %v1520 = vpop.permute.xlu0 %1519
      %1521 = vrot.lane.b32.xlu0 %v1498, 80
      %v1522 = vpop.permute.xlu0 %1521
      %1523 = vrot.lane.b32.xlu0 %v1500, 80
      %v1524 = vpop.permute.xlu0 %1523
      %1525 = vrot.lane.b32.xlu0 %v1502, 80
      %v1526 = vpop.permute.xlu0 %1525
      %1535 = vst.msk [vmem:[#allocation3 + $0x8] sm:$0xff] %vm1117, %v1512
      %1536 = vst.msk [vmem:[#allocation3 + $0x18] sm:$0xff] %vm1117, %v1514
      %1537 = vst.msk [vmem:[#allocation3 + $0x28] sm:$0xff] %vm1117, %v1516
      %1538 = vst.msk [vmem:[#allocation3 + $0x38] sm:$0xff] %vm1117, %v1518
      %1539 = vst.msk [vmem:[#allocation3 + $0x48] sm:$0xff] %vm1117, %v1520
      %1540 = vst.msk [vmem:[#allocation3 + $0x58] sm:$0xff] %vm1117, %v1522
      %1541 = vst.msk [vmem:[#allocation3 + $0x68] sm:$0xff] %vm1117, %v1524
      %1542 = vst.msk [vmem:[#allocation3 + $0x78] sm:$0xff] %vm1117, %v1526
      %s1543 = scalar_lea.vmem %s1431, 2 [#allocation2]
      %v1544 = vld [vmem:[%s1543] ss:$2 sm:$0xff]
      %s1545 = scalar_lea.vmem %s1431, 50 [#allocation2]
      %v1546 = vld [vmem:[%s1545] ss:$2 sm:$0xff]
      %s1547 = scalar_lea.vmem %s1431, 98 [#allocation2]
      %v1548 = vld [vmem:[%s1547] ss:$2 sm:$0xff]
      %s1549 = scalar_lea.vmem %s1431, 146 [#allocation2]
      %v1550 = vld [vmem:[%s1549] ss:$2 sm:$0xff]
      %s1551 = scalar_lea.vmem %s1431, 194 [#allocation2]
      %v1552 = vld [vmem:[%s1551] ss:$2 sm:$0xff]
      %s1553 = scalar_lea.vmem %s1431, 242 [#allocation2]
      %v1554 = vld [vmem:[%s1553] ss:$2 sm:$0xff]
      %s1555 = scalar_lea.vmem %s1431, 290 [#allocation2]
      %v1556 = vld [vmem:[%s1555] ss:$2 sm:$0xff]
      %s1557 = scalar_lea.vmem %s1431, 338 [#allocation2]
      %v1558 = vld [vmem:[%s1557] ss:$2 sm:$0xff]
      %1567 = vrot.lane.b32.xlu0 %v1544, 96
      %v1568 = vpop.permute.xlu0 %1567
      %1569 = vrot.lane.b32.xlu0 %v1546, 96
      %v1570 = vpop.permute.xlu0 %1569
      %1571 = vrot.lane.b32.xlu0 %v1548, 96
      %v1572 = vpop.permute.xlu0 %1571
      %1573 = vrot.lane.b32.xlu0 %v1550, 96
      %v1574 = vpop.permute.xlu0 %1573
      %1575 = vrot.lane.b32.xlu0 %v1552, 96
      %v1576 = vpop.permute.xlu0 %1575
      %1577 = vrot.lane.b32.xlu0 %v1554, 96
      %v1578 = vpop.permute.xlu0 %1577
      %1579 = vrot.lane.b32.xlu0 %v1556, 96
      %v1580 = vpop.permute.xlu0 %1579
      %1581 = vrot.lane.b32.xlu0 %v1558, 96
      %v1582 = vpop.permute.xlu0 %1581
      %1591 = vst.msk [vmem:[#allocation3 + $0x8] sm:$0xff] %vm1174, %v1568
      %1592 = vst.msk [vmem:[#allocation3 + $0x18] sm:$0xff] %vm1174, %v1570
      %1593 = vst.msk [vmem:[#allocation3 + $0x28] sm:$0xff] %vm1174, %v1572
      %1594 = vst.msk [vmem:[#allocation3 + $0x38] sm:$0xff] %vm1174, %v1574
      %1595 = vst.msk [vmem:[#allocation3 + $0x48] sm:$0xff] %vm1174, %v1576
      %1596 = vst.msk [vmem:[#allocation3 + $0x58] sm:$0xff] %vm1174, %v1578
      %1597 = vst.msk [vmem:[#allocation3 + $0x68] sm:$0xff] %vm1174, %v1580
      %1598 = vst.msk [vmem:[#allocation3 + $0x78] sm:$0xff] %vm1174, %v1582
      %s1599 = scalar_lea.vmem %s1431, 3 [#allocation2]
      %v1600 = vld [vmem:[%s1599] ss:$2 sm:$0xff]
      %s1601 = scalar_lea.vmem %s1431, 51 [#allocation2]
      %v1602 = vld [vmem:[%s1601] ss:$2 sm:$0xff]
      %s1603 = scalar_lea.vmem %s1431, 99 [#allocation2]
      %v1604 = vld [vmem:[%s1603] ss:$2 sm:$0xff]
      %s1605 = scalar_lea.vmem %s1431, 147 [#allocation2]
      %v1606 = vld [vmem:[%s1605] ss:$2 sm:$0xff]
      %s1607 = scalar_lea.vmem %s1431, 195 [#allocation2]
      %v1608 = vld [vmem:[%s1607] ss:$2 sm:$0xff]
      %s1609 = scalar_lea.vmem %s1431, 243 [#allocation2]
      %v1610 = vld [vmem:[%s1609] ss:$2 sm:$0xff]
      %s1611 = scalar_lea.vmem %s1431, 291 [#allocation2]
      %v1612 = vld [vmem:[%s1611] ss:$2 sm:$0xff]
      %s1613 = scalar_lea.vmem %s1431, 339 [#allocation2]
      %v1614 = vld [vmem:[%s1613] ss:$2 sm:$0xff]
      %1623 = vrot.lane.b32.xlu0 %v1600, 112
      %v1624 = vpop.permute.xlu0 %1623
      %1625 = vrot.lane.b32.xlu0 %v1602, 112
      %v1626 = vpop.permute.xlu0 %1625
      %1627 = vrot.lane.b32.xlu0 %v1604, 112
      %v1628 = vpop.permute.xlu0 %1627
      %1629 = vrot.lane.b32.xlu0 %v1606, 112
      %v1630 = vpop.permute.xlu0 %1629
      %1631 = vrot.lane.b32.xlu0 %v1608, 112
      %v1632 = vpop.permute.xlu0 %1631
      %1633 = vrot.lane.b32.xlu0 %v1610, 112
      %v1634 = vpop.permute.xlu0 %1633
      %1635 = vrot.lane.b32.xlu0 %v1612, 112
      %v1636 = vpop.permute.xlu0 %1635
      %1637 = vrot.lane.b32.xlu0 %v1614, 112
      %v1638 = vpop.permute.xlu0 %1637
      %1647 = vst.msk [vmem:[#allocation3 + $0x8] sm:$0xff] %vm1231, %v1624
      %1648 = vst.msk [vmem:[#allocation3 + $0x18] sm:$0xff] %vm1231, %v1626
      %1649 = vst.msk [vmem:[#allocation3 + $0x28] sm:$0xff] %vm1231, %v1628
      %1650 = vst.msk [vmem:[#allocation3 + $0x38] sm:$0xff] %vm1231, %v1630
      %1651 = vst.msk [vmem:[#allocation3 + $0x48] sm:$0xff] %vm1231, %v1632
      %1652 = vst.msk [vmem:[#allocation3 + $0x58] sm:$0xff] %vm1231, %v1634
      %1653 = vst.msk [vmem:[#allocation3 + $0x68] sm:$0xff] %vm1231, %v1636
      %1654 = vst.msk [vmem:[#allocation3 + $0x78] sm:$0xff] %vm1231, %v1638
      %v1655 = vld [vmem:[#allocation3] sm:$0xff]
      %v1656 = vld [vmem:[#allocation3 + $0x8] sm:$0xff]
      %v1657 = vld [vmem:[#allocation3 + $0x10] sm:$0xff]
      %v1658 = vld [vmem:[#allocation3 + $0x18] sm:$0xff]
      %v1659 = vld [vmem:[#allocation3 + $0x20] sm:$0xff]
      %v1660 = vld [vmem:[#allocation3 + $0x28] sm:$0xff]
      %v1661 = vld [vmem:[#allocation3 + $0x30] sm:$0xff]
      %v1662 = vld [vmem:[#allocation3 + $0x38] sm:$0xff]
      %v1663 = vld [vmem:[#allocation3 + $0x40] sm:$0xff]
      %v1664 = vld [vmem:[#allocation3 + $0x48] sm:$0xff]
      %v1665 = vld [vmem:[#allocation3 + $0x50] sm:$0xff]
      %v1666 = vld [vmem:[#allocation3 + $0x58] sm:$0xff]
      %v1667 = vld [vmem:[#allocation3 + $0x60] sm:$0xff]
      %v1668 = vld [vmem:[#allocation3 + $0x68] sm:$0xff]
      %v1669 = vld [vmem:[#allocation3 + $0x70] sm:$0xff]
      %v1670 = vld [vmem:[#allocation3 + $0x78] sm:$0xff]
      %v1671 = vld [vmem:[%s3] sm:$0xff]
      %v1672 = vld [vmem:[%s3 + $0x8] sm:$0xff]
      %v1673 = vld [vmem:[%s3 + $0x10] sm:$0xff]
      %v1674 = vld [vmem:[%s3 + $0x18] sm:$0xff]
      %v1675 = vld [vmem:[%s3 + $0x20] sm:$0xff]
      %v1676 = vld [vmem:[%s3 + $0x28] sm:$0xff]
      %v1677 = vld [vmem:[%s3 + $0x30] sm:$0xff]
      %v1678 = vld [vmem:[%s3 + $0x38] sm:$0xff]
      %v1679 = vld [vmem:[%s3 + $0x40] sm:$0xff]
      %v1680 = vld [vmem:[%s3 + $0x48] sm:$0xff]
      %v1681 = vld [vmem:[%s3 + $0x50] sm:$0xff]
      %v1682 = vld [vmem:[%s3 + $0x58] sm:$0xff]
      %v1683 = vld [vmem:[%s3 + $0x60] sm:$0xff]
      %v1684 = vld [vmem:[%s3 + $0x68] sm:$0xff]
      %v1685 = vld [vmem:[%s3 + $0x70] sm:$0xff]
      %v1686 = vld [vmem:[%s3 + $0x78] sm:$0xff]
      %v1687 = vld [vmem:[%s3 + $0x80] sm:$0xff]
      %v1688 = vld [vmem:[%s3 + $0x88] sm:$0xff]
      %v1689 = vld [vmem:[%s3 + $0x90] sm:$0xff]
      %v1690 = vld [vmem:[%s3 + $0x98] sm:$0xff]
      %v1691 = vld [vmem:[%s3 + $0xa0] sm:$0xff]
      %v1692 = vld [vmem:[%s3 + $0xa8] sm:$0xff]
      %v1693 = vld [vmem:[%s3 + $0xb0] sm:$0xff]
      %v1694 = vld [vmem:[%s3 + $0xb8] sm:$0xff]
      %v1695 = vld [vmem:[%s3 + $0xc0] sm:$0xff]
      %v1696 = vld [vmem:[%s3 + $0xc8] sm:$0xff]
      %v1697 = vld [vmem:[%s3 + $0xd0] sm:$0xff]
      %v1698 = vld [vmem:[%s3 + $0xd8] sm:$0xff]
      %v1699 = vld [vmem:[%s3 + $0xe0] sm:$0xff]
      %v1700 = vld [vmem:[%s3 + $0xe8] sm:$0xff]
      %v1701 = vld [vmem:[%s3 + $0xf0] sm:$0xff]
      %v1702 = vld [vmem:[%s3 + $0xf8] sm:$0xff]
      %v1703 = vld [vmem:[%s4] sm:$0x1]
      %v1705 = vperm.slane %v1703, 0
      %1707 = vmatpush.msra.mxu0 %v1686
      %1708 = vmatpush.msra.mxu0 %v1685
      %1709 = vmatpush.msra.mxu0 %v1684
      %1710 = vmatpush.msra.mxu0 %v1683
      %1711 = vmatpush.msra.mxu0 %v1682
      %1712 = vmatpush.msra.mxu0 %v1681
      %1713 = vmatpush.msra.mxu0 %v1680
      %1714 = vmatpush.msra.mxu0 %v1679
      %1715 = vmatpush.msra.mxu0 %v1678
      %1716 = vmatpush.msra.mxu0 %v1677
      %1717 = vmatpush.msra.mxu0 %v1676
      %1718 = vmatpush.msra.mxu0 %v1675
      %1719 = vmatpush.msra.mxu0 %v1674
      %1720 = vmatpush.msra.mxu0 %v1673
      %1721 = vmatpush.msra.mxu0 %v1672
      %1722 = vmatpush.msra.mxu0 %v1671
      %1723 = vmatmul.f32.gmra.mxu0 %v1655
      %v1724 = vpop.f32.mrf.mxu0
      %v1725 = vadd.f32 %v1705, %v1724
      %1726 = vmatmul.f32.gmra.mxu0 %v1657
      %v1727 = vpop.f32.mrf.mxu0
      %v1728 = vadd.f32 %v1705, %v1727
      %1729 = vmatmul.f32.gmra.mxu0 %v1659
      %v1730 = vpop.f32.mrf.mxu0
      %v1731 = vadd.f32 %v1705, %v1730
      %1732 = vmatmul.f32.gmra.mxu0 %v1661
      %v1733 = vpop.f32.mrf.mxu0
      %v1734 = vadd.f32 %v1705, %v1733
      %1735 = vmatmul.f32.gmra.mxu0 %v1663
      %v1736 = vpop.f32.mrf.mxu0
      %v1737 = vadd.f32 %v1705, %v1736
      %1738 = vmatmul.f32.gmra.mxu0 %v1665
      %v1739 = vpop.f32.mrf.mxu0
      %v1740 = vadd.f32 %v1705, %v1739
      %1741 = vmatmul.f32.gmra.mxu0 %v1667
      %v1742 = vpop.f32.mrf.mxu0
      %v1743 = vadd.f32 %v1705, %v1742
      %1744 = vmatmul.f32.gmra.mxu0 %v1669
      %v1745 = vpop.f32.mrf.mxu0
      %v1746 = vadd.f32 %v1705, %v1745
      %1747 = vdwg.mxu0
      %1748 = vmatpush.msra.mxu0 %v1702
      %1749 = vmatpush.msra.mxu0 %v1701
      %1750 = vmatpush.msra.mxu0 %v1700
      %1751 = vmatpush.msra.mxu0 %v1699
      %1752 = vmatpush.msra.mxu0 %v1698
      %1753 = vmatpush.msra.mxu0 %v1697
      %1754 = vmatpush.msra.mxu0 %v1696
      %1755 = vmatpush.msra.mxu0 %v1695
      %1756 = vmatpush.msra.mxu0 %v1694
      %1757 = vmatpush.msra.mxu0 %v1693
      %1758 = vmatpush.msra.mxu0 %v1692
      %1759 = vmatpush.msra.mxu0 %v1691
      %1760 = vmatpush.msra.mxu0 %v1690
      %1761 = vmatpush.msra.mxu0 %v1689
      %1762 = vmatpush.msra.mxu0 %v1688
      %1763 = vmatpush.msra.mxu0 %v1687
      %1764 = vmatmul.f32.gmra.mxu0 %v1656
      %v1765 = vpop.f32.mrf.mxu0
      %v1766 = vadd.f32 %v1725, %v1765
      %1767 = vmatmul.f32.gmra.mxu0 %v1658
      %v1768 = vpop.f32.mrf.mxu0
      %v1769 = vadd.f32 %v1728, %v1768
      %1770 = vmatmul.f32.gmra.mxu0 %v1660
      %v1771 = vpop.f32.mrf.mxu0
      %v1772 = vadd.f32 %v1731, %v1771
      %1773 = vmatmul.f32.gmra.mxu0 %v1662
      %v1774 = vpop.f32.mrf.mxu0
      %v1775 = vadd.f32 %v1734, %v1774
      %1776 = vmatmul.f32.gmra.mxu0 %v1664
      %v1777 = vpop.f32.mrf.mxu0
      %v1778 = vadd.f32 %v1737, %v1777
      %1779 = vmatmul.f32.gmra.mxu0 %v1666
      %v1780 = vpop.f32.mrf.mxu0
      %v1781 = vadd.f32 %v1740, %v1780
      %1782 = vmatmul.f32.gmra.mxu0 %v1668
      %v1783 = vpop.f32.mrf.mxu0
      %v1784 = vadd.f32 %v1743, %v1783
      %1785 = vmatmul.f32.gmra.mxu0 %v1670
      %v1786 = vpop.f32.mrf.mxu0
      %v1787 = vadd.f32 %v1746, %v1786
      %1788 = vdwg.mxu0
      %vm1789 = vcmask 261120
      %v1790 = vsel %vm1789, %v1766, 0.0
      %v1791 = vsel %vm1789, %v1769, 0.0
      %v1792 = vadd.f32 %v1790, %v1791
      %v1793 = vsel %vm1789, %v1772, 0.0
      %v1794 = vadd.f32 %v1792, %v1793
      %v1795 = vsel %vm1789, %v1775, 0.0
      %v1796 = vadd.f32 %v1794, %v1795
      %v1797 = vsel %vm1789, %v1778, 0.0
      %v1798 = vadd.f32 %v1796, %v1797
      %v1799 = vsel %vm1789, %v1781, 0.0
      %v1800 = vadd.f32 %v1798, %v1799
      %v1801 = vsel %vm1789, %v1784, 0.0
      %v1802 = vadd.f32 %v1800, %v1801
      %v1803 = vsel %vm1789, %v1787, 0.0
      %v1804 = vadd.f32 %v1802, %v1803
      %v1805 = vrot.slane %v1804, 4
      %v1806 = vadd.f32 %v1804, %v1805
      %v1807 = vrot.slane %v1806, 2
      %v1808 = vadd.f32 %v1806, %v1807
      %v1809 = vrot.slane %v1808, 1
      %v1810 = vadd.f32 %v1808, %v1809
      %v1811 = vmul.f32 %v1810, 0.015625
      %v1812 = vmul.f32 %v1766, %v1766
      %v1813 = vmul.f32 %v1769, %v1769
      %v1814 = vmul.f32 %v1772, %v1772
      %v1815 = vmul.f32 %v1775, %v1775
      %v1816 = vmul.f32 %v1778, %v1778
      %v1817 = vmul.f32 %v1781, %v1781
      %v1818 = vmul.f32 %v1784, %v1784
      %v1819 = vmul.f32 %v1787, %v1787
      %v1820 = vsel %vm1789, %v1812, 0.0
      %v1821 = vsel %vm1789, %v1813, 0.0
      %v1822 = vadd.f32 %v1820, %v1821
      %v1823 = vsel %vm1789, %v1814, 0.0
      %v1824 = vadd.f32 %v1822, %v1823
      %v1825 = vsel %vm1789, %v1815, 0.0
      %v1826 = vadd.f32 %v1824, %v1825
      %v1827 = vsel %vm1789, %v1816, 0.0
      %v1828 = vadd.f32 %v1826, %v1827
      %v1829 = vsel %vm1789, %v1817, 0.0
      %v1830 = vadd.f32 %v1828, %v1829
      %v1831 = vsel %vm1789, %v1818, 0.0
      %v1832 = vadd.f32 %v1830, %v1831
      %v1833 = vsel %vm1789, %v1819, 0.0
      %v1834 = vadd.f32 %v1832, %v1833
      %v1835 = vrot.slane %v1834, 4
      %v1836 = vadd.f32 %v1834, %v1835
      %v1837 = vrot.slane %v1836, 2
      %v1838 = vadd.f32 %v1836, %v1837
      %v1839 = vrot.slane %v1838, 1
      %v1840 = vadd.f32 %v1838, %v1839
      %v1841 = vmul.f32 %v1840, 0.015625
      %v1842 = vmul.f32 %v1811, %v1811
      %v1843 = vsub.f32 %v1841, %v1842
      %v1844 = vmax.f32 %v1843, 0.0
      %v1845 = vsub.f32 %v1766, %v1811
      %v1846 = vsub.f32 %v1769, %v1811
      %v1847 = vsub.f32 %v1772, %v1811
      %v1848 = vsub.f32 %v1775, %v1811
      %v1849 = vsub.f32 %v1778, %v1811
      %v1850 = vsub.f32 %v1781, %v1811
      %v1851 = vsub.f32 %v1784, %v1811
      %v1852 = vsub.f32 %v1787, %v1811
      %v1853 = vadd.f32 %v1844, 1e-05
      %v1854 = vrsqrt.pop %v1853
      %v1855 = vmul.f32 %v1854, %v1853
      %v1856 = vmul.f32 %v1855, %v1854
      %v1857 = vmul.f32 0.5, %v1856
      %v1858 = vsub.f32 1.5, %v1857
      %v1859 = vmul.f32 %v1854, %v1858
      %vm1860 = vweird.f32 %v1853
      %vm1861 = vweird.f32 %v1854
      %vm1862 = vmor %vm1860, %vm1861
      %v1863 = vsel %vm1862, %v1854, %v1859
      %v1864 = vmul.f32 %v1845, %v1863
      %v1865 = vmul.f32 %v1846, %v1863
      %v1866 = vmul.f32 %v1847, %v1863
      %v1867 = vmul.f32 %v1848, %v1863
      %v1868 = vmul.f32 %v1849, %v1863
      %v1869 = vmul.f32 %v1850, %v1863
      %v1870 = vmul.f32 %v1851, %v1863
      %v1871 = vmul.f32 %v1852, %v1863
      %vm1872 = vcmp.ge.f32.partialorder %v1864, 0.0
      %vm1873 = vcmp.ge.f32.partialorder %v1865, 0.0
      %vm1874 = vcmp.ge.f32.partialorder %v1866, 0.0
      %vm1875 = vcmp.ge.f32.partialorder %v1867, 0.0
      %vm1876 = vcmp.ge.f32.partialorder %v1868, 0.0
      %vm1877 = vcmp.ge.f32.partialorder %v1869, 0.0
      %vm1878 = vcmp.ge.f32.partialorder %v1870, 0.0
      %vm1879 = vcmp.ge.f32.partialorder %v1871, 0.0
      %v1880 = vmul.f32 %v1864, 0.2
      %v1881 = vmul.f32 %v1865, 0.2
      %v1882 = vmul.f32 %v1866, 0.2
      %v1883 = vmul.f32 %v1867, 0.2
      %v1884 = vmul.f32 %v1868, 0.2
      %v1885 = vmul.f32 %v1869, 0.2
      %v1886 = vmul.f32 %v1870, 0.2
      %v1887 = vmul.f32 %v1871, 0.2
      %v1888 = vsel %vm1872, %v1864, %v1880
      %v1889 = vsel %vm1873, %v1865, %v1881
      %v1890 = vsel %vm1874, %v1866, %v1882
      %v1891 = vsel %vm1875, %v1867, %v1883
      %v1892 = vsel %vm1876, %v1868, %v1884
      %v1893 = vsel %vm1877, %v1869, %v1885
      %v1894 = vsel %vm1878, %v1870, %v1886
      %v1895 = vsel %vm1879, %v1871, %v1887
      %s1896 = scalar_lea.vmem [#allocation4], 16
      %1897 = vst.msk [vmem:[%s1896 + $0x1] sm:$0xff] %vm1789, %v1888
      %1898 = vst.msk [vmem:[%s1896 + $0x11] sm:$0xff] %vm1789, %v1889
      %1899 = vst.msk [vmem:[%s1896 + $0x21] sm:$0xff] %vm1789, %v1890
      %1900 = vst.msk [vmem:[%s1896 + $0x31] sm:$0xff] %vm1789, %v1891
      %1901 = vst.msk [vmem:[%s1896 + $0x41] sm:$0xff] %vm1789, %v1892
      %1902 = vst.msk [vmem:[%s1896 + $0x51] sm:$0xff] %vm1789, %v1893
      %1903 = vst.msk [vmem:[%s1896 + $0x61] sm:$0xff] %vm1789, %v1894
      %1904 = vst.msk [vmem:[%s1896 + $0x71] sm:$0xff] %vm1789, %v1895
      %vm1905 = vcmask 254977
      %1906 = vst.msk [vmem:[%s1896 - $0x1] sm:$0x2] %vm1905, %v1888
      %1907 = vst.msk [vmem:[%s1896 + $0xf] sm:$0x2] %vm1905, %v1889
      %1908 = vst.msk [vmem:[%s1896 + $0x1f] sm:$0x2] %vm1905, %v1890
      %1909 = vst.msk [vmem:[%s1896 + $0x2f] sm:$0x2] %vm1905, %v1891
      %1910 = vst.msk [vmem:[%s1896 + $0x3f] sm:$0x2] %vm1905, %v1892
      %1911 = vst.msk [vmem:[%s1896 + $0x4f] sm:$0x2] %vm1905, %v1893
      %1912 = vst.msk [vmem:[%s1896 + $0x5f] sm:$0x2] %vm1905, %v1894
      %1913 = vst.msk [vmem:[%s1896 + $0x6f] sm:$0x2] %vm1905, %v1895
      %vm1914 = vcmask 260102
      %1915 = vst.msk [vmem:[%s1896 + $0x3] sm:$0x40] %vm1914, %v1888
      %1916 = vst.msk [vmem:[%s1896 + $0x13] sm:$0x40] %vm1914, %v1889
      %1917 = vst.msk [vmem:[%s1896 + $0x23] sm:$0x40] %vm1914, %v1890
      %1918 = vst.msk [vmem:[%s1896 + $0x33] sm:$0x40] %vm1914, %v1891
      %1919 = vst.msk [vmem:[%s1896 + $0x43] sm:$0x40] %vm1914, %v1892
      %1920 = vst.msk [vmem:[%s1896 + $0x53] sm:$0x40] %vm1914, %v1893
      %1921 = vst.msk [vmem:[%s1896 + $0x63] sm:$0x40] %vm1914, %v1894
      %1922 = vst.msk [vmem:[%s1896 + $0x73] sm:$0x40] %vm1914, %v1895
      %s1923 = scalar_lea.vmem [#allocation4], 32
      %v1924 = vld [vmem:[%s1923] sm:$0xff]
      %v1925 = vld [vmem:[%s1923 + $0x8] sm:$0x3]
      %1926 = vst.msk [vmem:[#allocation4] sm:$0xff] %vm1789, %v1924
      %vm1927 = vcmask 254976
      %1928 = vst.msk [vmem:[#allocation4 + $0x8] sm:$0x3] %vm1927, %v1925
      %s1929 = scalar_lea.vmem [#allocation4], 112
      %v1930 = vld [vmem:[%s1929] sm:$0xff]
      %v1931 = vld [vmem:[%s1929 + $0x8] sm:$0x3]
      %s1932 = scalar_lea.vmem [#allocation4], 144
      %1933 = vst.msk [vmem:[%s1932] sm:$0xff] %vm1789, %v1930
      %1934 = vst.msk [vmem:[%s1932 + $0x8] sm:$0x3] %vm1927, %v1931
      %v1935 = vld [vmem:[#allocation4] ss:$2 sm:$0xf]
      %s1936 = scalar_lea.vmem [#allocation4], 32
      %v1937 = vld [vmem:[%s1936] ss:$2 sm:$0xf]
      %s1938 = scalar_lea.vmem [#allocation4], 64
      %v1939 = vld [vmem:[%s1938] ss:$2 sm:$0xf]
      %s1940 = scalar_lea.vmem [#allocation4], 96
      %v1941 = vld [vmem:[%s1940] ss:$2 sm:$0xf]
      %vm1942 = vcmask 257024
      %1943 = vst.msk [vmem:[#allocation5] sm:$0xf] %vm1942, %v1935
      %1944 = vst.msk [vmem:[#allocation5 + $0x10] sm:$0xf] %vm1942, %v1937
      %1945 = vst.msk [vmem:[#allocation5 + $0x20] sm:$0xf] %vm1942, %v1939
      %1946 = vst.msk [vmem:[#allocation5 + $0x30] sm:$0xf] %vm1942, %v1941
      %s1947 = scalar_lea.vmem [#allocation4], 1
      %v1948 = vld [vmem:[%s1947] ss:$2 sm:$0xf]
      %s1949 = scalar_lea.vmem [#allocation4], 33
      %v1950 = vld [vmem:[%s1949] ss:$2 sm:$0xf]
      %s1951 = scalar_lea.vmem [#allocation4], 65
      %v1952 = vld [vmem:[%s1951] ss:$2 sm:$0xf]
      %s1953 = scalar_lea.vmem [#allocation4], 97
      %v1954 = vld [vmem:[%s1953] ss:$2 sm:$0xf]
      %1959 = vrot.lane.b32.xlu0 %v1948, 32
      %v1960 = vpop.permute.xlu0 %1959
      %1961 = vrot.lane.b32.xlu0 %v1950, 32
      %v1962 = vpop.permute.xlu0 %1961
      %1963 = vrot.lane.b32.xlu0 %v1952, 32
      %v1964 = vpop.permute.xlu0 %1963
      %1965 = vrot.lane.b32.xlu0 %v1954, 32
      %v1966 = vpop.permute.xlu0 %1965
      %vm1971 = vcmask 519424
      %1972 = vst.msk [vmem:[#allocation5] sm:$0xf] %vm1971, %v1960
      %1973 = vst.msk [vmem:[#allocation5 + $0x10] sm:$0xf] %vm1971, %v1962
      %1974 = vst.msk [vmem:[#allocation5 + $0x20] sm:$0xf] %vm1971, %v1964
      %1975 = vst.msk [vmem:[#allocation5 + $0x30] sm:$0xf] %vm1971, %v1966
      %s1976 = scalar_lea.vmem [#allocation4], 2
      %v1977 = vld [vmem:[%s1976] ss:$2 sm:$0xf]
      %s1978 = scalar_lea.vmem [#allocation4], 34
      %v1979 = vld [vmem:[%s1978] ss:$2 sm:$0xf]
      %s1980 = scalar_lea.vmem [#allocation4], 66
      %v1981 = vld [vmem:[%s1980] ss:$2 sm:$0xf]
      %s1982 = scalar_lea.vmem [#allocation4], 98
      %v1983 = vld [vmem:[%s1982] ss:$2 sm:$0xf]
      %1988 = vrot.lane.b32.xlu0 %v1977, 64
      %v1989 = vpop.permute.xlu0 %1988
      %1990 = vrot.lane.b32.xlu0 %v1979, 64
      %v1991 = vpop.permute.xlu0 %1990
      %1992 = vrot.lane.b32.xlu0 %v1981, 64
      %v1993 = vpop.permute.xlu0 %1992
      %1994 = vrot.lane.b32.xlu0 %v1983, 64
      %v1995 = vpop.permute.xlu0 %1994
      %vm2000 = vcmask 781824
      %2001 = vst.msk [vmem:[#allocation5] sm:$0xf] %vm2000, %v1989
      %2002 = vst.msk [vmem:[#allocation5 + $0x10] sm:$0xf] %vm2000, %v1991
      %2003 = vst.msk [vmem:[#allocation5 + $0x20] sm:$0xf] %vm2000, %v1993
      %2004 = vst.msk [vmem:[#allocation5 + $0x30] sm:$0xf] %vm2000, %v1995
      %s2005 = scalar_lea.vmem [#allocation4], 3
      %v2006 = vld [vmem:[%s2005] ss:$2 sm:$0xf]
      %s2007 = scalar_lea.vmem [#allocation4], 35
      %v2008 = vld [vmem:[%s2007] ss:$2 sm:$0xf]
      %s2009 = scalar_lea.vmem [#allocation4], 67
      %v2010 = vld [vmem:[%s2009] ss:$2 sm:$0xf]
      %s2011 = scalar_lea.vmem [#allocation4], 99
      %v2012 = vld [vmem:[%s2011] ss:$2 sm:$0xf]
      %2017 = vrot.lane.b32.xlu0 %v2006, 96
      %v2018 = vpop.permute.xlu0 %2017
      %2019 = vrot.lane.b32.xlu0 %v2008, 96
      %v2020 = vpop.permute.xlu0 %2019
      %2021 = vrot.lane.b32.xlu0 %v2010, 96
      %v2022 = vpop.permute.xlu0 %2021
      %2023 = vrot.lane.b32.xlu0 %v2012, 96
      %v2024 = vpop.permute.xlu0 %2023
      %vm2029 = vcmask 1044224
      %2030 = vst.msk [vmem:[#allocation5] sm:$0xf] %vm2029, %v2018
      %2031 = vst.msk [vmem:[#allocation5 + $0x10] sm:$0xf] %vm2029, %v2020
      %2032 = vst.msk [vmem:[#allocation5 + $0x20] sm:$0xf] %vm2029, %v2022
      %2033 = vst.msk [vmem:[#allocation5 + $0x30] sm:$0xf] %vm2029, %v2024
      %v2034 = vld [vmem:[%s1896] ss:$2 sm:$0xf]
      %s2035 = scalar_lea.vmem %s1896, 32 [#allocation4]
      %v2036 = vld [vmem:[%s2035] ss:$2 sm:$0xf]
      %s2037 = scalar_lea.vmem %s1896, 64 [#allocation4]
      %v2038 = vld [vmem:[%s2037] ss:$2 sm:$0xf]
      %s2039 = scalar_lea.vmem %s1896, 96 [#allocation4]
      %v2040 = vld [vmem:[%s2039] ss:$2 sm:$0xf]
      %2041 = vst.msk [vmem:[#allocation5 + $0x4] sm:$0xf] %vm1942, %v2034
      %2042 = vst.msk [vmem:[#allocation5 + $0x14] sm:$0xf] %vm1942, %v2036
      %2043 = vst.msk [vmem:[#allocation5 + $0x24] sm:$0xf] %vm1942, %v2038
      %2044 = vst.msk [vmem:[#allocation5 + $0x34] sm:$0xf] %vm1942, %v2040
      %s2045 = scalar_lea.vmem %s1896, 1 [#allocation4]
      %v2046 = vld [vmem:[%s2045] ss:$2 sm:$0xf]
      %s2047 = scalar_lea.vmem %s1896, 33 [#allocation4]
      %v2048 = vld [vmem:[%s2047] ss:$2 sm:$0xf]
      %s2049 = scalar_lea.vmem %s1896, 65 [#allocation4]
      %v2050 = vld [vmem:[%s2049] ss:$2 sm:$0xf]
      %s2051 = scalar_lea.vmem %s1896, 97 [#allocation4]
      %v2052 = vld [vmem:[%s2051] ss:$2 sm:$0xf]
      %2057 = vrot.lane.b32.xlu0 %v2046, 32
      %v2058 = vpop.permute.xlu0 %2057
      %2059 = vrot.lane.b32.xlu0 %v2048, 32
      %v2060 = vpop.permute.xlu0 %2059
      %2061 = vrot.lane.b32.xlu0 %v2050, 32
      %v2062 = vpop.permute.xlu0 %2061
      %2063 = vrot.lane.b32.xlu0 %v2052, 32
      %v2064 = vpop.permute.xlu0 %2063
      %2069 = vst.msk [vmem:[#allocation5 + $0x4] sm:$0xf] %vm1971, %v2058
      %2070 = vst.msk [vmem:[#allocation5 + $0x14] sm:$0xf] %vm1971, %v2060
      %2071 = vst.msk [vmem:[#allocation5 + $0x24] sm:$0xf] %vm1971, %v2062
      %2072 = vst.msk [vmem:[#allocation5 + $0x34] sm:$0xf] %vm1971, %v2064
      %s2073 = scalar_lea.vmem %s1896, 2 [#allocation4]
      %v2074 = vld [vmem:[%s2073] ss:$2 sm:$0xf]
      %s2075 = scalar_lea.vmem %s1896, 34 [#allocation4]
      %v2076 = vld [vmem:[%s2075] ss:$2 sm:$0xf]
      %s2077 = scalar_lea.vmem %s1896, 66 [#allocation4]
      %v2078 = vld [vmem:[%s2077] ss:$2 sm:$0xf]
      %s2079 = scalar_lea.vmem %s1896, 98 [#allocation4]
      %v2080 = vld [vmem:[%s2079] ss:$2 sm:$0xf]
      %2085 = vrot.lane.b32.xlu0 %v2074, 64
      %v2086 = vpop.permute.xlu0 %2085
      %2087 = vrot.lane.b32.xlu0 %v2076, 64
      %v2088 = vpop.permute.xlu0 %2087
      %2089 = vrot.lane.b32.xlu0 %v2078, 64
      %v2090 = vpop.permute.xlu0 %2089
      %2091 = vrot.lane.b32.xlu0 %v2080, 64
      %v2092 = vpop.permute.xlu0 %2091
      %2097 = vst.msk [vmem:[#allocation5 + $0x4] sm:$0xf] %vm2000, %v2086
      %2098 = vst.msk [vmem:[#allocation5 + $0x14] sm:$0xf] %vm2000, %v2088
      %2099 = vst.msk [vmem:[#allocation5 + $0x24] sm:$0xf] %vm2000, %v2090
      %2100 = vst.msk [vmem:[#allocation5 + $0x34] sm:$0xf] %vm2000, %v2092
      %s2101 = scalar_lea.vmem %s1896, 3 [#allocation4]
      %v2102 = vld [vmem:[%s2101] ss:$2 sm:$0xf]
      %s2103 = scalar_lea.vmem %s1896, 35 [#allocation4]
      %v2104 = vld [vmem:[%s2103] ss:$2 sm:$0xf]
      %s2105 = scalar_lea.vmem %s1896, 67 [#allocation4]
      %v2106 = vld [vmem:[%s2105] ss:$2 sm:$0xf]
      %s2107 = scalar_lea.vmem %s1896, 99 [#allocation4]
      %v2108 = vld [vmem:[%s2107] ss:$2 sm:$0xf]
      %2113 = vrot.lane.b32.xlu0 %v2102, 96
      %v2114 = vpop.permute.xlu0 %2113
      %2115 = vrot.lane.b32.xlu0 %v2104, 96
      %v2116 = vpop.permute.xlu0 %2115
      %2117 = vrot.lane.b32.xlu0 %v2106, 96
      %v2118 = vpop.permute.xlu0 %2117
      %2119 = vrot.lane.b32.xlu0 %v2108, 96
      %v2120 = vpop.permute.xlu0 %2119
      %2125 = vst.msk [vmem:[#allocation5 + $0x4] sm:$0xf] %vm2029, %v2114
      %2126 = vst.msk [vmem:[#allocation5 + $0x14] sm:$0xf] %vm2029, %v2116
      %2127 = vst.msk [vmem:[#allocation5 + $0x24] sm:$0xf] %vm2029, %v2118
      %2128 = vst.msk [vmem:[#allocation5 + $0x34] sm:$0xf] %vm2029, %v2120
      %v2129 = vld [vmem:[%s1923] ss:$2 sm:$0xf]
      %s2130 = scalar_lea.vmem %s1923, 32 [#allocation4]
      %v2131 = vld [vmem:[%s2130] ss:$2 sm:$0xf]
      %s2132 = scalar_lea.vmem %s1923, 64 [#allocation4]
      %v2133 = vld [vmem:[%s2132] ss:$2 sm:$0xf]
      %s2134 = scalar_lea.vmem %s1923, 96 [#allocation4]
      %v2135 = vld [vmem:[%s2134] ss:$2 sm:$0xf]
      %2136 = vst.msk [vmem:[#allocation5 + $0x8] sm:$0xf] %vm1942, %v2129
      %2137 = vst.msk [vmem:[#allocation5 + $0x18] sm:$0xf] %vm1942, %v2131
      %2138 = vst.msk [vmem:[#allocation5 + $0x28] sm:$0xf] %vm1942, %v2133
      %2139 = vst.msk [vmem:[#allocation5 + $0x38] sm:$0xf] %vm1942, %v2135
      %s2140 = scalar_lea.vmem %s1923, 1 [#allocation4]
      %v2141 = vld [vmem:[%s2140] ss:$2 sm:$0xf]
      %s2142 = scalar_lea.vmem %s1923, 33 [#allocation4]
      %v2143 = vld [vmem:[%s2142] ss:$2 sm:$0xf]
      %s2144 = scalar_lea.vmem %s1923, 65 [#allocation4]
      %v2145 = vld [vmem:[%s2144] ss:$2 sm:$0xf]
      %s2146 = scalar_lea.vmem %s1923, 97 [#allocation4]
      %v2147 = vld [vmem:[%s2146] ss:$2 sm:$0xf]
      %2152 = vrot.lane.b32.xlu0 %v2141, 32
      %v2153 = vpop.permute.xlu0 %2152
      %2154 = vrot.lane.b32.xlu0 %v2143, 32
      %v2155 = vpop.permute.xlu0 %2154
      %2156 = vrot.lane.b32.xlu0 %v2145, 32
      %v2157 = vpop.permute.xlu0 %2156
      %2158 = vrot.lane.b32.xlu0 %v2147, 32
      %v2159 = vpop.permute.xlu0 %2158
      %2164 = vst.msk [vmem:[#allocation5 + $0x8] sm:$0xf] %vm1971, %v2153
      %2165 = vst.msk [vmem:[#allocation5 + $0x18] sm:$0xf] %vm1971, %v2155
      %2166 = vst.msk [vmem:[#allocation5 + $0x28] sm:$0xf] %vm1971, %v2157
      %2167 = vst.msk [vmem:[#allocation5 + $0x38] sm:$0xf] %vm1971, %v2159
      %s2168 = scalar_lea.vmem %s1923, 2 [#allocation4]
      %v2169 = vld [vmem:[%s2168] ss:$2 sm:$0xf]
      %s2170 = scalar_lea.vmem %s1923, 34 [#allocation4]
      %v2171 = vld [vmem:[%s2170] ss:$2 sm:$0xf]
      %s2172 = scalar_lea.vmem %s1923, 66 [#allocation4]
      %v2173 = vld [vmem:[%s2172] ss:$2 sm:$0xf]
      %s2174 = scalar_lea.vmem %s1923, 98 [#allocation4]
      %v2175 = vld [vmem:[%s2174] ss:$2 sm:$0xf]
      %2180 = vrot.lane.b32.xlu0 %v2169, 64
      %v2181 = vpop.permute.xlu0 %2180
      %2182 = vrot.lane.b32.xlu0 %v2171, 64
      %v2183 = vpop.permute.xlu0 %2182
      %2184 = vrot.lane.b32.xlu0 %v2173, 64
      %v2185 = vpop.permute.xlu0 %2184
      %2186 = vrot.lane.b32.xlu0 %v2175, 64
      %v2187 = vpop.permute.xlu0 %2186
      %2192 = vst.msk [vmem:[#allocation5 + $0x8] sm:$0xf] %vm2000, %v2181
      %2193 = vst.msk [vmem:[#allocation5 + $0x18] sm:$0xf] %vm2000, %v2183
      %2194 = vst.msk [vmem:[#allocation5 + $0x28] sm:$0xf] %vm2000, %v2185
      %2195 = vst.msk [vmem:[#allocation5 + $0x38] sm:$0xf] %vm2000, %v2187
      %s2196 = scalar_lea.vmem %s1923, 3 [#allocation4]
      %v2197 = vld [vmem:[%s2196] ss:$2 sm:$0xf]
      %s2198 = scalar_lea.vmem %s1923, 35 [#allocation4]
      %v2199 = vld [vmem:[%s2198] ss:$2 sm:$0xf]
      %s2200 = scalar_lea.vmem %s1923, 67 [#allocation4]
      %v2201 = vld [vmem:[%s2200] ss:$2 sm:$0xf]
      %s2202 = scalar_lea.vmem %s1923, 99 [#allocation4]
      %v2203 = vld [vmem:[%s2202] ss:$2 sm:$0xf]
      %2208 = vrot.lane.b32.xlu0 %v2197, 96
      %v2209 = vpop.permute.xlu0 %2208
      %2210 = vrot.lane.b32.xlu0 %v2199, 96
      %v2211 = vpop.permute.xlu0 %2210
      %2212 = vrot.lane.b32.xlu0 %v2201, 96
      %v2213 = vpop.permute.xlu0 %2212
      %2214 = vrot.lane.b32.xlu0 %v2203, 96
      %v2215 = vpop.permute.xlu0 %2214
      %2220 = vst.msk [vmem:[#allocation5 + $0x8] sm:$0xf] %vm2029, %v2209
      %2221 = vst.msk [vmem:[#allocation5 + $0x18] sm:$0xf] %vm2029, %v2211
      %2222 = vst.msk [vmem:[#allocation5 + $0x28] sm:$0xf] %vm2029, %v2213
      %2223 = vst.msk [vmem:[#allocation5 + $0x38] sm:$0xf] %vm2029, %v2215
      %s2224 = scalar_lea.vmem [#allocation4], 48
      %v2225 = vld [vmem:[%s2224] ss:$2 sm:$0xf]
      %s2226 = scalar_lea.vmem %s2224, 32 [#allocation4]
      %v2227 = vld [vmem:[%s2226] ss:$2 sm:$0xf]
      %s2228 = scalar_lea.vmem %s2224, 64 [#allocation4]
      %v2229 = vld [vmem:[%s2228] ss:$2 sm:$0xf]
      %s2230 = scalar_lea.vmem %s2224, 96 [#allocation4]
      %v2231 = vld [vmem:[%s2230] ss:$2 sm:$0xf]
      %2232 = vst.msk [vmem:[#allocation5 + $0xc] sm:$0xf] %vm1942, %v2225
      %2233 = vst.msk [vmem:[#allocation5 + $0x1c] sm:$0xf] %vm1942, %v2227
      %2234 = vst.msk [vmem:[#allocation5 + $0x2c] sm:$0xf] %vm1942, %v2229
      %2235 = vst.msk [vmem:[#allocation5 + $0x3c] sm:$0xf] %vm1942, %v2231
      %s2236 = scalar_lea.vmem %s2224, 1 [#allocation4]
      %v2237 = vld [vmem:[%s2236] ss:$2 sm:$0xf]
      %s2238 = scalar_lea.vmem %s2224, 33 [#allocation4]
      %v2239 = vld [vmem:[%s2238] ss:$2 sm:$0xf]
      %s2240 = scalar_lea.vmem %s2224, 65 [#allocation4]
      %v2241 = vld [vmem:[%s2240] ss:$2 sm:$0xf]
      %s2242 = scalar_lea.vmem %s2224, 97 [#allocation4]
      %v2243 = vld [vmem:[%s2242] ss:$2 sm:$0xf]
      %2248 = vrot.lane.b32.xlu0 %v2237, 32
      %v2249 = vpop.permute.xlu0 %2248
      %2250 = vrot.lane.b32.xlu0 %v2239, 32
      %v2251 = vpop.permute.xlu0 %2250
      %2252 = vrot.lane.b32.xlu0 %v2241, 32
      %v2253 = vpop.permute.xlu0 %2252
      %2254 = vrot.lane.b32.xlu0 %v2243, 32
      %v2255 = vpop.permute.xlu0 %2254
      %2260 = vst.msk [vmem:[#allocation5 + $0xc] sm:$0xf] %vm1971, %v2249
      %2261 = vst.msk [vmem:[#allocation5 + $0x1c] sm:$0xf] %vm1971, %v2251
      %2262 = vst.msk [vmem:[#allocation5 + $0x2c] sm:$0xf] %vm1971, %v2253
      %2263 = vst.msk [vmem:[#allocation5 + $0x3c] sm:$0xf] %vm1971, %v2255
      %s2264 = scalar_lea.vmem %s2224, 2 [#allocation4]
      %v2265 = vld [vmem:[%s2264] ss:$2 sm:$0xf]
      %s2266 = scalar_lea.vmem %s2224, 34 [#allocation4]
      %v2267 = vld [vmem:[%s2266] ss:$2 sm:$0xf]
      %s2268 = scalar_lea.vmem %s2224, 66 [#allocation4]
      %v2269 = vld [vmem:[%s2268] ss:$2 sm:$0xf]
      %s2270 = scalar_lea.vmem %s2224, 98 [#allocation4]
      %v2271 = vld [vmem:[%s2270] ss:$2 sm:$0xf]
      %2276 = vrot.lane.b32.xlu0 %v2265, 64
      %v2277 = vpop.permute.xlu0 %2276
      %2278 = vrot.lane.b32.xlu0 %v2267, 64
      %v2279 = vpop.permute.xlu0 %2278
      %2280 = vrot.lane.b32.xlu0 %v2269, 64
      %v2281 = vpop.permute.xlu0 %2280
      %2282 = vrot.lane.b32.xlu0 %v2271, 64
      %v2283 = vpop.permute.xlu0 %2282
      %2288 = vst.msk [vmem:[#allocation5 + $0xc] sm:$0xf] %vm2000, %v2277
      %2289 = vst.msk [vmem:[#allocation5 + $0x1c] sm:$0xf] %vm2000, %v2279
      %2290 = vst.msk [vmem:[#allocation5 + $0x2c] sm:$0xf] %vm2000, %v2281
      %2291 = vst.msk [vmem:[#allocation5 + $0x3c] sm:$0xf] %vm2000, %v2283
      %s2292 = scalar_lea.vmem %s2224, 3 [#allocation4]
      %v2293 = vld [vmem:[%s2292] ss:$2 sm:$0xf]
      %s2294 = scalar_lea.vmem %s2224, 35 [#allocation4]
      %v2295 = vld [vmem:[%s2294] ss:$2 sm:$0xf]
      %s2296 = scalar_lea.vmem %s2224, 67 [#allocation4]
      %v2297 = vld [vmem:[%s2296] ss:$2 sm:$0xf]
      %s2298 = scalar_lea.vmem %s2224, 99 [#allocation4]
      %v2299 = vld [vmem:[%s2298] ss:$2 sm:$0xf]
      %2304 = vrot.lane.b32.xlu0 %v2293, 96
      %v2305 = vpop.permute.xlu0 %2304
      %2306 = vrot.lane.b32.xlu0 %v2295, 96
      %v2307 = vpop.permute.xlu0 %2306
      %2308 = vrot.lane.b32.xlu0 %v2297, 96
      %v2309 = vpop.permute.xlu0 %2308
      %2310 = vrot.lane.b32.xlu0 %v2299, 96
      %v2311 = vpop.permute.xlu0 %2310
      %2316 = vst.msk [vmem:[#allocation5 + $0xc] sm:$0xf] %vm2029, %v2305
      %2317 = vst.msk [vmem:[#allocation5 + $0x1c] sm:$0xf] %vm2029, %v2307
      %2318 = vst.msk [vmem:[#allocation5 + $0x2c] sm:$0xf] %vm2029, %v2309
      %2319 = vst.msk [vmem:[#allocation5 + $0x3c] sm:$0xf] %vm2029, %v2311
      %v2320 = vld [vmem:[#allocation5] sm:$0xff]
      %v2321 = vld [vmem:[#allocation5 + $0x8] sm:$0xff]
      %v2322 = vld [vmem:[#allocation5 + $0x10] sm:$0xff]
      %v2323 = vld [vmem:[#allocation5 + $0x18] sm:$0xff]
      %v2324 = vld [vmem:[#allocation5 + $0x20] sm:$0xff]
      %v2325 = vld [vmem:[#allocation5 + $0x28] sm:$0xff]
      %v2326 = vld [vmem:[#allocation5 + $0x30] sm:$0xff]
      %v2327 = vld [vmem:[#allocation5 + $0x38] sm:$0xff]
      %v2328 = vld [vmem:[%s5] sm:$0xff]
      %v2329 = vld [vmem:[%s5 + $0x8] sm:$0xff]
      %v2330 = vld [vmem:[%s5 + $0x10] sm:$0xff]
      %v2331 = vld [vmem:[%s5 + $0x18] sm:$0xff]
      %v2332 = vld [vmem:[%s5 + $0x20] sm:$0xff]
      %v2333 = vld [vmem:[%s5 + $0x28] sm:$0xff]
      %v2334 = vld [vmem:[%s5 + $0x30] sm:$0xff]
      %v2335 = vld [vmem:[%s5 + $0x38] sm:$0xff]
      %v2336 = vld [vmem:[%s5 + $0x40] sm:$0xff]
      %v2337 = vld [vmem:[%s5 + $0x48] sm:$0xff]
      %v2338 = vld [vmem:[%s5 + $0x50] sm:$0xff]
      %v2339 = vld [vmem:[%s5 + $0x58] sm:$0xff]
      %v2340 = vld [vmem:[%s5 + $0x60] sm:$0xff]
      %v2341 = vld [vmem:[%s5 + $0x68] sm:$0xff]
      %v2342 = vld [vmem:[%s5 + $0x70] sm:$0xff]
      %v2343 = vld [vmem:[%s5 + $0x78] sm:$0xff]
      %v2344 = vld [vmem:[%s5 + $0x80] sm:$0xff]
      %v2345 = vld [vmem:[%s5 + $0x88] sm:$0xff]
      %v2346 = vld [vmem:[%s5 + $0x90] sm:$0xff]
      %v2347 = vld [vmem:[%s5 + $0x98] sm:$0xff]
      %v2348 = vld [vmem:[%s5 + $0xa0] sm:$0xff]
      %v2349 = vld [vmem:[%s5 + $0xa8] sm:$0xff]
      %v2350 = vld [vmem:[%s5 + $0xb0] sm:$0xff]
      %v2351 = vld [vmem:[%s5 + $0xb8] sm:$0xff]
      %v2352 = vld [vmem:[%s5 + $0xc0] sm:$0xff]
      %v2353 = vld [vmem:[%s5 + $0xc8] sm:$0xff]
      %v2354 = vld [vmem:[%s5 + $0xd0] sm:$0xff]
      %v2355 = vld [vmem:[%s5 + $0xd8] sm:$0xff]
      %v2356 = vld [vmem:[%s5 + $0xe0] sm:$0xff]
      %v2357 = vld [vmem:[%s5 + $0xe8] sm:$0xff]
      %v2358 = vld [vmem:[%s5 + $0xf0] sm:$0xff]
      %v2359 = vld [vmem:[%s5 + $0xf8] sm:$0xff]
      %v2360 = vld [vmem:[%s5 + $0x100] sm:$0xff]
      %v2361 = vld [vmem:[%s5 + $0x108] sm:$0xff]
      %v2362 = vld [vmem:[%s5 + $0x110] sm:$0xff]
      %v2363 = vld [vmem:[%s5 + $0x118] sm:$0xff]
      %v2364 = vld [vmem:[%s5 + $0x120] sm:$0xff]
      %v2365 = vld [vmem:[%s5 + $0x128] sm:$0xff]
      %v2366 = vld [vmem:[%s5 + $0x130] sm:$0xff]
      %v2367 = vld [vmem:[%s5 + $0x138] sm:$0xff]
      %v2368 = vld [vmem:[%s5 + $0x140] sm:$0xff]
      %v2369 = vld [vmem:[%s5 + $0x148] sm:$0xff]
      %v2370 = vld [vmem:[%s5 + $0x150] sm:$0xff]
      %v2371 = vld [vmem:[%s5 + $0x158] sm:$0xff]
      %v2372 = vld [vmem:[%s5 + $0x160] sm:$0xff]
      %v2373 = vld [vmem:[%s5 + $0x168] sm:$0xff]
      %v2374 = vld [vmem:[%s5 + $0x170] sm:$0xff]
      %v2375 = vld [vmem:[%s5 + $0x178] sm:$0xff]
      %v2376 = vld [vmem:[%s5 + $0x180] sm:$0xff]
      %v2377 = vld [vmem:[%s5 + $0x188] sm:$0xff]
      %v2378 = vld [vmem:[%s5 + $0x190] sm:$0xff]
      %v2379 = vld [vmem:[%s5 + $0x198] sm:$0xff]
      %v2380 = vld [vmem:[%s5 + $0x1a0] sm:$0xff]
      %v2381 = vld [vmem:[%s5 + $0x1a8] sm:$0xff]
      %v2382 = vld [vmem:[%s5 + $0x1b0] sm:$0xff]
      %v2383 = vld [vmem:[%s5 + $0x1b8] sm:$0xff]
      %v2384 = vld [vmem:[%s5 + $0x1c0] sm:$0xff]
      %v2385 = vld [vmem:[%s5 + $0x1c8] sm:$0xff]
      %v2386 = vld [vmem:[%s5 + $0x1d0] sm:$0xff]
      %v2387 = vld [vmem:[%s5 + $0x1d8] sm:$0xff]
      %v2388 = vld [vmem:[%s5 + $0x1e0] sm:$0xff]
      %v2389 = vld [vmem:[%s5 + $0x1e8] sm:$0xff]
      %v2390 = vld [vmem:[%s5 + $0x1f0] sm:$0xff]
      %v2391 = vld [vmem:[%s5 + $0x1f8] sm:$0xff]
      %v2392 = vld [vmem:[%s6] sm:$0x1]
      %v2394 = vperm.slane %v2392, 0
      %2404 = vst [vmem:[#allocation1] ss:$2 sm:$0xff] %v2320
      %s2405 = scalar_lea.vmem [#allocation1], 1
      %2406 = vst [vmem:[%s2405] ss:$2 sm:$0xff] %v2322
      %s2407 = scalar_lea.vmem [#allocation1], 16
      %2408 = vst [vmem:[%s2407] ss:$2 sm:$0xff] %v2321
      %s2409 = scalar_lea.vmem [#allocation1], 17
      %2410 = vst [vmem:[%s2409] ss:$2 sm:$0xff] %v2323
      %s2411 = scalar_lea.vmem [#allocation1], 32
      %2412 = vst [vmem:[%s2411] ss:$2 sm:$0xff] %v2324
      %s2413 = scalar_lea.vmem [#allocation1], 33
      %2414 = vst [vmem:[%s2413] ss:$2 sm:$0xff] %v2326
      %s2415 = scalar_lea.vmem [#allocation1], 48
      %2416 = vst [vmem:[%s2415] ss:$2 sm:$0xff] %v2325
      %s2417 = scalar_lea.vmem [#allocation1], 49
      %2418 = vst [vmem:[%s2417] ss:$2 sm:$0xff] %v2327
      %v2419 = vld.sshfl [vmem:[#allocation1] sm:$0xff pattern:$0x75316420]
      %v2420 = vld.sshfl [vmem:[#allocation1 + $0x8] sm:$0xff pattern:$0x75316420]
      %v2421 = vld.sshfl [vmem:[#allocation1 + $0x10] sm:$0xff pattern:$0x75316420]
      %v2422 = vld.sshfl [vmem:[#allocation1 + $0x18] sm:$0xff pattern:$0x75316420]
      %v2423 = vld.sshfl [vmem:[#allocation1 + $0x20] sm:$0xff pattern:$0x75316420]
      %v2424 = vld.sshfl [vmem:[#allocation1 + $0x28] sm:$0xff pattern:$0x75316420]
      %v2425 = vld.sshfl [vmem:[#allocation1 + $0x30] sm:$0xff pattern:$0x75316420]
      %v2426 = vld.sshfl [vmem:[#allocation1 + $0x38] sm:$0xff pattern:$0x75316420]
      %2435 = vmatpush.msra.mxu0 %v2343
      %2436 = vmatpush.msra.mxu0 %v2342
      %2437 = vmatpush.msra.mxu0 %v2341
      %2438 = vmatpush.msra.mxu0 %v2340
      %2439 = vmatpush.msra.mxu0 %v2339
      %2440 = vmatpush.msra.mxu0 %v2338
      %2441 = vmatpush.msra.mxu0 %v2337
      %2442 = vmatpush.msra.mxu0 %v2336
      %2443 = vmatpush.msra.mxu0 %v2335
      %2444 = vmatpush.msra.mxu0 %v2334
      %2445 = vmatpush.msra.mxu0 %v2333
      %2446 = vmatpush.msra.mxu0 %v2332
      %2447 = vmatpush.msra.mxu0 %v2331
      %2448 = vmatpush.msra.mxu0 %v2330
      %2449 = vmatpush.msra.mxu0 %v2329
      %2450 = vmatpush.msra.mxu0 %v2328
      %2451 = vmatmul.f32.gmra.mxu0 %v2419
      %v2452 = vpop.f32.mrf.mxu0
      %v2453 = vadd.f32 %v2394, %v2452
      %2454 = vmatmul.f32.gmra.mxu0 %v2423
      %v2455 = vpop.f32.mrf.mxu0
      %v2456 = vadd.f32 %v2394, %v2455
      %2457 = vdwg.mxu0
      %2458 = vmatpush.msra.mxu0 %v2359
      %2459 = vmatpush.msra.mxu0 %v2358
      %2460 = vmatpush.msra.mxu0 %v2357
      %2461 = vmatpush.msra.mxu0 %v2356
      %2462 = vmatpush.msra.mxu0 %v2355
      %2463 = vmatpush.msra.mxu0 %v2354
      %2464 = vmatpush.msra.mxu0 %v2353
      %2465 = vmatpush.msra.mxu0 %v2352
      %2466 = vmatpush.msra.mxu0 %v2351
      %2467 = vmatpush.msra.mxu0 %v2350
      %2468 = vmatpush.msra.mxu0 %v2349
      %2469 = vmatpush.msra.mxu0 %v2348
      %2470 = vmatpush.msra.mxu0 %v2347
      %2471 = vmatpush.msra.mxu0 %v2346
      %2472 = vmatpush.msra.mxu0 %v2345
      %2473 = vmatpush.msra.mxu0 %v2344
      %2474 = vmatmul.f32.gmra.mxu0 %v2420
      %v2475 = vpop.f32.mrf.mxu0
      %v2476 = vadd.f32 %v2453, %v2475
      %2477 = vmatmul.f32.gmra.mxu0 %v2424
      %v2478 = vpop.f32.mrf.mxu0
      %v2479 = vadd.f32 %v2456, %v2478
      %2480 = vdwg.mxu0
      %2481 = vmatpush.msra.mxu0 %v2375
      %2482 = vmatpush.msra.mxu0 %v2374
      %2483 = vmatpush.msra.mxu0 %v2373
      %2484 = vmatpush.msra.mxu0 %v2372
      %2485 = vmatpush.msra.mxu0 %v2371
      %2486 = vmatpush.msra.mxu0 %v2370
      %2487 = vmatpush.msra.mxu0 %v2369
      %2488 = vmatpush.msra.mxu0 %v2368
      %2489 = vmatpush.msra.mxu0 %v2367
      %2490 = vmatpush.msra.mxu0 %v2366
      %2491 = vmatpush.msra.mxu0 %v2365
      %2492 = vmatpush.msra.mxu0 %v2364
      %2493 = vmatpush.msra.mxu0 %v2363
      %2494 = vmatpush.msra.mxu0 %v2362
      %2495 = vmatpush.msra.mxu0 %v2361
      %2496 = vmatpush.msra.mxu0 %v2360
      %2497 = vmatmul.f32.gmra.mxu0 %v2421
      %v2498 = vpop.f32.mrf.mxu0
      %v2499 = vadd.f32 %v2476, %v2498
      %2500 = vmatmul.f32.gmra.mxu0 %v2425
      %v2501 = vpop.f32.mrf.mxu0
      %v2502 = vadd.f32 %v2479, %v2501
      %2503 = vdwg.mxu0
      %2504 = vmatpush.msra.mxu0 %v2391
      %2505 = vmatpush.msra.mxu0 %v2390
      %2506 = vmatpush.msra.mxu0 %v2389
      %2507 = vmatpush.msra.mxu0 %v2388
      %2508 = vmatpush.msra.mxu0 %v2387
      %2509 = vmatpush.msra.mxu0 %v2386
      %2510 = vmatpush.msra.mxu0 %v2385
      %2511 = vmatpush.msra.mxu0 %v2384
      %2512 = vmatpush.msra.mxu0 %v2383
      %2513 = vmatpush.msra.mxu0 %v2382
      %2514 = vmatpush.msra.mxu0 %v2381
      %2515 = vmatpush.msra.mxu0 %v2380
      %2516 = vmatpush.msra.mxu0 %v2379
      %2517 = vmatpush.msra.mxu0 %v2378
      %2518 = vmatpush.msra.mxu0 %v2377
      %2519 = vmatpush.msra.mxu0 %v2376
      %2520 = vmatmul.f32.gmra.mxu0 %v2422
      %v2521 = vpop.f32.mrf.mxu0
      %v2522 = vadd.f32 %v2499, %v2521
      %2523 = vmatmul.f32.gmra.mxu0 %v2426
      %v2524 = vpop.f32.mrf.mxu0
      %v2525 = vadd.f32 %v2502, %v2524
      %2526 = vdwg.mxu0
      %vm2527 = vcmask 523264
      %v2528 = vsel %vm2527, %v2522, 0.0
      %v2529 = vsel %vm2527, %v2525, 0.0
      %v2530 = vadd.f32 %v2528, %v2529
      %v2531 = vrot.slane %v2530, 4
      %v2532 = vadd.f32 %v2530, %v2531
      %v2533 = vrot.slane %v2532, 2
      %v2534 = vadd.f32 %v2532, %v2533
      %v2535 = vrot.slane %v2534, 1
      %v2536 = vadd.f32 %v2534, %v2535
      %v2537 = vmul.f32 %v2536, 0.0625
      %v2538 = vmul.f32 %v2522, %v2522
      %v2539 = vmul.f32 %v2525, %v2525
      %v2540 = vsel %vm2527, %v2538, 0.0
      %v2541 = vsel %vm2527, %v2539, 0.0
      %v2542 = vadd.f32 %v2540, %v2541
      %v2543 = vrot.slane %v2542, 4
      %v2544 = vadd.f32 %v2542, %v2543
      %v2545 = vrot.slane %v2544, 2
      %v2546 = vadd.f32 %v2544, %v2545
      %v2547 = vrot.slane %v2546, 1
      %v2548 = vadd.f32 %v2546, %v2547
      %v2549 = vmul.f32 %v2548, 0.0625
      %v2550 = vmul.f32 %v2537, %v2537
      %v2551 = vsub.f32 %v2549, %v2550
      %v2552 = vmax.f32 %v2551, 0.0
      %v2553 = vsub.f32 %v2522, %v2537
      %v2554 = vsub.f32 %v2525, %v2537
      %v2555 = vadd.f32 %v2552, 1e-05
      %v2556 = vrsqrt.pop %v2555
      %v2557 = vmul.f32 %v2556, %v2555
      %v2558 = vmul.f32 %v2557, %v2556
      %v2559 = vmul.f32 0.5, %v2558
      %v2560 = vsub.f32 1.5, %v2559
      %v2561 = vmul.f32 %v2556, %v2560
      %vm2562 = vweird.f32 %v2555
      %vm2563 = vweird.f32 %v2556
      %vm2564 = vmor %vm2562, %vm2563
      %v2565 = vsel %vm2564, %v2556, %v2561
      %v2566 = vmul.f32 %v2553, %v2565
      %v2567 = vmul.f32 %v2554, %v2565
      %vm2568 = vcmp.ge.f32.partialorder %v2566, 0.0
      %vm2569 = vcmp.ge.f32.partialorder %v2567, 0.0
      %v2570 = vmul.f32 %v2566, 0.2
      %v2571 = vmul.f32 %v2567, 0.2
      %v2572 = vsel %vm2568, %v2566, %v2570
      %v2573 = vsel %vm2569, %v2567, %v2571
      %v2576 = vrot.slane %v2572, 4
      %v2577 = vrot.slane %v2573, 4
      %s2580 = scalar_lea.vmem [#allocation6], 8
      %vm2581 = vcmask 519168
      %2582 = vst.msk [vmem:[%s2580 + $0x1] sm:$0xf] %vm2581, %v2572
      %2583 = vst.msk [vmem:[%s2580 + $0x9] sm:$0xf] %vm2581, %v2576
      %2584 = vst.msk [vmem:[%s2580 + $0x11] sm:$0xf] %vm2581, %v2573
      %2585 = vst.msk [vmem:[%s2580 + $0x19] sm:$0xf] %vm2581, %v2577
      %vm2586 = vcmask 517121
      %2587 = vst.msk [vmem:[%s2580 - $0x1] sm:$0x2] %vm2586, %v2572
      %2588 = vst.msk [vmem:[%s2580 + $0x7] sm:$0x2] %vm2586, %v2576
      %2589 = vst.msk [vmem:[%s2580 + $0xf] sm:$0x2] %vm2586, %v2573
      %2590 = vst.msk [vmem:[%s2580 + $0x17] sm:$0x2] %vm2586, %v2577
      %vm2591 = vcmask 518146
      %2592 = vst.msk [vmem:[%s2580 + $0x3] sm:$0x4] %vm2591, %v2572
      %2593 = vst.msk [vmem:[%s2580 + $0xb] sm:$0x4] %vm2591, %v2576
      %2594 = vst.msk [vmem:[%s2580 + $0x13] sm:$0x4] %vm2591, %v2573
      %2595 = vst.msk [vmem:[%s2580 + $0x1b] sm:$0x4] %vm2591, %v2577
      %s2596 = scalar_lea.vmem [#allocation6], 16
      %v2597 = vld [vmem:[%s2596] sm:$0x3f]
      %vm2598 = vcmask 521216
      %2599 = vst.msk [vmem:[#allocation6] sm:$0x3f] %vm2598, %v2597
      %s2600 = scalar_lea.vmem [#allocation6], 24
      %v2601 = vld [vmem:[%s2600] sm:$0x3f]
      %s2602 = scalar_lea.vmem [#allocation6], 40
      %2603 = vst.msk [vmem:[%s2602] sm:$0x3f] %vm2598, %v2601
      %v2604 = vld [vmem:[#allocation6] sm:$0x7]
      %v2605 = vld [vmem:[#allocation6 + $0x8] sm:$0x7]
      %v2606 = vld [vmem:[#allocation6 + $0x10] sm:$0x7]
      %vm2607 = vcmask 518144
      %2608 = vst.msk [vmem:[#allocation7] sm:$0x7] %vm2607, %v2604
      %2609 = vst.msk [vmem:[#allocation7 + $0x20] sm:$0x7] %vm2607, %v2605
      %2610 = vst.msk [vmem:[#allocation7 + $0x40] sm:$0x7] %vm2607, %v2606
      %v2611 = vld [vmem:[#allocation6 + $0x1] sm:$0x7]
      %v2612 = vld [vmem:[#allocation6 + $0x9] sm:$0x7]
      %v2613 = vld [vmem:[#allocation6 + $0x11] sm:$0x7]
      %2617 = vrot.lane.b32.xlu0 %v2611, 64
      %v2618 = vpop.permute.xlu0 %2617
      %2619 = vrot.lane.b32.xlu0 %v2612, 64
      %v2620 = vpop.permute.xlu0 %2619
      %2621 = vrot.lane.b32.xlu0 %v2613, 64
      %v2622 = vpop.permute.xlu0 %2621
      %vm2626 = vcmask 1042944
      %2627 = vst.msk [vmem:[#allocation7] sm:$0x7] %vm2626, %v2618
      %2628 = vst.msk [vmem:[#allocation7 + $0x20] sm:$0x7] %vm2626, %v2620
      %2629 = vst.msk [vmem:[#allocation7 + $0x40] sm:$0x7] %vm2626, %v2622
      %v2630 = vld [vmem:[#allocation6 + $0x2] sm:$0x7]
      %v2631 = vld [vmem:[#allocation6 + $0xa] sm:$0x7]
      %v2632 = vld [vmem:[#allocation6 + $0x12] sm:$0x7]
      %2633 = vst.msk [vmem:[#allocation7 + $0x4] sm:$0x7] %vm2607, %v2630
      %2634 = vst.msk [vmem:[#allocation7 + $0x24] sm:$0x7] %vm2607, %v2631
      %2635 = vst.msk [vmem:[#allocation7 + $0x44] sm:$0x7] %vm2607, %v2632
      %v2636 = vld [vmem:[#allocation6 + $0x3] sm:$0x7]
      %v2637 = vld [vmem:[#allocation6 + $0xb] sm:$0x7]
      %v2638 = vld [vmem:[#allocation6 + $0x13] sm:$0x7]
      %2642 = vrot.lane.b32.xlu0 %v2636, 64
      %v2643 = vpop.permute.xlu0 %2642
      %2644 = vrot.lane.b32.xlu0 %v2637, 64
      %v2645 = vpop.permute.xlu0 %2644
      %2646 = vrot.lane.b32.xlu0 %v2638, 64
      %v2647 = vpop.permute.xlu0 %2646
      %2651 = vst.msk [vmem:[#allocation7 + $0x4] sm:$0x7] %vm2626, %v2643
      %2652 = vst.msk [vmem:[#allocation7 + $0x24] sm:$0x7] %vm2626, %v2645
      %2653 = vst.msk [vmem:[#allocation7 + $0x44] sm:$0x7] %vm2626, %v2647
      %v2654 = vld [vmem:[%s2580] sm:$0x7]
      %v2655 = vld [vmem:[%s2580 + $0x8] sm:$0x7]
      %v2656 = vld [vmem:[%s2580 + $0x10] sm:$0x7]
      %2657 = vst.msk [vmem:[#allocation7 + $0x8] sm:$0x7] %vm2607, %v2654
      %2658 = vst.msk [vmem:[#allocation7 + $0x28] sm:$0x7] %vm2607, %v2655
      %2659 = vst.msk [vmem:[#allocation7 + $0x48] sm:$0x7] %vm2607, %v2656
      %v2660 = vld [vmem:[%s2580 + $0x1] sm:$0x7]
      %v2661 = vld [vmem:[%s2580 + $0x9] sm:$0x7]
      %v2662 = vld [vmem:[%s2580 + $0x11] sm:$0x7]
      %2666 = vrot.lane.b32.xlu0 %v2660, 64
      %v2667 = vpop.permute.xlu0 %2666
      %2668 = vrot.lane.b32.xlu0 %v2661, 64
      %v2669 = vpop.permute.xlu0 %2668
      %2670 = vrot.lane.b32.xlu0 %v2662, 64
      %v2671 = vpop.permute.xlu0 %2670
      %2675 = vst.msk [vmem:[#allocation7 + $0x8] sm:$0x7] %vm2626, %v2667
      %2676 = vst.msk [vmem:[#allocation7 + $0x28] sm:$0x7] %vm2626, %v2669
      %2677 = vst.msk [vmem:[#allocation7 + $0x48] sm:$0x7] %vm2626, %v2671
      %v2678 = vld [vmem:[%s2580 + $0x2] sm:$0x7]
      %v2679 = vld [vmem:[%s2580 + $0xa] sm:$0x7]
      %v2680 = vld [vmem:[%s2580 + $0x12] sm:$0x7]
      %2681 = vst.msk [vmem:[#allocation7 + $0xc] sm:$0x7] %vm2607, %v2678
      %2682 = vst.msk [vmem:[#allocation7 + $0x2c] sm:$0x7] %vm2607, %v2679
      %2683 = vst.msk [vmem:[#allocation7 + $0x4c] sm:$0x7] %vm2607, %v2680
      %v2684 = vld [vmem:[%s2580 + $0x3] sm:$0x7]
      %v2685 = vld [vmem:[%s2580 + $0xb] sm:$0x7]
      %v2686 = vld [vmem:[%s2580 + $0x13] sm:$0x7]
      %2690 = vrot.lane.b32.xlu0 %v2684, 64
      %v2691 = vpop.permute.xlu0 %2690
      %2692 = vrot.lane.b32.xlu0 %v2685, 64
      %v2693 = vpop.permute.xlu0 %2692
      %2694 = vrot.lane.b32.xlu0 %v2686, 64
      %v2695 = vpop.permute.xlu0 %2694
      %2699 = vst.msk [vmem:[#allocation7 + $0xc] sm:$0x7] %vm2626, %v2691
      %2700 = vst.msk [vmem:[#allocation7 + $0x2c] sm:$0x7] %vm2626, %v2693
      %2701 = vst.msk [vmem:[#allocation7 + $0x4c] sm:$0x7] %vm2626, %v2695
      %v2702 = vld [vmem:[%s2596] sm:$0x7]
      %v2703 = vld [vmem:[%s2596 + $0x8] sm:$0x7]
      %v2704 = vld [vmem:[%s2596 + $0x10] sm:$0x7]
      %2705 = vst.msk [vmem:[#allocation7 + $0x10] sm:$0x7] %vm2607, %v2702
      %2706 = vst.msk [vmem:[#allocation7 + $0x30] sm:$0x7] %vm2607, %v2703
      %2707 = vst.msk [vmem:[#allocation7 + $0x50] sm:$0x7] %vm2607, %v2704
      %v2708 = vld [vmem:[%s2596 + $0x1] sm:$0x7]
      %v2709 = vld [vmem:[%s2596 + $0x9] sm:$0x7]
      %v2710 = vld [vmem:[%s2596 + $0x11] sm:$0x7]
      %2714 = vrot.lane.b32.xlu0 %v2708, 64
      %v2715 = vpop.permute.xlu0 %2714
      %2716 = vrot.lane.b32.xlu0 %v2709, 64
      %v2717 = vpop.permute.xlu0 %2716
      %2718 = vrot.lane.b32.xlu0 %v2710, 64
      %v2719 = vpop.permute.xlu0 %2718
      %2723 = vst.msk [vmem:[#allocation7 + $0x10] sm:$0x7] %vm2626, %v2715
      %2724 = vst.msk [vmem:[#allocation7 + $0x30] sm:$0x7] %vm2626, %v2717
      %2725 = vst.msk [vmem:[#allocation7 + $0x50] sm:$0x7] %vm2626, %v2719
      %v2726 = vld [vmem:[%s2596 + $0x2] sm:$0x7]
      %v2727 = vld [vmem:[%s2596 + $0xa] sm:$0x7]
      %v2728 = vld [vmem:[%s2596 + $0x12] sm:$0x7]
      %2729 = vst.msk [vmem:[#allocation7 + $0x14] sm:$0x7] %vm2607, %v2726
      %2730 = vst.msk [vmem:[#allocation7 + $0x34] sm:$0x7] %vm2607, %v2727
      %2731 = vst.msk [vmem:[#allocation7 + $0x54] sm:$0x7] %vm2607, %v2728
      %v2732 = vld [vmem:[%s2596 + $0x3] sm:$0x7]
      %v2733 = vld [vmem:[%s2596 + $0xb] sm:$0x7]
      %v2734 = vld [vmem:[%s2596 + $0x13] sm:$0x7]
      %2738 = vrot.lane.b32.xlu0 %v2732, 64
      %v2739 = vpop.permute.xlu0 %2738
      %2740 = vrot.lane.b32.xlu0 %v2733, 64
      %v2741 = vpop.permute.xlu0 %2740
      %2742 = vrot.lane.b32.xlu0 %v2734, 64
      %v2743 = vpop.permute.xlu0 %2742
      %2747 = vst.msk [vmem:[#allocation7 + $0x14] sm:$0x7] %vm2626, %v2739
      %2748 = vst.msk [vmem:[#allocation7 + $0x34] sm:$0x7] %vm2626, %v2741
      %2749 = vst.msk [vmem:[#allocation7 + $0x54] sm:$0x7] %vm2626, %v2743
      %v2750 = vld [vmem:[%s2600] sm:$0x7]
      %v2751 = vld [vmem:[%s2600 + $0x8] sm:$0x7]
      %v2752 = vld [vmem:[%s2600 + $0x10] sm:$0x7]
      %2753 = vst.msk [vmem:[#allocation7 + $0x18] sm:$0x7] %vm2607, %v2750
      %2754 = vst.msk [vmem:[#allocation7 + $0x38] sm:$0x7] %vm2607, %v2751
      %2755 = vst.msk [vmem:[#allocation7 + $0x58] sm:$0x7] %vm2607, %v2752
      %v2756 = vld [vmem:[%s2600 + $0x1] sm:$0x7]
      %v2757 = vld [vmem:[%s2600 + $0x9] sm:$0x7]
      %v2758 = vld [vmem:[%s2600 + $0x11] sm:$0x7]
      %2762 = vrot.lane.b32.xlu0 %v2756, 64
      %v2763 = vpop.permute.xlu0 %2762
      %2764 = vrot.lane.b32.xlu0 %v2757, 64
      %v2765 = vpop.permute.xlu0 %2764
      %2766 = vrot.lane.b32.xlu0 %v2758, 64
      %v2767 = vpop.permute.xlu0 %2766
      %2771 = vst.msk [vmem:[#allocation7 + $0x18] sm:$0x7] %vm2626, %v2763
      %2772 = vst.msk [vmem:[#allocation7 + $0x38] sm:$0x7] %vm2626, %v2765
      %2773 = vst.msk [vmem:[#allocation7 + $0x58] sm:$0x7] %vm2626, %v2767
      %v2774 = vld [vmem:[%s2600 + $0x2] sm:$0x7]
      %v2775 = vld [vmem:[%s2600 + $0xa] sm:$0x7]
      %v2776 = vld [vmem:[%s2600 + $0x12] sm:$0x7]
      %2777 = vst.msk [vmem:[#allocation7 + $0x1c] sm:$0x7] %vm2607, %v2774
      %2778 = vst.msk [vmem:[#allocation7 + $0x3c] sm:$0x7] %vm2607, %v2775
      %2779 = vst.msk [vmem:[#allocation7 + $0x5c] sm:$0x7] %vm2607, %v2776
      %v2780 = vld [vmem:[%s2600 + $0x3] sm:$0x7]
      %v2781 = vld [vmem:[%s2600 + $0xb] sm:$0x7]
      %v2782 = vld [vmem:[%s2600 + $0x13] sm:$0x7]
      %2786 = vrot.lane.b32.xlu0 %v2780, 64
      %v2787 = vpop.permute.xlu0 %2786
      %2788 = vrot.lane.b32.xlu0 %v2781, 64
      %v2789 = vpop.permute.xlu0 %2788
      %2790 = vrot.lane.b32.xlu0 %v2782, 64
      %v2791 = vpop.permute.xlu0 %2790
      %2795 = vst.msk [vmem:[#allocation7 + $0x1c] sm:$0x7] %vm2626, %v2787
      %2796 = vst.msk [vmem:[#allocation7 + $0x3c] sm:$0x7] %vm2626, %v2789
      %2797 = vst.msk [vmem:[#allocation7 + $0x5c] sm:$0x7] %vm2626, %v2791
      %v2798 = vld [vmem:[#allocation7] sm:$0x77]
      %v2799 = vld [vmem:[#allocation7 + $0x8] sm:$0x77]
      %v2800 = vld [vmem:[#allocation7 + $0x10] sm:$0x77]
      %v2801 = vld [vmem:[#allocation7 + $0x18] sm:$0x77]
      %v2802 = vld [vmem:[#allocation7 + $0x20] sm:$0x77]
      %v2803 = vld [vmem:[#allocation7 + $0x28] sm:$0x77]
      %v2804 = vld [vmem:[#allocation7 + $0x30] sm:$0x77]
      %v2805 = vld [vmem:[#allocation7 + $0x38] sm:$0x77]
      %v2806 = vld [vmem:[#allocation7 + $0x40] sm:$0x77]
      %v2807 = vld [vmem:[#allocation7 + $0x48] sm:$0x77]
      %v2808 = vld [vmem:[#allocation7 + $0x50] sm:$0x77]
      %v2809 = vld [vmem:[#allocation7 + $0x58] sm:$0x77]
      %v2822 = vrot.slane %v2798, 3
      %v2823 = vrot.slane %v2799, 6
      %v2824 = vrot.slane %v2799, 1
      %v2825 = vrot.slane %v2800, 4
      %v2826 = vrot.slane %v2800, 7
      %v2827 = vrot.slane %v2801, 2
      %v2828 = vrot.slane %v2801, 5
      %v2829 = vrot.slane %v2802, 3
      %v2830 = vrot.slane %v2803, 6
      %v2831 = vrot.slane %v2803, 1
      %v2832 = vrot.slane %v2804, 4
      %v2833 = vrot.slane %v2804, 7
      %v2834 = vrot.slane %v2805, 2
      %v2835 = vrot.slane %v2805, 5
      %v2836 = vrot.slane %v2806, 3
      %v2837 = vrot.slane %v2807, 6
      %v2838 = vrot.slane %v2807, 1
      %v2839 = vrot.slane %v2808, 4
      %v2840 = vrot.slane %v2808, 7
      %v2841 = vrot.slane %v2809, 2
      %v2842 = vrot.slane %v2809, 5
      %vm2843 = vcmask 1040384
      %v2844 = vsel %vm2843, %v2798, %v2822
      %vm2845 = vcmask 1042434
      %v2846 = vsel %vm2845, %v2823, %v2824
      %vm2847 = vcmask 1041408
      %v2848 = vsel %vm2847, %v2844, %v2846
      %vm2849 = vcmask 1044484
      %v2850 = vsel %vm2849, %v2825, %v2826
      %vm2851 = vcmask 1046534
      %v2852 = vsel %vm2851, %v2827, %v2828
      %vm2853 = vcmask 1045508
      %v2854 = vsel %vm2853, %v2850, %v2852
      %vm2855 = vcmask 1043456
      %v2856 = vsel %vm2855, %v2848, %v2854
      %vm2857 = vcmask 1041409
      %v2858 = vsel %vm2857, %v2798, %v2822
      %vm2859 = vcmask 1043459
      %v2860 = vsel %vm2859, %v2823, %v2824
      %vm2861 = vcmask 1042433
      %v2862 = vsel %vm2861, %v2858, %v2860
      %vm2863 = vcmask 1045509
      %v2864 = vsel %vm2863, %v2825, %v2826
      %vm2865 = vcmask 1046528
      %v2866 = vsel %vm2865, %v2828, %v2827
      %vm2867 = vcmask 1046533
      %v2868 = vsel %vm2867, %v2864, %v2866
      %vm2869 = vcmask 1044481
      %v2870 = vsel %vm2869, %v2862, %v2868
      %v2871 = vrot.slane %v2870, 1
      %v2872 = vsel %vm2845, %v2798, %v2822
      %v2873 = vsel %vm2849, %v2823, %v2824
      %vm2874 = vcmask 1043458
      %v2875 = vsel %vm2874, %v2872, %v2873
      %v2876 = vsel %vm2851, %v2825, %v2826
      %v2877 = vsel %vm2843, %v2827, %v2828
      %vm2878 = vcmask 1045504
      %v2879 = vsel %vm2878, %v2877, %v2876
      %vm2880 = vcmask 1045506
      %v2881 = vsel %vm2880, %v2875, %v2879
      %v2882 = vrot.slane %v2881, 2
      %v2883 = vsel %vm2843, %v2802, %v2829
      %v2884 = vsel %vm2845, %v2830, %v2831
      %v2885 = vsel %vm2847, %v2883, %v2884
      %v2886 = vsel %vm2849, %v2832, %v2833
      %v2887 = vsel %vm2851, %v2834, %v2835
      %v2888 = vsel %vm2853, %v2886, %v2887
      %v2889 = vsel %vm2855, %v2885, %v2888
      %v2890 = vsel %vm2857, %v2802, %v2829
      %v2891 = vsel %vm2859, %v2830, %v2831
      %v2892 = vsel %vm2861, %v2890, %v2891
      %v2893 = vsel %vm2863, %v2832, %v2833
      %v2894 = vsel %vm2865, %v2835, %v2834
      %v2895 = vsel %vm2867, %v2893, %v2894
      %v2896 = vsel %vm2869, %v2892, %v2895
      %v2897 = vrot.slane %v2896, 1
      %v2898 = vsel %vm2845, %v2802, %v2829
      %v2899 = vsel %vm2849, %v2830, %v2831
      %v2900 = vsel %vm2874, %v2898, %v2899
      %v2901 = vsel %vm2851, %v2832, %v2833
      %v2902 = vsel %vm2843, %v2834, %v2835
      %v2903 = vsel %vm2878, %v2902, %v2901
      %v2904 = vsel %vm2880, %v2900, %v2903
      %v2905 = vrot.slane %v2904, 2
      %v2906 = vsel %vm2843, %v2806, %v2836
      %v2907 = vsel %vm2845, %v2837, %v2838
      %v2908 = vsel %vm2847, %v2906, %v2907
      %v2909 = vsel %vm2849, %v2839, %v2840
      %v2910 = vsel %vm2851, %v2841, %v2842
      %v2911 = vsel %vm2853, %v2909, %v2910
      %v2912 = vsel %vm2855, %v2908, %v2911
      %v2913 = vsel %vm2857, %v2806, %v2836
      %v2914 = vsel %vm2859, %v2837, %v2838
      %v2915 = vsel %vm2861, %v2913, %v2914
      %v2916 = vsel %vm2863, %v2839, %v2840
      %v2917 = vsel %vm2865, %v2842, %v2841
      %v2918 = vsel %vm2867, %v2916, %v2917
      %v2919 = vsel %vm2869, %v2915, %v2918
      %v2920 = vrot.slane %v2919, 1
      %v2921 = vsel %vm2845, %v2806, %v2836
      %v2922 = vsel %vm2849, %v2837, %v2838
      %v2923 = vsel %vm2874, %v2921, %v2922
      %v2924 = vsel %vm2851, %v2839, %v2840
      %v2925 = vsel %vm2843, %v2841, %v2842
      %v2926 = vsel %vm2878, %v2925, %v2924
      %v2927 = vsel %vm2880, %v2923, %v2926
      %v2928 = vrot.slane %v2927, 2
      %v2929 = vld [vmem:[%s7] sm:$0xff]
      %v2930 = vld [vmem:[%s7 + $0x8] sm:$0xff]
      %v2931 = vld [vmem:[%s7 + $0x10] sm:$0xff]
      %v2932 = vld [vmem:[%s7 + $0x18] sm:$0xff]
      %v2933 = vld [vmem:[%s7 + $0x20] sm:$0xff]
      %v2934 = vld [vmem:[%s7 + $0x28] sm:$0xff]
      %v2935 = vld [vmem:[%s7 + $0x30] sm:$0xff]
      %v2936 = vld [vmem:[%s7 + $0x38] sm:$0xff]
      %v2937 = vld [vmem:[%s7 + $0x40] sm:$0xff]
      %v2938 = vld [vmem:[%s7 + $0x48] sm:$0xff]
      %v2939 = vld [vmem:[%s7 + $0x50] sm:$0xff]
      %v2940 = vld [vmem:[%s7 + $0x58] sm:$0xff]
      %v2941 = vld [vmem:[%s7 + $0x60] sm:$0xff]
      %v2942 = vld [vmem:[%s7 + $0x68] sm:$0xff]
      %v2943 = vld [vmem:[%s7 + $0x70] sm:$0xff]
      %v2944 = vld [vmem:[%s7 + $0x78] sm:$0xff]
      %v2945 = vld [vmem:[%s7 + $0x80] sm:$0xff]
      %v2946 = vld [vmem:[%s7 + $0x88] sm:$0xff]
      %v2947 = vld [vmem:[%s7 + $0x90] sm:$0xff]
      %v2948 = vld [vmem:[%s7 + $0x98] sm:$0xff]
      %v2949 = vld [vmem:[%s7 + $0xa0] sm:$0xff]
      %v2950 = vld [vmem:[%s7 + $0xa8] sm:$0xff]
      %v2951 = vld [vmem:[%s7 + $0xb0] sm:$0xff]
      %v2952 = vld [vmem:[%s7 + $0xb8] sm:$0xff]
      %v2953 = vld [vmem:[%s7 + $0xc0] sm:$0xff]
      %v2954 = vld [vmem:[%s7 + $0xc8] sm:$0xff]
      %v2955 = vld [vmem:[%s7 + $0xd0] sm:$0xff]
      %v2956 = vld [vmem:[%s7 + $0xd8] sm:$0xff]
      %v2957 = vld [vmem:[%s7 + $0xe0] sm:$0xff]
      %v2958 = vld [vmem:[%s7 + $0xe8] sm:$0xff]
      %v2959 = vld [vmem:[%s7 + $0xf0] sm:$0xff]
      %v2960 = vld [vmem:[%s7 + $0xf8] sm:$0xff]
      %v2961 = vld [vmem:[%s7 + $0x100] sm:$0xff]
      %v2962 = vld [vmem:[%s7 + $0x108] sm:$0xff]
      %v2963 = vld [vmem:[%s7 + $0x110] sm:$0xff]
      %v2964 = vld [vmem:[%s7 + $0x118] sm:$0xff]
      %v2965 = vld [vmem:[%s7 + $0x120] sm:$0xff]
      %v2966 = vld [vmem:[%s7 + $0x128] sm:$0xff]
      %v2967 = vld [vmem:[%s7 + $0x130] sm:$0xff]
      %v2968 = vld [vmem:[%s7 + $0x138] sm:$0xff]
      %v2969 = vld [vmem:[%s7 + $0x140] sm:$0xff]
      %v2970 = vld [vmem:[%s7 + $0x148] sm:$0xff]
      %v2971 = vld [vmem:[%s7 + $0x150] sm:$0xff]
      %v2972 = vld [vmem:[%s7 + $0x158] sm:$0xff]
      %v2973 = vld [vmem:[%s7 + $0x160] sm:$0xff]
      %v2974 = vld [vmem:[%s7 + $0x168] sm:$0xff]
      %v2975 = vld [vmem:[%s7 + $0x170] sm:$0xff]
      %v2976 = vld [vmem:[%s7 + $0x178] sm:$0xff]
      %v2977 = vld [vmem:[%s7 + $0x180] sm:$0xff]
      %v2978 = vld [vmem:[%s7 + $0x188] sm:$0xff]
      %v2979 = vld [vmem:[%s7 + $0x190] sm:$0xff]
      %v2980 = vld [vmem:[%s7 + $0x198] sm:$0xff]
      %v2981 = vld [vmem:[%s7 + $0x1a0] sm:$0xff]
      %v2982 = vld [vmem:[%s7 + $0x1a8] sm:$0xff]
      %v2983 = vld [vmem:[%s7 + $0x1b0] sm:$0xff]
      %v2984 = vld [vmem:[%s7 + $0x1b8] sm:$0xff]
      %v2985 = vld [vmem:[%s7 + $0x1c0] sm:$0xff]
      %v2986 = vld [vmem:[%s7 + $0x1c8] sm:$0xff]
      %v2987 = vld [vmem:[%s7 + $0x1d0] sm:$0xff]
      %v2988 = vld [vmem:[%s7 + $0x1d8] sm:$0xff]
      %v2989 = vld [vmem:[%s7 + $0x1e0] sm:$0xff]
      %v2990 = vld [vmem:[%s7 + $0x1e8] sm:$0xff]
      %v2991 = vld [vmem:[%s7 + $0x1f0] sm:$0xff]
      %v2992 = vld [vmem:[%s7 + $0x1f8] sm:$0xff]
      %v2993 = vld [vmem:[%s7 + $0x200] sm:$0xff]
      %v2994 = vld [vmem:[%s7 + $0x208] sm:$0xff]
      %v2995 = vld [vmem:[%s7 + $0x210] sm:$0xff]
      %v2996 = vld [vmem:[%s7 + $0x218] sm:$0xff]
      %v2997 = vld [vmem:[%s7 + $0x220] sm:$0xff]
      %v2998 = vld [vmem:[%s7 + $0x228] sm:$0xff]
      %v2999 = vld [vmem:[%s7 + $0x230] sm:$0xff]
      %v3000 = vld [vmem:[%s7 + $0x238] sm:$0xff]
      %v3001 = vld [vmem:[%s7 + $0x240] sm:$0xff]
      %v3002 = vld [vmem:[%s7 + $0x248] sm:$0xff]
      %v3003 = vld [vmem:[%s7 + $0x250] sm:$0xff]
      %v3004 = vld [vmem:[%s7 + $0x258] sm:$0xff]
      %v3005 = vld [vmem:[%s7 + $0x260] sm:$0xff]
      %v3006 = vld [vmem:[%s7 + $0x268] sm:$0xff]
      %v3007 = vld [vmem:[%s7 + $0x270] sm:$0xff]
      %v3008 = vld [vmem:[%s7 + $0x278] sm:$0xff]
      %v3009 = vld [vmem:[%s7 + $0x280] sm:$0xff]
      %v3010 = vld [vmem:[%s7 + $0x288] sm:$0xff]
      %v3011 = vld [vmem:[%s7 + $0x290] sm:$0xff]
      %v3012 = vld [vmem:[%s7 + $0x298] sm:$0xff]
      %v3013 = vld [vmem:[%s7 + $0x2a0] sm:$0xff]
      %v3014 = vld [vmem:[%s7 + $0x2a8] sm:$0xff]
      %v3015 = vld [vmem:[%s7 + $0x2b0] sm:$0xff]
      %v3016 = vld [vmem:[%s7 + $0x2b8] sm:$0xff]
      %v3017 = vld [vmem:[%s7 + $0x2c0] sm:$0xff]
      %v3018 = vld [vmem:[%s7 + $0x2c8] sm:$0xff]
      %v3019 = vld [vmem:[%s7 + $0x2d0] sm:$0xff]
      %v3020 = vld [vmem:[%s7 + $0x2d8] sm:$0xff]
      %v3021 = vld [vmem:[%s7 + $0x2e0] sm:$0xff]
      %v3022 = vld [vmem:[%s7 + $0x2e8] sm:$0xff]
      %v3023 = vld [vmem:[%s7 + $0x2f0] sm:$0xff]
      %v3024 = vld [vmem:[%s7 + $0x2f8] sm:$0xff]
      %v3025 = vld [vmem:[%s7 + $0x300] sm:$0xff]
      %v3026 = vld [vmem:[%s7 + $0x308] sm:$0xff]
      %v3027 = vld [vmem:[%s7 + $0x310] sm:$0xff]
      %v3028 = vld [vmem:[%s7 + $0x318] sm:$0xff]
      %v3029 = vld [vmem:[%s7 + $0x320] sm:$0xff]
      %v3030 = vld [vmem:[%s7 + $0x328] sm:$0xff]
      %v3031 = vld [vmem:[%s7 + $0x330] sm:$0xff]
      %v3032 = vld [vmem:[%s7 + $0x338] sm:$0xff]
      %v3033 = vld [vmem:[%s7 + $0x340] sm:$0xff]
      %v3034 = vld [vmem:[%s7 + $0x348] sm:$0xff]
      %v3035 = vld [vmem:[%s7 + $0x350] sm:$0xff]
      %v3036 = vld [vmem:[%s7 + $0x358] sm:$0xff]
      %v3037 = vld [vmem:[%s7 + $0x360] sm:$0xff]
      %v3038 = vld [vmem:[%s7 + $0x368] sm:$0xff]
      %v3039 = vld [vmem:[%s7 + $0x370] sm:$0xff]
      %v3040 = vld [vmem:[%s7 + $0x378] sm:$0xff]
      %v3041 = vld [vmem:[%s7 + $0x380] sm:$0xff]
      %v3042 = vld [vmem:[%s7 + $0x388] sm:$0xff]
      %v3043 = vld [vmem:[%s7 + $0x390] sm:$0xff]
      %v3044 = vld [vmem:[%s7 + $0x398] sm:$0xff]
      %v3045 = vld [vmem:[%s7 + $0x3a0] sm:$0xff]
      %v3046 = vld [vmem:[%s7 + $0x3a8] sm:$0xff]
      %v3047 = vld [vmem:[%s7 + $0x3b0] sm:$0xff]
      %v3048 = vld [vmem:[%s7 + $0x3b8] sm:$0xff]
      %v3049 = vld [vmem:[%s7 + $0x3c0] sm:$0xff]
      %v3050 = vld [vmem:[%s7 + $0x3c8] sm:$0xff]
      %v3051 = vld [vmem:[%s7 + $0x3d0] sm:$0xff]
      %v3052 = vld [vmem:[%s7 + $0x3d8] sm:$0xff]
      %v3053 = vld [vmem:[%s7 + $0x3e0] sm:$0xff]
      %v3054 = vld [vmem:[%s7 + $0x3e8] sm:$0xff]
      %v3055 = vld [vmem:[%s7 + $0x3f0] sm:$0xff]
      %v3056 = vld [vmem:[%s7 + $0x3f8] sm:$0xff]
      %v3057 = vld [vmem:[%s8] sm:$0x1]
      %v3059 = vperm.slane %v3057, 0
      %3061 = vst [vmem:[#allocation1] ss:$9 sm:$0xff] %v2856
      %s3062 = scalar_lea.vmem [#allocation1], 1
      %3063 = vst [vmem:[%s3062] ss:$9 sm:$0xff] %v2871
      %s3064 = scalar_lea.vmem [#allocation1], 2
      %3065 = vst [vmem:[%s3064] ss:$9 sm:$0xff] %v2882
      %s3066 = scalar_lea.vmem [#allocation1], 3
      %3067 = vst [vmem:[%s3066] ss:$9 sm:$0xff] %v2889
      %s3068 = scalar_lea.vmem [#allocation1], 4
      %3069 = vst [vmem:[%s3068] ss:$9 sm:$0xff] %v2897
      %s3070 = scalar_lea.vmem [#allocation1], 5
      %3071 = vst [vmem:[%s3070] ss:$9 sm:$0xff] %v2905
      %s3072 = scalar_lea.vmem [#allocation1], 6
      %3073 = vst [vmem:[%s3072] ss:$9 sm:$0xff] %v2912
      %s3074 = scalar_lea.vmem [#allocation1], 7
      %3075 = vst [vmem:[%s3074] ss:$9 sm:$0xff] %v2920
      %v3076 = vld [vmem:[#allocation1] sm:$0xff]
      %v3077 = vld [vmem:[#allocation1 + $0x9] sm:$0xff]
      %v3078 = vld [vmem:[#allocation1 + $0x12] sm:$0xff]
      %v3079 = vld [vmem:[#allocation1 + $0x1b] sm:$0xff]
      %v3080 = vld [vmem:[#allocation1 + $0x24] sm:$0xff]
      %v3081 = vld [vmem:[#allocation1 + $0x2d] sm:$0xff]
      %v3082 = vld [vmem:[#allocation1 + $0x36] sm:$0xff]
      %v3083 = vld [vmem:[#allocation1 + $0x3f] sm:$0xff]
      %3084 = vst [vmem:[#allocation1] ss:$9 sm:$0xff] %v2928
      %v3085 = vld [vmem:[#allocation1] sm:$0xff]
      %v3086 = vld [vmem:[#allocation1 + $0x9] sm:$0xff]
      %v3087 = vld [vmem:[#allocation1 + $0x12] sm:$0xff]
      %v3088 = vld [vmem:[#allocation1 + $0x1b] sm:$0xff]
      %v3089 = vld [vmem:[#allocation1 + $0x24] sm:$0xff]
      %v3090 = vld [vmem:[#allocation1 + $0x2d] sm:$0xff]
      %v3091 = vld [vmem:[#allocation1 + $0x36] sm:$0xff]
      %v3092 = vld [vmem:[#allocation1 + $0x3f] sm:$0xff]
      %3109 = vmatpush.msra.mxu0 %v2944
      %3110 = vmatpush.msra.mxu0 %v2943
      %3111 = vmatpush.msra.mxu0 %v2942
      %3112 = vmatpush.msra.mxu0 %v2941
      %3113 = vmatpush.msra.mxu0 %v2940
      %3114 = vmatpush.msra.mxu0 %v2939
      %3115 = vmatpush.msra.mxu0 %v2938
      %3116 = vmatpush.msra.mxu0 %v2937
      %3117 = vmatpush.msra.mxu0 %v2936
      %3118 = vmatpush.msra.mxu0 %v2935
      %3119 = vmatpush.msra.mxu0 %v2934
      %3120 = vmatpush.msra.mxu0 %v2933
      %3121 = vmatpush.msra.mxu0 %v2932
      %3122 = vmatpush.msra.mxu0 %v2931
      %3123 = vmatpush.msra.mxu0 %v2930
      %3124 = vmatpush.msra.mxu0 %v2929
      %3125 = vmatmul.f32.gmra.mxu0 %v3076
      %v3126 = vpop.f32.mrf.mxu0
      %v3127 = vadd.f32 %v3059, %v3126
      %3128 = vmatmul.f32.gmra.mxu0 %v3085
      %v3129 = vpop.f32.mrf.mxu0
      %v3130 = vadd.f32 %v3059, %v3129
      %3131 = vdwg.mxu0
      %3132 = vmatpush.msra.mxu0 %v2960
      %3133 = vmatpush.msra.mxu0 %v2959
      %3134 = vmatpush.msra.mxu0 %v2958
      %3135 = vmatpush.msra.mxu0 %v2957
      %3136 = vmatpush.msra.mxu0 %v2956
      %3137 = vmatpush.msra.mxu0 %v2955
      %3138 = vmatpush.msra.mxu0 %v2954
      %3139 = vmatpush.msra.mxu0 %v2953
      %3140 = vmatpush.msra.mxu0 %v2952
      %3141 = vmatpush.msra.mxu0 %v2951
      %3142 = vmatpush.msra.mxu0 %v2950
      %3143 = vmatpush.msra.mxu0 %v2949
      %3144 = vmatpush.msra.mxu0 %v2948
      %3145 = vmatpush.msra.mxu0 %v2947
      %3146 = vmatpush.msra.mxu0 %v2946
      %3147 = vmatpush.msra.mxu0 %v2945
      %3148 = vmatmul.f32.gmra.mxu0 %v3077
      %v3149 = vpop.f32.mrf.mxu0
      %v3150 = vadd.f32 %v3127, %v3149
      %3151 = vmatmul.f32.gmra.mxu0 %v3086
      %v3152 = vpop.f32.mrf.mxu0
      %v3153 = vadd.f32 %v3130, %v3152
      %3154 = vdwg.mxu0
      %3155 = vmatpush.msra.mxu0 %v2976
      %3156 = vmatpush.msra.mxu0 %v2975
      %3157 = vmatpush.msra.mxu0 %v2974
      %3158 = vmatpush.msra.mxu0 %v2973
      %3159 = vmatpush.msra.mxu0 %v2972
      %3160 = vmatpush.msra.mxu0 %v2971
      %3161 = vmatpush.msra.mxu0 %v2970
      %3162 = vmatpush.msra.mxu0 %v2969
      %3163 = vmatpush.msra.mxu0 %v2968
      %3164 = vmatpush.msra.mxu0 %v2967
      %3165 = vmatpush.msra.mxu0 %v2966
      %3166 = vmatpush.msra.mxu0 %v2965
      %3167 = vmatpush.msra.mxu0 %v2964
      %3168 = vmatpush.msra.mxu0 %v2963
      %3169 = vmatpush.msra.mxu0 %v2962
      %3170 = vmatpush.msra.mxu0 %v2961
      %3171 = vmatmul.f32.gmra.mxu0 %v3078
      %v3172 = vpop.f32.mrf.mxu0
      %v3173 = vadd.f32 %v3150, %v3172
      %3174 = vmatmul.f32.gmra.mxu0 %v3087
      %v3175 = vpop.f32.mrf.mxu0
      %v3176 = vadd.f32 %v3153, %v3175
      %3177 = vdwg.mxu0
      %3178 = vmatpush.msra.mxu0 %v2992
      %3179 = vmatpush.msra.mxu0 %v2991
      %3180 = vmatpush.msra.mxu0 %v2990
      %3181 = vmatpush.msra.mxu0 %v2989
      %3182 = vmatpush.msra.mxu0 %v2988
      %3183 = vmatpush.msra.mxu0 %v2987
      %3184 = vmatpush.msra.mxu0 %v2986
      %3185 = vmatpush.msra.mxu0 %v2985
      %3186 = vmatpush.msra.mxu0 %v2984
      %3187 = vmatpush.msra.mxu0 %v2983
      %3188 = vmatpush.msra.mxu0 %v2982
      %3189 = vmatpush.msra.mxu0 %v2981
      %3190 = vmatpush.msra.mxu0 %v2980
      %3191 = vmatpush.msra.mxu0 %v2979
      %3192 = vmatpush.msra.mxu0 %v2978
      %3193 = vmatpush.msra.mxu0 %v2977
      %3194 = vmatmul.f32.gmra.mxu0 %v3079
      %v3195 = vpop.f32.mrf.mxu0
      %v3196 = vadd.f32 %v3173, %v3195
      %3197 = vmatmul.f32.gmra.mxu0 %v3088
      %v3198 = vpop.f32.mrf.mxu0
      %v3199 = vadd.f32 %v3176, %v3198
      %3200 = vdwg.mxu0
      %3201 = vmatpush.msra.mxu0 %v3008
      %3202 = vmatpush.msra.mxu0 %v3007
      %3203 = vmatpush.msra.mxu0 %v3006
      %3204 = vmatpush.msra.mxu0 %v3005
      %3205 = vmatpush.msra.mxu0 %v3004
      %3206 = vmatpush.msra.mxu0 %v3003
      %3207 = vmatpush.msra.mxu0 %v3002
      %3208 = vmatpush.msra.mxu0 %v3001
      %3209 = vmatpush.msra.mxu0 %v3000
      %3210 = vmatpush.msra.mxu0 %v2999
      %3211 = vmatpush.msra.mxu0 %v2998
      %3212 = vmatpush.msra.mxu0 %v2997
      %3213 = vmatpush.msra.mxu0 %v2996
      %3214 = vmatpush.msra.mxu0 %v2995
      %3215 = vmatpush.msra.mxu0 %v2994
      %3216 = vmatpush.msra.mxu0 %v2993
      %3217 = vmatmul.f32.gmra.mxu0 %v3080
      %v3218 = vpop.f32.mrf.mxu0
      %v3219 = vadd.f32 %v3196, %v3218
      %3220 = vmatmul.f32.gmra.mxu0 %v3089
      %v3221 = vpop.f32.mrf.mxu0
      %v3222 = vadd.f32 %v3199, %v3221
      %3223 = vdwg.mxu0
      %3224 = vmatpush.msra.mxu0 %v3024
      %3225 = vmatpush.msra.mxu0 %v3023
      %3226 = vmatpush.msra.mxu0 %v3022
      %3227 = vmatpush.msra.mxu0 %v3021
      %3228 = vmatpush.msra.mxu0 %v3020
      %3229 = vmatpush.msra.mxu0 %v3019
      %3230 = vmatpush.msra.mxu0 %v3018
      %3231 = vmatpush.msra.mxu0 %v3017
      %3232 = vmatpush.msra.mxu0 %v3016
      %3233 = vmatpush.msra.mxu0 %v3015
      %3234 = vmatpush.msra.mxu0 %v3014
      %3235 = vmatpush.msra.mxu0 %v3013
      %3236 = vmatpush.msra.mxu0 %v3012
      %3237 = vmatpush.msra.mxu0 %v3011
      %3238 = vmatpush.msra.mxu0 %v3010
      %3239 = vmatpush.msra.mxu0 %v3009
      %3240 = vmatmul.f32.gmra.mxu0 %v3081
      %v3241 = vpop.f32.mrf.mxu0
      %v3242 = vadd.f32 %v3219, %v3241
      %3243 = vmatmul.f32.gmra.mxu0 %v3090
      %v3244 = vpop.f32.mrf.mxu0
      %v3245 = vadd.f32 %v3222, %v3244
      %3246 = vdwg.mxu0
      %3247 = vmatpush.msra.mxu0 %v3040
      %3248 = vmatpush.msra.mxu0 %v3039
      %3249 = vmatpush.msra.mxu0 %v3038
      %3250 = vmatpush.msra.mxu0 %v3037
      %3251 = vmatpush.msra.mxu0 %v3036
      %3252 = vmatpush.msra.mxu0 %v3035
      %3253 = vmatpush.msra.mxu0 %v3034
      %3254 = vmatpush.msra.mxu0 %v3033
      %3255 = vmatpush.msra.mxu0 %v3032
      %3256 = vmatpush.msra.mxu0 %v3031
      %3257 = vmatpush.msra.mxu0 %v3030
      %3258 = vmatpush.msra.mxu0 %v3029
      %3259 = vmatpush.msra.mxu0 %v3028
      %3260 = vmatpush.msra.mxu0 %v3027
      %3261 = vmatpush.msra.mxu0 %v3026
      %3262 = vmatpush.msra.mxu0 %v3025
      %3263 = vmatmul.f32.gmra.mxu0 %v3082
      %v3264 = vpop.f32.mrf.mxu0
      %v3265 = vadd.f32 %v3242, %v3264
      %3266 = vmatmul.f32.gmra.mxu0 %v3091
      %v3267 = vpop.f32.mrf.mxu0
      %v3268 = vadd.f32 %v3245, %v3267
      %3269 = vdwg.mxu0
      %3270 = vmatpush.msra.mxu0 %v3056
      %3271 = vmatpush.msra.mxu0 %v3055
      %3272 = vmatpush.msra.mxu0 %v3054
      %3273 = vmatpush.msra.mxu0 %v3053
      %3274 = vmatpush.msra.mxu0 %v3052
      %3275 = vmatpush.msra.mxu0 %v3051
      %3276 = vmatpush.msra.mxu0 %v3050
      %3277 = vmatpush.msra.mxu0 %v3049
      %3278 = vmatpush.msra.mxu0 %v3048
      %3279 = vmatpush.msra.mxu0 %v3047
      %3280 = vmatpush.msra.mxu0 %v3046
      %3281 = vmatpush.msra.mxu0 %v3045
      %3282 = vmatpush.msra.mxu0 %v3044
      %3283 = vmatpush.msra.mxu0 %v3043
      %3284 = vmatpush.msra.mxu0 %v3042
      %3285 = vmatpush.msra.mxu0 %v3041
      %3286 = vmatmul.f32.gmra.mxu0 %v3083
      %v3287 = vpop.f32.mrf.mxu0
      %v3288 = vadd.f32 %v3265, %v3287
      %3289 = vmatmul.f32.gmra.mxu0 %v3092
      %v3290 = vpop.f32.mrf.mxu0
      %v3291 = vadd.f32 %v3268, %v3290
      %3292 = vdwg.mxu0
      %v3293 = vsel %vm2843, %v3291, 0.0
      %v3294 = vadd.f32 %v3288, %v3293
      %v3295 = vrot.slane %v3294, 4
      %v3296 = vadd.f32 %v3294, %v3295
      %v3297 = vrot.slane %v3296, 2
      %v3298 = vadd.f32 %v3296, %v3297
      %v3299 = vrot.slane %v3298, 1
      %v3300 = vadd.f32 %v3298, %v3299
      %v3301 = vmul.f32 %v3300, 0.11111111
      %v3302 = vmul.f32 %v3288, %v3288
      %v3303 = vmul.f32 %v3291, %v3291
      %v3304 = vsel %vm2843, %v3303, 0.0
      %v3305 = vadd.f32 %v3302, %v3304
      %v3306 = vrot.slane %v3305, 4
      %v3307 = vadd.f32 %v3305, %v3306
      %v3308 = vrot.slane %v3307, 2
      %v3309 = vadd.f32 %v3307, %v3308
      %v3310 = vrot.slane %v3309, 1
      %v3311 = vadd.f32 %v3309, %v3310
      %v3312 = vmul.f32 %v3311, 0.11111111
      %v3313 = vmul.f32 %v3301, %v3301
      %v3314 = vsub.f32 %v3312, %v3313
      %v3315 = vmax.f32 %v3314, 0.0
      %v3316 = vsub.f32 %v3288, %v3301
      %v3317 = vsub.f32 %v3291, %v3301
      %v3318 = vadd.f32 %v3315, 1e-05
      %v3319 = vrsqrt.pop %v3318
      %v3320 = vmul.f32 %v3319, %v3318
      %v3321 = vmul.f32 %v3320, %v3319
      %v3322 = vmul.f32 0.5, %v3321
      %v3323 = vsub.f32 1.5, %v3322
      %v3324 = vmul.f32 %v3319, %v3323
      %vm3325 = vweird.f32 %v3318
      %vm3326 = vweird.f32 %v3319
      %vm3327 = vmor %vm3325, %vm3326
      %v3328 = vsel %vm3327, %v3319, %v3324
      %v3329 = vmul.f32 %v3316, %v3328
      %v3330 = vmul.f32 %v3317, %v3328
      %vm3331 = vcmp.ge.f32.partialorder %v3329, 0.0
      %vm3332 = vcmp.ge.f32.partialorder %v3330, 0.0
      %v3333 = vmul.f32 %v3329, 0.2
      %v3334 = vmul.f32 %v3330, 0.2
      %v3335 = vsel %vm3331, %v3329, %v3333
      %v3336 = vsel %vm3332, %v3330, %v3334
      %v3339 = vrot.slane %v3335, 1
      %v3340 = vrot.slane %v3335, 2
      %v3341 = vrot.slane %v3335, 3
      %v3342 = vrot.slane %v3335, 4
      %v3343 = vrot.slane %v3335, 5
      %v3344 = vrot.slane %v3335, 6
      %v3345 = vrot.slane %v3335, 7
      %3349 = vst [vmem:[#allocation1] ss:$9 sm:$0xff] %v3335
      %s3350 = scalar_lea.vmem [#allocation1], 1
      %3351 = vst [vmem:[%s3350] ss:$9 sm:$0xff] %v3339
      %s3352 = scalar_lea.vmem [#allocation1], 2
      %3353 = vst [vmem:[%s3352] ss:$9 sm:$0xff] %v3340
      %v3354 = vld [vmem:[#allocation1] sm:$0xff]
      %3355 = vst [vmem:[#allocation1] ss:$9 sm:$0xff] %v3341
      %3356 = vst [vmem:[%s3350] ss:$9 sm:$0xff] %v3342
      %3357 = vst [vmem:[%s3352] ss:$9 sm:$0xff] %v3343
      %v3358 = vld [vmem:[#allocation1] sm:$0xff]
      %3359 = vst [vmem:[#allocation1] ss:$9 sm:$0xff] %v3344
      %3360 = vst [vmem:[%s3350] ss:$9 sm:$0xff] %v3345
      %3361 = vst [vmem:[%s3352] ss:$9 sm:$0xff] %v3336
      %v3362 = vld [vmem:[#allocation1] sm:$0xff]
      %s3366 = scalar_lea.vmem [#allocation8], 8
      %3367 = vst [vmem:[%s3366 + $0x1] sm:$0x7] %v3354
      %3368 = vst [vmem:[%s3366 + $0x9] sm:$0x7] %v3358
      %3369 = vst [vmem:[%s3366 + $0x11] sm:$0x7] %v3362
      %3370 = vst [vmem:[%s3366] sm:$0x1] %v3339
      %3371 = vst [vmem:[%s3366 + $0x8] sm:$0x1] %v3342
      %3372 = vst [vmem:[%s3366 + $0x10] sm:$0x1] %v3345
      %3373 = vst [vmem:[%s3366 + $0x4] sm:$0x1] %v3339
      %3374 = vst [vmem:[%s3366 + $0xc] sm:$0x1] %v3342
      %3375 = vst [vmem:[%s3366 + $0x14] sm:$0x1] %v3345
      %s3376 = scalar_lea.vmem [#allocation8], 16
      %v3377 = vld [vmem:[%s3376] sm:$0x1f]
      %3378 = vst [vmem:[#allocation8] sm:$0x1f] %v3377
      %v3379 = vld [vmem:[%s3376] sm:$0x1f]
      %s3380 = scalar_lea.vmem [#allocation8], 32
      %3381 = vst [vmem:[%s3380] sm:$0x1f] %v3379
      %v3382 = vld [vmem:[#allocation8] sm:$0x3]
      %v3383 = vld [vmem:[#allocation8 + $0x8] sm:$0x3]
      %3384 = vst [vmem:[#allocation9] sm:$0x3] %v3382
      %3385 = vst [vmem:[#allocation9 + $0x20] sm:$0x3] %v3383
      %v3386 = vld [vmem:[#allocation8 + $0x1] sm:$0x3]
      %v3387 = vld [vmem:[#allocation8 + $0x9] sm:$0x3]
      %3388 = vst [vmem:[#allocation9 + $0x2] sm:$0x3] %v3386
      %3389 = vst [vmem:[#allocation9 + $0x22] sm:$0x3] %v3387
      %v3390 = vld [vmem:[#allocation8 + $0x2] sm:$0x3]
      %v3391 = vld [vmem:[#allocation8 + $0xa] sm:$0x3]
      %3392 = vst [vmem:[#allocation9 + $0x4] sm:$0x3] %v3390
      %3393 = vst [vmem:[#allocation9 + $0x24] sm:$0x3] %v3391
      %v3394 = vld [vmem:[#allocation8 + $0x3] sm:$0x3]
      %v3395 = vld [vmem:[#allocation8 + $0xb] sm:$0x3]
      %3396 = vst [vmem:[#allocation9 + $0x6] sm:$0x3] %v3394
      %3397 = vst [vmem:[#allocation9 + $0x26] sm:$0x3] %v3395
      %v3398 = vld [vmem:[%s3366] sm:$0x3]
      %v3399 = vld [vmem:[%s3366 + $0x8] sm:$0x3]
      %3400 = vst [vmem:[#allocation9 + $0x8] sm:$0x3] %v3398
      %3401 = vst [vmem:[#allocation9 + $0x28] sm:$0x3] %v3399
      %v3402 = vld [vmem:[%s3366 + $0x1] sm:$0x3]
      %v3403 = vld [vmem:[%s3366 + $0x9] sm:$0x3]
      %3404 = vst [vmem:[#allocation9 + $0xa] sm:$0x3] %v3402
      %3405 = vst [vmem:[#allocation9 + $0x2a] sm:$0x3] %v3403
      %v3406 = vld [vmem:[%s3366 + $0x2] sm:$0x3]
      %v3407 = vld [vmem:[%s3366 + $0xa] sm:$0x3]
      %3408 = vst [vmem:[#allocation9 + $0xc] sm:$0x3] %v3406
      %3409 = vst [vmem:[#allocation9 + $0x2c] sm:$0x3] %v3407
      %v3410 = vld [vmem:[%s3366 + $0x3] sm:$0x3]
      %v3411 = vld [vmem:[%s3366 + $0xb] sm:$0x3]
      %3412 = vst [vmem:[#allocation9 + $0xe] sm:$0x3] %v3410
      %3413 = vst [vmem:[#allocation9 + $0x2e] sm:$0x3] %v3411
      %v3414 = vld [vmem:[%s3376] sm:$0x3]
      %v3415 = vld [vmem:[%s3376 + $0x8] sm:$0x3]
      %3416 = vst [vmem:[#allocation9 + $0x10] sm:$0x3] %v3414
      %3417 = vst [vmem:[#allocation9 + $0x30] sm:$0x3] %v3415
      %v3418 = vld [vmem:[%s3376 + $0x1] sm:$0x3]
      %v3419 = vld [vmem:[%s3376 + $0x9] sm:$0x3]
      %3420 = vst [vmem:[#allocation9 + $0x12] sm:$0x3] %v3418
      %3421 = vst [vmem:[#allocation9 + $0x32] sm:$0x3] %v3419
      %v3422 = vld [vmem:[%s3376 + $0x2] sm:$0x3]
      %v3423 = vld [vmem:[%s3376 + $0xa] sm:$0x3]
      %3424 = vst [vmem:[#allocation9 + $0x14] sm:$0x3] %v3422
      %3425 = vst [vmem:[#allocation9 + $0x34] sm:$0x3] %v3423
      %v3426 = vld [vmem:[%s3376 + $0x3] sm:$0x3]
      %v3427 = vld [vmem:[%s3376 + $0xb] sm:$0x3]
      %3428 = vst [vmem:[#allocation9 + $0x16] sm:$0x3] %v3426
      %3429 = vst [vmem:[#allocation9 + $0x36] sm:$0x3] %v3427
      %s3430 = scalar_lea.vmem [#allocation8], 24
      %v3431 = vld [vmem:[%s3430] sm:$0x3]
      %v3432 = vld [vmem:[%s3430 + $0x8] sm:$0x3]
      %3433 = vst [vmem:[#allocation9 + $0x18] sm:$0x3] %v3431
      %3434 = vst [vmem:[#allocation9 + $0x38] sm:$0x3] %v3432
      %v3435 = vld [vmem:[%s3430 + $0x1] sm:$0x3]
      %v3436 = vld [vmem:[%s3430 + $0x9] sm:$0x3]
      %3437 = vst [vmem:[#allocation9 + $0x1a] sm:$0x3] %v3435
      %3438 = vst [vmem:[#allocation9 + $0x3a] sm:$0x3] %v3436
      %v3439 = vld [vmem:[%s3430 + $0x2] sm:$0x3]
      %v3440 = vld [vmem:[%s3430 + $0xa] sm:$0x3]
      %3441 = vst [vmem:[#allocation9 + $0x1c] sm:$0x3] %v3439
      %3442 = vst [vmem:[#allocation9 + $0x3c] sm:$0x3] %v3440
      %v3443 = vld [vmem:[%s3430 + $0x3] sm:$0x3]
      %v3444 = vld [vmem:[%s3430 + $0xb] sm:$0x3]
      %3445 = vst [vmem:[#allocation9 + $0x1e] sm:$0x3] %v3443
      %3446 = vst [vmem:[#allocation9 + $0x3e] sm:$0x3] %v3444
      %v3447 = vld [vmem:[#allocation9] sm:$0xff]
      %v3448 = vld [vmem:[#allocation9 + $0x8] sm:$0xff]
      %v3449 = vld [vmem:[#allocation9 + $0x10] sm:$0xff]
      %v3450 = vld [vmem:[#allocation9 + $0x18] sm:$0xff]
      %v3451 = vld [vmem:[#allocation9 + $0x20] sm:$0xff]
      %v3452 = vld [vmem:[#allocation9 + $0x28] sm:$0xff]
      %v3453 = vld [vmem:[#allocation9 + $0x30] sm:$0xff]
      %v3454 = vld [vmem:[#allocation9 + $0x38] sm:$0xff]
      %v3455 = vld [vmem:[%s9] sm:$0xff]
      %v3456 = vld [vmem:[%s9 + $0x8] sm:$0xff]
      %v3457 = vld [vmem:[%s9 + $0x10] sm:$0xff]
      %v3458 = vld [vmem:[%s9 + $0x18] sm:$0xff]
      %v3459 = vld [vmem:[%s9 + $0x20] sm:$0xff]
      %v3460 = vld [vmem:[%s9 + $0x28] sm:$0xff]
      %v3461 = vld [vmem:[%s9 + $0x30] sm:$0xff]
      %v3462 = vld [vmem:[%s9 + $0x38] sm:$0xff]
      %v3463 = vld [vmem:[%s9 + $0x40] sm:$0xff]
      %v3464 = vld [vmem:[%s9 + $0x48] sm:$0xff]
      %v3465 = vld [vmem:[%s9 + $0x50] sm:$0xff]
      %v3466 = vld [vmem:[%s9 + $0x58] sm:$0xff]
      %v3467 = vld [vmem:[%s9 + $0x60] sm:$0xff]
      %v3468 = vld [vmem:[%s9 + $0x68] sm:$0xff]
      %v3469 = vld [vmem:[%s9 + $0x70] sm:$0xff]
      %v3470 = vld [vmem:[%s9 + $0x78] sm:$0xff]
      %v3471 = vld [vmem:[%s9 + $0x80] sm:$0xff]
      %v3472 = vld [vmem:[%s9 + $0x88] sm:$0xff]
      %v3473 = vld [vmem:[%s9 + $0x90] sm:$0xff]
      %v3474 = vld [vmem:[%s9 + $0x98] sm:$0xff]
      %v3475 = vld [vmem:[%s9 + $0xa0] sm:$0xff]
      %v3476 = vld [vmem:[%s9 + $0xa8] sm:$0xff]
      %v3477 = vld [vmem:[%s9 + $0xb0] sm:$0xff]
      %v3478 = vld [vmem:[%s9 + $0xb8] sm:$0xff]
      %v3479 = vld [vmem:[%s9 + $0xc0] sm:$0xff]
      %v3480 = vld [vmem:[%s9 + $0xc8] sm:$0xff]
      %v3481 = vld [vmem:[%s9 + $0xd0] sm:$0xff]
      %v3482 = vld [vmem:[%s9 + $0xd8] sm:$0xff]
      %v3483 = vld [vmem:[%s9 + $0xe0] sm:$0xff]
      %v3484 = vld [vmem:[%s9 + $0xe8] sm:$0xff]
      %v3485 = vld [vmem:[%s9 + $0xf0] sm:$0xff]
      %v3486 = vld [vmem:[%s9 + $0xf8] sm:$0xff]
      %v3487 = vld [vmem:[%s9 + $0x100] sm:$0xff]
      %v3488 = vld [vmem:[%s9 + $0x108] sm:$0xff]
      %v3489 = vld [vmem:[%s9 + $0x110] sm:$0xff]
      %v3490 = vld [vmem:[%s9 + $0x118] sm:$0xff]
      %v3491 = vld [vmem:[%s9 + $0x120] sm:$0xff]
      %v3492 = vld [vmem:[%s9 + $0x128] sm:$0xff]
      %v3493 = vld [vmem:[%s9 + $0x130] sm:$0xff]
      %v3494 = vld [vmem:[%s9 + $0x138] sm:$0xff]
      %v3495 = vld [vmem:[%s9 + $0x140] sm:$0xff]
      %v3496 = vld [vmem:[%s9 + $0x148] sm:$0xff]
      %v3497 = vld [vmem:[%s9 + $0x150] sm:$0xff]
      %v3498 = vld [vmem:[%s9 + $0x158] sm:$0xff]
      %v3499 = vld [vmem:[%s9 + $0x160] sm:$0xff]
      %v3500 = vld [vmem:[%s9 + $0x168] sm:$0xff]
      %v3501 = vld [vmem:[%s9 + $0x170] sm:$0xff]
      %v3502 = vld [vmem:[%s9 + $0x178] sm:$0xff]
      %v3503 = vld [vmem:[%s9 + $0x180] sm:$0xff]
      %v3504 = vld [vmem:[%s9 + $0x188] sm:$0xff]
      %v3505 = vld [vmem:[%s9 + $0x190] sm:$0xff]
      %v3506 = vld [vmem:[%s9 + $0x198] sm:$0xff]
      %v3507 = vld [vmem:[%s9 + $0x1a0] sm:$0xff]
      %v3508 = vld [vmem:[%s9 + $0x1a8] sm:$0xff]
      %v3509 = vld [vmem:[%s9 + $0x1b0] sm:$0xff]
      %v3510 = vld [vmem:[%s9 + $0x1b8] sm:$0xff]
      %v3511 = vld [vmem:[%s9 + $0x1c0] sm:$0xff]
      %v3512 = vld [vmem:[%s9 + $0x1c8] sm:$0xff]
      %v3513 = vld [vmem:[%s9 + $0x1d0] sm:$0xff]
      %v3514 = vld [vmem:[%s9 + $0x1d8] sm:$0xff]
      %v3515 = vld [vmem:[%s9 + $0x1e0] sm:$0xff]
      %v3516 = vld [vmem:[%s9 + $0x1e8] sm:$0xff]
      %v3517 = vld [vmem:[%s9 + $0x1f0] sm:$0xff]
      %v3518 = vld [vmem:[%s9 + $0x1f8] sm:$0xff]
      %v3519 = vld [vmem:[%s9 + $0x200] sm:$0xff]
      %v3520 = vld [vmem:[%s9 + $0x208] sm:$0xff]
      %v3521 = vld [vmem:[%s9 + $0x210] sm:$0xff]
      %v3522 = vld [vmem:[%s9 + $0x218] sm:$0xff]
      %v3523 = vld [vmem:[%s9 + $0x220] sm:$0xff]
      %v3524 = vld [vmem:[%s9 + $0x228] sm:$0xff]
      %v3525 = vld [vmem:[%s9 + $0x230] sm:$0xff]
      %v3526 = vld [vmem:[%s9 + $0x238] sm:$0xff]
      %v3527 = vld [vmem:[%s9 + $0x240] sm:$0xff]
      %v3528 = vld [vmem:[%s9 + $0x248] sm:$0xff]
      %v3529 = vld [vmem:[%s9 + $0x250] sm:$0xff]
      %v3530 = vld [vmem:[%s9 + $0x258] sm:$0xff]
      %v3531 = vld [vmem:[%s9 + $0x260] sm:$0xff]
      %v3532 = vld [vmem:[%s9 + $0x268] sm:$0xff]
      %v3533 = vld [vmem:[%s9 + $0x270] sm:$0xff]
      %v3534 = vld [vmem:[%s9 + $0x278] sm:$0xff]
      %v3535 = vld [vmem:[%s9 + $0x280] sm:$0xff]
      %v3536 = vld [vmem:[%s9 + $0x288] sm:$0xff]
      %v3537 = vld [vmem:[%s9 + $0x290] sm:$0xff]
      %v3538 = vld [vmem:[%s9 + $0x298] sm:$0xff]
      %v3539 = vld [vmem:[%s9 + $0x2a0] sm:$0xff]
      %v3540 = vld [vmem:[%s9 + $0x2a8] sm:$0xff]
      %v3541 = vld [vmem:[%s9 + $0x2b0] sm:$0xff]
      %v3542 = vld [vmem:[%s9 + $0x2b8] sm:$0xff]
      %v3543 = vld [vmem:[%s9 + $0x2c0] sm:$0xff]
      %v3544 = vld [vmem:[%s9 + $0x2c8] sm:$0xff]
      %v3545 = vld [vmem:[%s9 + $0x2d0] sm:$0xff]
      %v3546 = vld [vmem:[%s9 + $0x2d8] sm:$0xff]
      %v3547 = vld [vmem:[%s9 + $0x2e0] sm:$0xff]
      %v3548 = vld [vmem:[%s9 + $0x2e8] sm:$0xff]
      %v3549 = vld [vmem:[%s9 + $0x2f0] sm:$0xff]
      %v3550 = vld [vmem:[%s9 + $0x2f8] sm:$0xff]
      %v3551 = vld [vmem:[%s9 + $0x300] sm:$0xff]
      %v3552 = vld [vmem:[%s9 + $0x308] sm:$0xff]
      %v3553 = vld [vmem:[%s9 + $0x310] sm:$0xff]
      %v3554 = vld [vmem:[%s9 + $0x318] sm:$0xff]
      %v3555 = vld [vmem:[%s9 + $0x320] sm:$0xff]
      %v3556 = vld [vmem:[%s9 + $0x328] sm:$0xff]
      %v3557 = vld [vmem:[%s9 + $0x330] sm:$0xff]
      %v3558 = vld [vmem:[%s9 + $0x338] sm:$0xff]
      %v3559 = vld [vmem:[%s9 + $0x340] sm:$0xff]
      %v3560 = vld [vmem:[%s9 + $0x348] sm:$0xff]
      %v3561 = vld [vmem:[%s9 + $0x350] sm:$0xff]
      %v3562 = vld [vmem:[%s9 + $0x358] sm:$0xff]
      %v3563 = vld [vmem:[%s9 + $0x360] sm:$0xff]
      %v3564 = vld [vmem:[%s9 + $0x368] sm:$0xff]
      %v3565 = vld [vmem:[%s9 + $0x370] sm:$0xff]
      %v3566 = vld [vmem:[%s9 + $0x378] sm:$0xff]
      %v3567 = vld [vmem:[%s9 + $0x380] sm:$0xff]
      %v3568 = vld [vmem:[%s9 + $0x388] sm:$0xff]
      %v3569 = vld [vmem:[%s9 + $0x390] sm:$0xff]
      %v3570 = vld [vmem:[%s9 + $0x398] sm:$0xff]
      %v3571 = vld [vmem:[%s9 + $0x3a0] sm:$0xff]
      %v3572 = vld [vmem:[%s9 + $0x3a8] sm:$0xff]
      %v3573 = vld [vmem:[%s9 + $0x3b0] sm:$0xff]
      %v3574 = vld [vmem:[%s9 + $0x3b8] sm:$0xff]
      %v3575 = vld [vmem:[%s9 + $0x3c0] sm:$0xff]
      %v3576 = vld [vmem:[%s9 + $0x3c8] sm:$0xff]
      %v3577 = vld [vmem:[%s9 + $0x3d0] sm:$0xff]
      %v3578 = vld [vmem:[%s9 + $0x3d8] sm:$0xff]
      %v3579 = vld [vmem:[%s9 + $0x3e0] sm:$0xff]
      %v3580 = vld [vmem:[%s9 + $0x3e8] sm:$0xff]
      %v3581 = vld [vmem:[%s9 + $0x3f0] sm:$0xff]
      %v3582 = vld [vmem:[%s9 + $0x3f8] sm:$0xff]
      %v3583 = vld [vmem:[%s9 + $0x400] sm:$0xff]
      %v3584 = vld [vmem:[%s9 + $0x408] sm:$0xff]
      %v3585 = vld [vmem:[%s9 + $0x410] sm:$0xff]
      %v3586 = vld [vmem:[%s9 + $0x418] sm:$0xff]
      %v3587 = vld [vmem:[%s9 + $0x420] sm:$0xff]
      %v3588 = vld [vmem:[%s9 + $0x428] sm:$0xff]
      %v3589 = vld [vmem:[%s9 + $0x430] sm:$0xff]
      %v3590 = vld [vmem:[%s9 + $0x438] sm:$0xff]
      %v3591 = vld [vmem:[%s9 + $0x440] sm:$0xff]
      %v3592 = vld [vmem:[%s9 + $0x448] sm:$0xff]
      %v3593 = vld [vmem:[%s9 + $0x450] sm:$0xff]
      %v3594 = vld [vmem:[%s9 + $0x458] sm:$0xff]
      %v3595 = vld [vmem:[%s9 + $0x460] sm:$0xff]
      %v3596 = vld [vmem:[%s9 + $0x468] sm:$0xff]
      %v3597 = vld [vmem:[%s9 + $0x470] sm:$0xff]
      %v3598 = vld [vmem:[%s9 + $0x478] sm:$0xff]
      %v3599 = vld [vmem:[%s9 + $0x480] sm:$0xff]
      %v3600 = vld [vmem:[%s9 + $0x488] sm:$0xff]
      %v3601 = vld [vmem:[%s9 + $0x490] sm:$0xff]
      %v3602 = vld [vmem:[%s9 + $0x498] sm:$0xff]
      %v3603 = vld [vmem:[%s9 + $0x4a0] sm:$0xff]
      %v3604 = vld [vmem:[%s9 + $0x4a8] sm:$0xff]
      %v3605 = vld [vmem:[%s9 + $0x4b0] sm:$0xff]
      %v3606 = vld [vmem:[%s9 + $0x4b8] sm:$0xff]
      %v3607 = vld [vmem:[%s9 + $0x4c0] sm:$0xff]
      %v3608 = vld [vmem:[%s9 + $0x4c8] sm:$0xff]
      %v3609 = vld [vmem:[%s9 + $0x4d0] sm:$0xff]
      %v3610 = vld [vmem:[%s9 + $0x4d8] sm:$0xff]
      %v3611 = vld [vmem:[%s9 + $0x4e0] sm:$0xff]
      %v3612 = vld [vmem:[%s9 + $0x4e8] sm:$0xff]
      %v3613 = vld [vmem:[%s9 + $0x4f0] sm:$0xff]
      %v3614 = vld [vmem:[%s9 + $0x4f8] sm:$0xff]
      %v3615 = vld [vmem:[%s9 + $0x500] sm:$0xff]
      %v3616 = vld [vmem:[%s9 + $0x508] sm:$0xff]
      %v3617 = vld [vmem:[%s9 + $0x510] sm:$0xff]
      %v3618 = vld [vmem:[%s9 + $0x518] sm:$0xff]
      %v3619 = vld [vmem:[%s9 + $0x520] sm:$0xff]
      %v3620 = vld [vmem:[%s9 + $0x528] sm:$0xff]
      %v3621 = vld [vmem:[%s9 + $0x530] sm:$0xff]
      %v3622 = vld [vmem:[%s9 + $0x538] sm:$0xff]
      %v3623 = vld [vmem:[%s9 + $0x540] sm:$0xff]
      %v3624 = vld [vmem:[%s9 + $0x548] sm:$0xff]
      %v3625 = vld [vmem:[%s9 + $0x550] sm:$0xff]
      %v3626 = vld [vmem:[%s9 + $0x558] sm:$0xff]
      %v3627 = vld [vmem:[%s9 + $0x560] sm:$0xff]
      %v3628 = vld [vmem:[%s9 + $0x568] sm:$0xff]
      %v3629 = vld [vmem:[%s9 + $0x570] sm:$0xff]
      %v3630 = vld [vmem:[%s9 + $0x578] sm:$0xff]
      %v3631 = vld [vmem:[%s9 + $0x580] sm:$0xff]
      %v3632 = vld [vmem:[%s9 + $0x588] sm:$0xff]
      %v3633 = vld [vmem:[%s9 + $0x590] sm:$0xff]
      %v3634 = vld [vmem:[%s9 + $0x598] sm:$0xff]
      %v3635 = vld [vmem:[%s9 + $0x5a0] sm:$0xff]
      %v3636 = vld [vmem:[%s9 + $0x5a8] sm:$0xff]
      %v3637 = vld [vmem:[%s9 + $0x5b0] sm:$0xff]
      %v3638 = vld [vmem:[%s9 + $0x5b8] sm:$0xff]
      %v3639 = vld [vmem:[%s9 + $0x5c0] sm:$0xff]
      %v3640 = vld [vmem:[%s9 + $0x5c8] sm:$0xff]
      %v3641 = vld [vmem:[%s9 + $0x5d0] sm:$0xff]
      %v3642 = vld [vmem:[%s9 + $0x5d8] sm:$0xff]
      %v3643 = vld [vmem:[%s9 + $0x5e0] sm:$0xff]
      %v3644 = vld [vmem:[%s9 + $0x5e8] sm:$0xff]
      %v3645 = vld [vmem:[%s9 + $0x5f0] sm:$0xff]
      %v3646 = vld [vmem:[%s9 + $0x5f8] sm:$0xff]
      %v3647 = vld [vmem:[%s9 + $0x600] sm:$0xff]
      %v3648 = vld [vmem:[%s9 + $0x608] sm:$0xff]
      %v3649 = vld [vmem:[%s9 + $0x610] sm:$0xff]
      %v3650 = vld [vmem:[%s9 + $0x618] sm:$0xff]
      %v3651 = vld [vmem:[%s9 + $0x620] sm:$0xff]
      %v3652 = vld [vmem:[%s9 + $0x628] sm:$0xff]
      %v3653 = vld [vmem:[%s9 + $0x630] sm:$0xff]
      %v3654 = vld [vmem:[%s9 + $0x638] sm:$0xff]
      %v3655 = vld [vmem:[%s9 + $0x640] sm:$0xff]
      %v3656 = vld [vmem:[%s9 + $0x648] sm:$0xff]
      %v3657 = vld [vmem:[%s9 + $0x650] sm:$0xff]
      %v3658 = vld [vmem:[%s9 + $0x658] sm:$0xff]
      %v3659 = vld [vmem:[%s9 + $0x660] sm:$0xff]
      %v3660 = vld [vmem:[%s9 + $0x668] sm:$0xff]
      %v3661 = vld [vmem:[%s9 + $0x670] sm:$0xff]
      %v3662 = vld [vmem:[%s9 + $0x678] sm:$0xff]
      %v3663 = vld [vmem:[%s9 + $0x680] sm:$0xff]
      %v3664 = vld [vmem:[%s9 + $0x688] sm:$0xff]
      %v3665 = vld [vmem:[%s9 + $0x690] sm:$0xff]
      %v3666 = vld [vmem:[%s9 + $0x698] sm:$0xff]
      %v3667 = vld [vmem:[%s9 + $0x6a0] sm:$0xff]
      %v3668 = vld [vmem:[%s9 + $0x6a8] sm:$0xff]
      %v3669 = vld [vmem:[%s9 + $0x6b0] sm:$0xff]
      %v3670 = vld [vmem:[%s9 + $0x6b8] sm:$0xff]
      %v3671 = vld [vmem:[%s9 + $0x6c0] sm:$0xff]
      %v3672 = vld [vmem:[%s9 + $0x6c8] sm:$0xff]
      %v3673 = vld [vmem:[%s9 + $0x6d0] sm:$0xff]
      %v3674 = vld [vmem:[%s9 + $0x6d8] sm:$0xff]
      %v3675 = vld [vmem:[%s9 + $0x6e0] sm:$0xff]
      %v3676 = vld [vmem:[%s9 + $0x6e8] sm:$0xff]
      %v3677 = vld [vmem:[%s9 + $0x6f0] sm:$0xff]
      %v3678 = vld [vmem:[%s9 + $0x6f8] sm:$0xff]
      %v3679 = vld [vmem:[%s9 + $0x700] sm:$0xff]
      %v3680 = vld [vmem:[%s9 + $0x708] sm:$0xff]
      %v3681 = vld [vmem:[%s9 + $0x710] sm:$0xff]
      %v3682 = vld [vmem:[%s9 + $0x718] sm:$0xff]
      %v3683 = vld [vmem:[%s9 + $0x720] sm:$0xff]
      %v3684 = vld [vmem:[%s9 + $0x728] sm:$0xff]
      %v3685 = vld [vmem:[%s9 + $0x730] sm:$0xff]
      %v3686 = vld [vmem:[%s9 + $0x738] sm:$0xff]
      %v3687 = vld [vmem:[%s9 + $0x740] sm:$0xff]
      %v3688 = vld [vmem:[%s9 + $0x748] sm:$0xff]
      %v3689 = vld [vmem:[%s9 + $0x750] sm:$0xff]
      %v3690 = vld [vmem:[%s9 + $0x758] sm:$0xff]
      %v3691 = vld [vmem:[%s9 + $0x760] sm:$0xff]
      %v3692 = vld [vmem:[%s9 + $0x768] sm:$0xff]
      %v3693 = vld [vmem:[%s9 + $0x770] sm:$0xff]
      %v3694 = vld [vmem:[%s9 + $0x778] sm:$0xff]
      %v3695 = vld [vmem:[%s9 + $0x780] sm:$0xff]
      %v3696 = vld [vmem:[%s9 + $0x788] sm:$0xff]
      %v3697 = vld [vmem:[%s9 + $0x790] sm:$0xff]
      %v3698 = vld [vmem:[%s9 + $0x798] sm:$0xff]
      %v3699 = vld [vmem:[%s9 + $0x7a0] sm:$0xff]
      %v3700 = vld [vmem:[%s9 + $0x7a8] sm:$0xff]
      %v3701 = vld [vmem:[%s9 + $0x7b0] sm:$0xff]
      %v3702 = vld [vmem:[%s9 + $0x7b8] sm:$0xff]
      %v3703 = vld [vmem:[%s9 + $0x7c0] sm:$0xff]
      %v3704 = vld [vmem:[%s9 + $0x7c8] sm:$0xff]
      %v3705 = vld [vmem:[%s9 + $0x7d0] sm:$0xff]
      %v3706 = vld [vmem:[%s9 + $0x7d8] sm:$0xff]
      %v3707 = vld [vmem:[%s9 + $0x7e0] sm:$0xff]
      %v3708 = vld [vmem:[%s9 + $0x7e8] sm:$0xff]
      %v3709 = vld [vmem:[%s9 + $0x7f0] sm:$0xff]
      %v3710 = vld [vmem:[%s9 + $0x7f8] sm:$0xff]
      %v3711 = vld [vmem:[#allocation10] sm:$0x1]
      %v3713 = vperm.slane %v3711, 0
      %3723 = vst [vmem:[#allocation1] ss:$4 sm:$0xff] %v3447
      %s3724 = scalar_lea.vmem [#allocation1], 1
      %3725 = vst [vmem:[%s3724] ss:$4 sm:$0xff] %v3451
      %s3726 = scalar_lea.vmem [#allocation1], 32
      %3727 = vst [vmem:[%s3726] ss:$4 sm:$0xff] %v3448
      %s3728 = scalar_lea.vmem [#allocation1], 33
      %3729 = vst [vmem:[%s3728] ss:$4 sm:$0xff] %v3452
      %v3730 = vld.sshfl [vmem:[#allocation1] sm:$0xff pattern:$0x73625140]
      %v3731 = vld.sshfl [vmem:[#allocation1 + $0x8] sm:$0xff pattern:$0x73625140]
      %v3732 = vld.sshfl [vmem:[#allocation1 + $0x10] sm:$0xff pattern:$0x73625140]
      %v3733 = vld.sshfl [vmem:[#allocation1 + $0x18] sm:$0xff pattern:$0x73625140]
      %v3734 = vld.sshfl [vmem:[#allocation1 + $0x20] sm:$0xff pattern:$0x73625140]
      %v3735 = vld.sshfl [vmem:[#allocation1 + $0x28] sm:$0xff pattern:$0x73625140]
      %v3736 = vld.sshfl [vmem:[#allocation1 + $0x30] sm:$0xff pattern:$0x73625140]
      %v3737 = vld.sshfl [vmem:[#allocation1 + $0x38] sm:$0xff pattern:$0x73625140]
      %3738 = vst [vmem:[#allocation1] ss:$4 sm:$0xff] %v3449
      %3739 = vst [vmem:[%s3724] ss:$4 sm:$0xff] %v3453
      %3740 = vst [vmem:[%s3726] ss:$4 sm:$0xff] %v3450
      %3741 = vst [vmem:[%s3728] ss:$4 sm:$0xff] %v3454
      %v3742 = vld.sshfl [vmem:[#allocation1] sm:$0xff pattern:$0x73625140]
      %v3743 = vld.sshfl [vmem:[#allocation1 + $0x8] sm:$0xff pattern:$0x73625140]
      %v3744 = vld.sshfl [vmem:[#allocation1 + $0x10] sm:$0xff pattern:$0x73625140]
      %v3745 = vld.sshfl [vmem:[#allocation1 + $0x18] sm:$0xff pattern:$0x73625140]
      %v3746 = vld.sshfl [vmem:[#allocation1 + $0x20] sm:$0xff pattern:$0x73625140]
      %v3747 = vld.sshfl [vmem:[#allocation1 + $0x28] sm:$0xff pattern:$0x73625140]
      %v3748 = vld.sshfl [vmem:[#allocation1 + $0x30] sm:$0xff pattern:$0x73625140]
      %v3749 = vld.sshfl [vmem:[#allocation1 + $0x38] sm:$0xff pattern:$0x73625140]
      %3766 = vmatpush.msra.mxu0 %v3470
      %3767 = vmatpush.msra.mxu0 %v3469
      %3768 = vmatpush.msra.mxu0 %v3468
      %3769 = vmatpush.msra.mxu0 %v3467
      %3770 = vmatpush.msra.mxu0 %v3466
      %3771 = vmatpush.msra.mxu0 %v3465
      %3772 = vmatpush.msra.mxu0 %v3464
      %3773 = vmatpush.msra.mxu0 %v3463
      %3774 = vmatpush.msra.mxu0 %v3462
      %3775 = vmatpush.msra.mxu0 %v3461
      %3776 = vmatpush.msra.mxu0 %v3460
      %3777 = vmatpush.msra.mxu0 %v3459
      %3778 = vmatpush.msra.mxu0 %v3458
      %3779 = vmatpush.msra.mxu0 %v3457
      %3780 = vmatpush.msra.mxu0 %v3456
      %3781 = vmatpush.msra.mxu0 %v3455
      %3782 = vmatmul.f32.gmra.mxu0 %v3730
      %v3783 = vpop.f32.mrf.mxu0
      %v3784 = vadd.f32 %v3713, %v3783
      %3785 = vdwg.mxu0
      %3786 = vmatpush.msra.mxu0 %v3486
      %3787 = vmatpush.msra.mxu0 %v3485
      %3788 = vmatpush.msra.mxu0 %v3484
      %3789 = vmatpush.msra.mxu0 %v3483
      %3790 = vmatpush.msra.mxu0 %v3482
      %3791 = vmatpush.msra.mxu0 %v3481
      %3792 = vmatpush.msra.mxu0 %v3480
      %3793 = vmatpush.msra.mxu0 %v3479
      %3794 = vmatpush.msra.mxu0 %v3478
      %3795 = vmatpush.msra.mxu0 %v3477
      %3796 = vmatpush.msra.mxu0 %v3476
      %3797 = vmatpush.msra.mxu0 %v3475
      %3798 = vmatpush.msra.mxu0 %v3474
      %3799 = vmatpush.msra.mxu0 %v3473
      %3800 = vmatpush.msra.mxu0 %v3472
      %3801 = vmatpush.msra.mxu0 %v3471
      %3802 = vmatmul.f32.gmra.mxu0 %v3731
      %v3803 = vpop.f32.mrf.mxu0
      %v3804 = vadd.f32 %v3784, %v3803
      %3805 = vdwg.mxu0
      %3806 = vmatpush.msra.mxu0 %v3502
      %3807 = vmatpush.msra.mxu0 %v3501
      %3808 = vmatpush.msra.mxu0 %v3500
      %3809 = vmatpush.msra.mxu0 %v3499
      %3810 = vmatpush.msra.mxu0 %v3498
      %3811 = vmatpush.msra.mxu0 %v3497
      %3812 = vmatpush.msra.mxu0 %v3496
      %3813 = vmatpush.msra.mxu0 %v3495
      %3814 = vmatpush.msra.mxu0 %v3494
      %3815 = vmatpush.msra.mxu0 %v3493
      %3816 = vmatpush.msra.mxu0 %v3492
      %3817 = vmatpush.msra.mxu0 %v3491
      %3818 = vmatpush.msra.mxu0 %v3490
      %3819 = vmatpush.msra.mxu0 %v3489
      %3820 = vmatpush.msra.mxu0 %v3488
      %3821 = vmatpush.msra.mxu0 %v3487
      %3822 = vmatmul.f32.gmra.mxu0 %v3732
      %v3823 = vpop.f32.mrf.mxu0
      %v3824 = vadd.f32 %v3804, %v3823
      %3825 = vdwg.mxu0
      %3826 = vmatpush.msra.mxu0 %v3518
      %3827 = vmatpush.msra.mxu0 %v3517
      %3828 = vmatpush.msra.mxu0 %v3516
      %3829 = vmatpush.msra.mxu0 %v3515
      %3830 = vmatpush.msra.mxu0 %v3514
      %3831 = vmatpush.msra.mxu0 %v3513
      %3832 = vmatpush.msra.mxu0 %v3512
      %3833 = vmatpush.msra.mxu0 %v3511
      %3834 = vmatpush.msra.mxu0 %v3510
      %3835 = vmatpush.msra.mxu0 %v3509
      %3836 = vmatpush.msra.mxu0 %v3508
      %3837 = vmatpush.msra.mxu0 %v3507
      %3838 = vmatpush.msra.mxu0 %v3506
      %3839 = vmatpush.msra.mxu0 %v3505
      %3840 = vmatpush.msra.mxu0 %v3504
      %3841 = vmatpush.msra.mxu0 %v3503
      %3842 = vmatmul.f32.gmra.mxu0 %v3733
      %v3843 = vpop.f32.mrf.mxu0
      %v3844 = vadd.f32 %v3824, %v3843
      %3845 = vdwg.mxu0
      %3846 = vmatpush.msra.mxu0 %v3534
      %3847 = vmatpush.msra.mxu0 %v3533
      %3848 = vmatpush.msra.mxu0 %v3532
      %3849 = vmatpush.msra.mxu0 %v3531
      %3850 = vmatpush.msra.mxu0 %v3530
      %3851 = vmatpush.msra.mxu0 %v3529
      %3852 = vmatpush.msra.mxu0 %v3528
      %3853 = vmatpush.msra.mxu0 %v3527
      %3854 = vmatpush.msra.mxu0 %v3526
      %3855 = vmatpush.msra.mxu0 %v3525
      %3856 = vmatpush.msra.mxu0 %v3524
      %3857 = vmatpush.msra.mxu0 %v3523
      %3858 = vmatpush.msra.mxu0 %v3522
      %3859 = vmatpush.msra.mxu0 %v3521
      %3860 = vmatpush.msra.mxu0 %v3520
      %3861 = vmatpush.msra.mxu0 %v3519
      %3862 = vmatmul.f32.gmra.mxu0 %v3734
      %v3863 = vpop.f32.mrf.mxu0
      %v3864 = vadd.f32 %v3844, %v3863
      %3865 = vdwg.mxu0
      %3866 = vmatpush.msra.mxu0 %v3550
      %3867 = vmatpush.msra.mxu0 %v3549
      %3868 = vmatpush.msra.mxu0 %v3548
      %3869 = vmatpush.msra.mxu0 %v3547
      %3870 = vmatpush.msra.mxu0 %v3546
      %3871 = vmatpush.msra.mxu0 %v3545
      %3872 = vmatpush.msra.mxu0 %v3544
      %3873 = vmatpush.msra.mxu0 %v3543
      %3874 = vmatpush.msra.mxu0 %v3542
      %3875 = vmatpush.msra.mxu0 %v3541
      %3876 = vmatpush.msra.mxu0 %v3540
      %3877 = vmatpush.msra.mxu0 %v3539
      %3878 = vmatpush.msra.mxu0 %v3538
      %3879 = vmatpush.msra.mxu0 %v3537
      %3880 = vmatpush.msra.mxu0 %v3536
      %3881 = vmatpush.msra.mxu0 %v3535
      %3882 = vmatmul.f32.gmra.mxu0 %v3735
      %v3883 = vpop.f32.mrf.mxu0
      %v3884 = vadd.f32 %v3864, %v3883
      %3885 = vdwg.mxu0
      %3886 = vmatpush.msra.mxu0 %v3566
      %3887 = vmatpush.msra.mxu0 %v3565
      %3888 = vmatpush.msra.mxu0 %v3564
      %3889 = vmatpush.msra.mxu0 %v3563
      %3890 = vmatpush.msra.mxu0 %v3562
      %3891 = vmatpush.msra.mxu0 %v3561
      %3892 = vmatpush.msra.mxu0 %v3560
      %3893 = vmatpush.msra.mxu0 %v3559
      %3894 = vmatpush.msra.mxu0 %v3558
      %3895 = vmatpush.msra.mxu0 %v3557
      %3896 = vmatpush.msra.mxu0 %v3556
      %3897 = vmatpush.msra.mxu0 %v3555
      %3898 = vmatpush.msra.mxu0 %v3554
      %3899 = vmatpush.msra.mxu0 %v3553
      %3900 = vmatpush.msra.mxu0 %v3552
      %3901 = vmatpush.msra.mxu0 %v3551
      %3902 = vmatmul.f32.gmra.mxu0 %v3736
      %v3903 = vpop.f32.mrf.mxu0
      %v3904 = vadd.f32 %v3884, %v3903
      %3905 = vdwg.mxu0
      %3906 = vmatpush.msra.mxu0 %v3582
      %3907 = vmatpush.msra.mxu0 %v3581
      %3908 = vmatpush.msra.mxu0 %v3580
      %3909 = vmatpush.msra.mxu0 %v3579
      %3910 = vmatpush.msra.mxu0 %v3578
      %3911 = vmatpush.msra.mxu0 %v3577
      %3912 = vmatpush.msra.mxu0 %v3576
      %3913 = vmatpush.msra.mxu0 %v3575
      %3914 = vmatpush.msra.mxu0 %v3574
      %3915 = vmatpush.msra.mxu0 %v3573
      %3916 = vmatpush.msra.mxu0 %v3572
      %3917 = vmatpush.msra.mxu0 %v3571
      %3918 = vmatpush.msra.mxu0 %v3570
      %3919 = vmatpush.msra.mxu0 %v3569
      %3920 = vmatpush.msra.mxu0 %v3568
      %3921 = vmatpush.msra.mxu0 %v3567
      %3922 = vmatmul.f32.gmra.mxu0 %v3737
      %v3923 = vpop.f32.mrf.mxu0
      %v3924 = vadd.f32 %v3904, %v3923
      %3925 = vdwg.mxu0
      %3926 = vmatpush.msra.mxu0 %v3598
      %3927 = vmatpush.msra.mxu0 %v3597
      %3928 = vmatpush.msra.mxu0 %v3596
      %3929 = vmatpush.msra.mxu0 %v3595
      %3930 = vmatpush.msra.mxu0 %v3594
      %3931 = vmatpush.msra.mxu0 %v3593
      %3932 = vmatpush.msra.mxu0 %v3592
      %3933 = vmatpush.msra.mxu0 %v3591
      %3934 = vmatpush.msra.mxu0 %v3590
      %3935 = vmatpush.msra.mxu0 %v3589
      %3936 = vmatpush.msra.mxu0 %v3588
      %3937 = vmatpush.msra.mxu0 %v3587
      %3938 = vmatpush.msra.mxu0 %v3586
      %3939 = vmatpush.msra.mxu0 %v3585
      %3940 = vmatpush.msra.mxu0 %v3584
      %3941 = vmatpush.msra.mxu0 %v3583
      %3942 = vmatmul.f32.gmra.mxu0 %v3742
      %v3943 = vpop.f32.mrf.mxu0
      %v3944 = vadd.f32 %v3924, %v3943
      %3945 = vdwg.mxu0
      %3946 = vmatpush.msra.mxu0 %v3614
      %3947 = vmatpush.msra.mxu0 %v3613
      %3948 = vmatpush.msra.mxu0 %v3612
      %3949 = vmatpush.msra.mxu0 %v3611
      %3950 = vmatpush.msra.mxu0 %v3610
      %3951 = vmatpush.msra.mxu0 %v3609
      %3952 = vmatpush.msra.mxu0 %v3608
      %3953 = vmatpush.msra.mxu0 %v3607
      %3954 = vmatpush.msra.mxu0 %v3606
      %3955 = vmatpush.msra.mxu0 %v3605
      %3956 = vmatpush.msra.mxu0 %v3604
      %3957 = vmatpush.msra.mxu0 %v3603
      %3958 = vmatpush.msra.mxu0 %v3602
      %3959 = vmatpush.msra.mxu0 %v3601
      %3960 = vmatpush.msra.mxu0 %v3600
      %3961 = vmatpush.msra.mxu0 %v3599
      %3962 = vmatmul.f32.gmra.mxu0 %v3743
      %v3963 = vpop.f32.mrf.mxu0
      %v3964 = vadd.f32 %v3944, %v3963
      %3965 = vdwg.mxu0
      %3966 = vmatpush.msra.mxu0 %v3630
      %3967 = vmatpush.msra.mxu0 %v3629
      %3968 = vmatpush.msra.mxu0 %v3628
      %3969 = vmatpush.msra.mxu0 %v3627
      %3970 = vmatpush.msra.mxu0 %v3626
      %3971 = vmatpush.msra.mxu0 %v3625
      %3972 = vmatpush.msra.mxu0 %v3624
      %3973 = vmatpush.msra.mxu0 %v3623
      %3974 = vmatpush.msra.mxu0 %v3622
      %3975 = vmatpush.msra.mxu0 %v3621
      %3976 = vmatpush.msra.mxu0 %v3620
      %3977 = vmatpush.msra.mxu0 %v3619
      %3978 = vmatpush.msra.mxu0 %v3618
      %3979 = vmatpush.msra.mxu0 %v3617
      %3980 = vmatpush.msra.mxu0 %v3616
      %3981 = vmatpush.msra.mxu0 %v3615
      %3982 = vmatmul.f32.gmra.mxu0 %v3744
      %v3983 = vpop.f32.mrf.mxu0
      %v3984 = vadd.f32 %v3964, %v3983
      %3985 = vdwg.mxu0
      %3986 = vmatpush.msra.mxu0 %v3646
      %3987 = vmatpush.msra.mxu0 %v3645
      %3988 = vmatpush.msra.mxu0 %v3644
      %3989 = vmatpush.msra.mxu0 %v3643
      %3990 = vmatpush.msra.mxu0 %v3642
      %3991 = vmatpush.msra.mxu0 %v3641
      %3992 = vmatpush.msra.mxu0 %v3640
      %3993 = vmatpush.msra.mxu0 %v3639
      %3994 = vmatpush.msra.mxu0 %v3638
      %3995 = vmatpush.msra.mxu0 %v3637
      %3996 = vmatpush.msra.mxu0 %v3636
      %3997 = vmatpush.msra.mxu0 %v3635
      %3998 = vmatpush.msra.mxu0 %v3634
      %3999 = vmatpush.msra.mxu0 %v3633
      %4000 = vmatpush.msra.mxu0 %v3632
      %4001 = vmatpush.msra.mxu0 %v3631
      %4002 = vmatmul.f32.gmra.mxu0 %v3745
      %v4003 = vpop.f32.mrf.mxu0
      %v4004 = vadd.f32 %v3984, %v4003
      %4005 = vdwg.mxu0
      %4006 = vmatpush.msra.mxu0 %v3662
      %4007 = vmatpush.msra.mxu0 %v3661
      %4008 = vmatpush.msra.mxu0 %v3660
      %4009 = vmatpush.msra.mxu0 %v3659
      %4010 = vmatpush.msra.mxu0 %v3658
      %4011 = vmatpush.msra.mxu0 %v3657
      %4012 = vmatpush.msra.mxu0 %v3656
      %4013 = vmatpush.msra.mxu0 %v3655
      %4014 = vmatpush.msra.mxu0 %v3654
      %4015 = vmatpush.msra.mxu0 %v3653
      %4016 = vmatpush.msra.mxu0 %v3652
      %4017 = vmatpush.msra.mxu0 %v3651
      %4018 = vmatpush.msra.mxu0 %v3650
      %4019 = vmatpush.msra.mxu0 %v3649
      %4020 = vmatpush.msra.mxu0 %v3648
      %4021 = vmatpush.msra.mxu0 %v3647
      %4022 = vmatmul.f32.gmra.mxu0 %v3746
      %v4023 = vpop.f32.mrf.mxu0
      %v4024 = vadd.f32 %v4004, %v4023
      %4025 = vdwg.mxu0
      %4026 = vmatpush.msra.mxu0 %v3678
      %4027 = vmatpush.msra.mxu0 %v3677
      %4028 = vmatpush.msra.mxu0 %v3676
      %4029 = vmatpush.msra.mxu0 %v3675
      %4030 = vmatpush.msra.mxu0 %v3674
      %4031 = vmatpush.msra.mxu0 %v3673
      %4032 = vmatpush.msra.mxu0 %v3672
      %4033 = vmatpush.msra.mxu0 %v3671
      %4034 = vmatpush.msra.mxu0 %v3670
      %4035 = vmatpush.msra.mxu0 %v3669
      %4036 = vmatpush.msra.mxu0 %v3668
      %4037 = vmatpush.msra.mxu0 %v3667
      %4038 = vmatpush.msra.mxu0 %v3666
      %4039 = vmatpush.msra.mxu0 %v3665
      %4040 = vmatpush.msra.mxu0 %v3664
      %4041 = vmatpush.msra.mxu0 %v3663
      %4042 = vmatmul.f32.gmra.mxu0 %v3747
      %v4043 = vpop.f32.mrf.mxu0
      %v4044 = vadd.f32 %v4024, %v4043
      %4045 = vdwg.mxu0
      %4046 = vmatpush.msra.mxu0 %v3694
      %4047 = vmatpush.msra.mxu0 %v3693
      %4048 = vmatpush.msra.mxu0 %v3692
      %4049 = vmatpush.msra.mxu0 %v3691
      %4050 = vmatpush.msra.mxu0 %v3690
      %4051 = vmatpush.msra.mxu0 %v3689
      %4052 = vmatpush.msra.mxu0 %v3688
      %4053 = vmatpush.msra.mxu0 %v3687
      %4054 = vmatpush.msra.mxu0 %v3686
      %4055 = vmatpush.msra.mxu0 %v3685
      %4056 = vmatpush.msra.mxu0 %v3684
      %4057 = vmatpush.msra.mxu0 %v3683
      %4058 = vmatpush.msra.mxu0 %v3682
      %4059 = vmatpush.msra.mxu0 %v3681
      %4060 = vmatpush.msra.mxu0 %v3680
      %4061 = vmatpush.msra.mxu0 %v3679
      %4062 = vmatmul.f32.gmra.mxu0 %v3748
      %v4063 = vpop.f32.mrf.mxu0
      %v4064 = vadd.f32 %v4044, %v4063
      %4065 = vdwg.mxu0
      %4066 = vmatpush.msra.mxu0 %v3710
      %4067 = vmatpush.msra.mxu0 %v3709
      %4068 = vmatpush.msra.mxu0 %v3708
      %4069 = vmatpush.msra.mxu0 %v3707
      %4070 = vmatpush.msra.mxu0 %v3706
      %4071 = vmatpush.msra.mxu0 %v3705
      %4072 = vmatpush.msra.mxu0 %v3704
      %4073 = vmatpush.msra.mxu0 %v3703
      %4074 = vmatpush.msra.mxu0 %v3702
      %4075 = vmatpush.msra.mxu0 %v3701
      %4076 = vmatpush.msra.mxu0 %v3700
      %4077 = vmatpush.msra.mxu0 %v3699
      %4078 = vmatpush.msra.mxu0 %v3698
      %4079 = vmatpush.msra.mxu0 %v3697
      %4080 = vmatpush.msra.mxu0 %v3696
      %4081 = vmatpush.msra.mxu0 %v3695
      %4082 = vmatmul.f32.gmra.mxu0 %v3749
      %v4083 = vpop.f32.mrf.mxu0
      %v4084 = vadd.f32 %v4064, %v4083
      %4085 = vdwg.mxu0
      %v4086 = vxor.u32 %v4084, 2147483648
      %v4087 = vmul.f32 %v4086, 1.442695
      %v4088 = vpow.pop %v4087
      %v4089 = vadd.f32 %v4088, 1.0
      %v4090 = vrcp.pop %v4089
      %v4091 = vmul.f32 %v4089, %v4090
      %v4092 = vsub.f32 1.0, %v4091
      %v4093 = vmul.f32 %v4090, %v4092
      %v4094 = vadd.f32 %v4090, %v4093
      %vm4095 = vweird.f32 %v4089
      %vm4096 = vweird.f32 %v4090
      %vm4097 = vmor %vm4095, %vm4096
      %v4098 = vsel %vm4097, %v4090, %v4094
      %v4099 = vand.u32 2147483647, %v4089
      %vm4100 = vcmp.eq.f32.partialorder %v4099, 8.507059e+37
      %v4101 = vand.u32 %v4089, 2147483648
      %v4102 = vor.u32 1.1754944e-38, %v4101
      %v4103 = vsel %vm4100, %v4102, %v4098
      %v4104 = vmul.f32 1.0, %v4103
      %vm4105 = vcmask 3072
      %4106 = vst.msk [vmem:[%s386] sm:$0xf] %vm4105, %v4104
      %p4107 = scmp.lt.s32.totalorder %s24, 1
      %s4108 = scalar_select %p4107, %s24, 1
      %s4109 = smul.addr %s4108, 4
      %s4110 = scalar_lea.vmem %s11, %s4109
      // Predicated region
      $region65: #{discriminator_forward_pallas.1} parent=63 // pred_check
        %p4111 = pneg %p278
      $region66: #{discriminator_forward_pallas.1} parent=63 // pred_check_branch
        %4113 = sbr.rel (%p4111) target = $region68
      $region67: #{discriminator_forward_pallas.1} parent=63 // pred_region
        _
      $region68: #{discriminator_forward_pallas.1} parent=63 // pred_fallthru
        _
    $region64: #{discriminator_forward_pallas.1} parent=5 // pred_fallthru
      _
    %p4114 = scmp.le.s32.totalorder 2, %s19
    // Predicated region
    $region69: #{discriminator_forward_pallas.1} parent=5 // pred_check
      %p4115 = pneg %p4114
    $region70: #{discriminator_forward_pallas.1} parent=5 // pred_check_branch
      %4117 = sbr.rel (%p4115) target = $region72
    $region71: #{discriminator_forward_pallas.1} parent=5 // pred_region
      %s4118 = ssub.s32 %s19, 2
      // Predicated region
      $region73: #{discriminator_forward_pallas.1} parent=71 // pred_check
        %p4119 = pneg %p284
      $region74: #{discriminator_forward_pallas.1} parent=71 // pred_check_branch
        %4121 = sbr.rel (%p4119) target = $region76
      $region75: #{discriminator_forward_pallas.1} parent=71 // pred_region
        %p4122 = scmp.lt.s32.totalorder %s25, 1
        %s4123 = scalar_select %p4122, %s25, 1
        %s4124 = smul.addr %s4123, 4
        %s4125 = scalar_lea.vmem %s11, %s4124
      $region76: #{discriminator_forward_pallas.1} parent=71 // pred_fallthru
        _
    $region72: #{discriminator_forward_pallas.1} parent=5 // pred_fallthru
      _
  $region6: #{discriminator_forward_pallas.1} parent=0 // loop_footer
    %s23 = sadd.s32 1, %s19
  $region7: #{discriminator_forward_pallas.1} parent=0 // loop_footer_branch
    %18 = sbr.rel target = $region3
  $region8: #{discriminator_forward_pallas.1} parent=0 // loop_exit
    _

</llo_original>
